<compile_context>
chip_gen: v7x
topology: tpu7x:2x2x1
jax: 0.10.0
libtpu: 0.0.40
codegen_flags: <defaults>
</compile_context>

<pallas_src>
import functools

import jax
import jax.numpy as jnp
from jax.experimental import pallas as pl
from jax.experimental.pallas import tpu as pltpu

K_SIZE = 5   # conv kernel size
POOL = 5     # max_pool1d kernel size (stride 1, valid)


# ----------------------------- Pallas kernel ------------------------------- #

def gp_cnn_kernel(x_ref,
                  w1_ref, b1_ref, w2_ref, b2_ref, w3_ref, b3_ref,
                  fw1_ref, fb1_ref, fw2_ref, fb2_ref,
                  out_ref, *, cout, pool_dtype):
    cd = w1_ref.dtype                              # matmul compute dtype (bf16 or f32)
    pd = pool_dtype                                # dtype for pool / global-max work

    def conv_relu(h, wf_ref, b_ref):
        # Explicit 2D flatten -> ONE (B_t*L, Cin) @ (Cin, K*Cout) MXU matmul.
        # L is always a multiple of 8 here (32/24/16), so the reshape is
        # layout-free (sublane-aligned collapse).
        bt, l, c = h.shape
        h2 = h.reshape(bt * l, c).astype(cd)
        y = jnp.dot(h2, wf_ref[...], preferred_element_type=jnp.float32)
        y = y.reshape(bt, l, K_SIZE * cout)
        l_out = l - K_SIZE + 1
        acc = y[:, 0:l_out, 0:cout]                # tap 0 initializes (no zeros+add)
        for k in range(1, K_SIZE):                 # sublane-shifted panel adds
            acc = acc + y[:, k:k + l_out, k * cout:(k + 1) * cout]
        return jnp.maximum(acc + b_ref[...], 0.0)  # bias (1, Cout) + ReLU in f32

    def maxpool(h):
        l_out = h.shape[1] - POOL + 1
        p = h[:, 0:l_out, :]
        for j in range(1, POOL):
            p = jnp.maximum(p, h[:, j:j + l_out, :])
        return p

    h = conv_relu(x_ref[...], w1_ref, b1_ref).astype(pd)   # conv1 + relu, cast pre-pool
    h = maxpool(h)                                         # max_pool1d(5, 1)
    h = conv_relu(h, w2_ref, b2_ref).astype(pd)            # conv2 + relu
    h = maxpool(h)                                         # max_pool1d(5, 1)
    h = conv_relu(h, w3_ref, b3_ref).astype(pd)            # conv3 + relu
    feat = jnp.max(h, axis=1).astype(cd)                   # global max over time -> (B_t, 128)

    z = jnp.maximum(
        jnp.dot(feat, fw1_ref[...], preferred_element_type=jnp.float32)
        + fb1_ref[...], 0.0).astype(cd)                    # fc1 + relu
    out_ref[...] = (                                       # fc2 (1/temp folded in)
        jnp.dot(z, fw2_ref[...], preferred_element_type=jnp.float32)
        + fb2_ref[...]).astype(out_ref.dtype)


# ------------------------------- wrapper ------------------------------------ #

def _prepare_params(params, temp, compute_dtype, padded_classes, cin_pad):
    """Wrapper-side weight re-layout: lane-dense fused conv weights (Cin rows
    zero-padded to 128 for conv1), transposed FC weights, 1/temp folded into
    fc2, biases as (1, C) f32 rows."""
    w1, b1, w2, b2, w3, b3, fw1, fb1, fw2, fb2 = [
        p.astype(jnp.float32) for p in params]

    def fuse_conv(w, pad_to=None):                 # (Cout, Cin, K) -> (Cin_pad, K*Cout)
        cout, cin, k = w.shape
        wf = jnp.transpose(w, (1, 2, 0)).reshape(cin, k * cout)
        if pad_to is not None and pad_to > cin:
            wf = jnp.pad(wf, ((0, pad_to - cin), (0, 0)))
        return wf.astype(compute_dtype)

    nc = fw2.shape[0]
    fw2_t = jnp.pad(fw2.T / temp, ((0, 0), (0, padded_classes - nc)))
    fb2_p = jnp.pad(fb2 / temp, (0, padded_classes - nc))
    return (fuse_conv(w1, cin_pad), b1.reshape(1, -1),
            fuse_conv(w2), b2.reshape(1, -1),
            fuse_conv(w3), b3.reshape(1, -1),
            fw1.T.astype(compute_dtype), fb1.reshape(1, -1),
            fw2_t.astype(compute_dtype), fb2_p.reshape(1, -1))


def _pick_batch_tile(batch, seq_len, target_rows=2048, max_rows=4096):
    """Pick a batch tile giving >=~target_rows flattened (batch*time) rows per
    MXU call (amortizes the ~0.35 us per-grid-step cost), capped so the per-step
    f32 conv temp (rows*640*4 B) stays well inside the 32 MiB scoped VMEM on
    every generation.  For batch >= 16, the tile is capped at batch//2 so the
    grid always has >=2 steps and v7x's two TensorCores both get work."""
    max_tile = batch // 2 if batch >= 16 else batch
    # Output block second-minor dim must be the full batch or a multiple of 8
    # for unmasked stores.
    cands = [d for d in range(1, max_tile + 1)
             if batch % d == 0 and (d == batch or d % 8 == 0)]
    if not cands:
        return batch
    ok = [d for d in cands if target_rows <= d * seq_len <= max_rows]
    if ok:
        return min(ok)
    under = [d for d in cands if d * seq_len <= max_rows]
    return max(under) if under else min(cands)


def global_pooling_cnn(x, params, temp=1.0, *, compute_dtype=jnp.bfloat16,
                       pool_dtype=None, batch_tile=None, target_rows=2048):
    """x: (B, L, 100) float32 (the layout the PyTorch module receives before
    its internal transpose(1, 2)).  Returns (B, num_classes) float32.

    On v5e pass pool_dtype=jnp.float32 (no bf16 VPU); on v6e/v7x the default
    (pool in compute_dtype) halves elementwise vreg traffic at zero accuracy
    cost."""
    batch, seq_len, cin = x.shape
    num_classes = params[-2].shape[0]
    cout = params[0].shape[0]                      # 128
    padded_classes = ((num_classes + 127) // 128) * 128
    cin_pad = ((cin + 127) // 128) * 128           # 100 -> 128: lane-dense conv1
    if pool_dtype is None:
        pool_dtype = compute_dtype

    prepped = _prepare_params(params, temp, compute_dtype, padded_classes, cin_pad)
    x_c = jnp.pad(x, ((0, 0), (0, 0), (0, cin_pad - cin))).astype(compute_dtype)

    if batch_tile is None:
        batch_tile = _pick_batch_tile(batch, seq_len, target_rows=target_rows)
    assert batch % batch_tile == 0

    def const_map(ndim):
        return lambda i, _n=ndim: (0,) * _n        # weights stay resident per tile

    in_specs = [pl.BlockSpec((batch_tile, seq_len, cin_pad), lambda i: (i, 0, 0))]
    in_specs += [pl.BlockSpec(a.shape, const_map(a.ndim)) for a in prepped]

    out = pl.pallas_call(
        functools.partial(gp_cnn_kernel, cout=cout, pool_dtype=pool_dtype),
        out_shape=jax.ShapeDtypeStruct((batch, padded_classes), jnp.float32),
        grid_spec=pltpu.PrefetchScalarGridSpec(
            num_scalar_prefetch=0,
            grid=(batch // batch_tile,),
            in_specs=in_specs,
            out_specs=pl.BlockSpec((batch_tile, padded_classes),
                                   lambda i: (i, 0)),
        ),
        compiler_params=pltpu.CompilerParams(
            dimension_semantics=("parallel",),     # megacore batch sharding on v7x
        ),
    )(x_c, *prepped)
    return out[:, :num_classes]


# --------------------------- pure-JAX reference ----------------------------- #

def reference(x, params, temp=1.0):
    w1, b1, w2, b2, w3, b3, fw1, fb1, fw2, fb2 = params
    dn = ("NCH", "OIH", "NCH")
    h = jnp.transpose(x, (0, 2, 1))                # (B, C, L), like PyTorch

    def conv(h, w, b):
        y = jax.lax.conv_general_dilated(h, w, (1,), "VALID", dimension_numbers=dn)
        return jax.nn.relu(y + b[None, :, None])

    def pool(h):
        return jax.lax.reduce_window(h, -jnp.inf, jax.lax.max,
                                     (1, 1, POOL), (1, 1, 1), "VALID")

    h = pool(conv(h, w1, b1))
    h = pool(conv(h, w2, b2))
    h = conv(h, w3, b3)
    feat = jnp.max(h, axis=2)
    z = jax.nn.relu(feat @ fw1.T + fb1)
    return (z @ fw2.T + fb2) / temp


# --------------------------------- main ------------------------------------- #

def init_params(key, num_classes=20):
    ks = jax.random.split(key, 10)

    def rnd(k, shape, fan_in):
        return jax.random.normal(k, shape, jnp.float32) / jnp.sqrt(float(fan_in))

    w1 = rnd(ks[0], (128, 100, 5), 100 * 5)
    b1 = rnd(ks[1], (128,), 100 * 5)
    w2 = rnd(ks[2], (128, 128, 5), 128 * 5)
    b2 = rnd(ks[3], (128,), 128 * 5)
    w3 = rnd(ks[4], (128, 128, 5), 128 * 5)
    b3 = rnd(ks[5], (128,), 128 * 5)
    fw1 = rnd(ks[6], (128, 128), 128)
    fb1 = rnd(ks[7], (128,), 128)
    fw2 = rnd(ks[8], (num_classes, 128), 128)
    fb2 = rnd(ks[9], (num_classes,), 128)
    return (w1, b1, w2, b2, w3, b3, fw1, fb1, fw2, fb2)


if __name__ == "__main__":
    key = jax.random.PRNGKey(0)
    k_x, k_p, k_x2 = jax.random.split(key, 3)

    L, C_IN = 32, 100                # L must be >= 21 (three convs + two pools)
    TEMP = 1.5
    NUM_CLASSES = 20
    params = init_params(k_p, NUM_CLASSES)

    # --- batch 16: exercises the >=2-grid-step path (tile=8, grid=2) ---------
    B = 16
    x = jax.random.normal(k_x, (B, L, C_IN), jnp.float32)
    ref = jax.block_until_ready(reference(x, params, temp=TEMP))

    # f32 compute path: tight semantic check against the PyTorch-equivalent reference.
    out_f32 = jax.block_until_ready(
        global_pooling_cnn(x, params, temp=TEMP, compute_dtype=jnp.float32))
    assert out_f32.shape == (B, NUM_CLASSES)
    assert jnp.allclose(out_f32, ref, atol=2e-4, rtol=2e-4), (
        f"f32 max abs err = {jnp.max(jnp.abs(out_f32 - ref))}")

    # Default bf16 perf path: bf16 matmuls + bf16 pooling, f32 accumulation.
    out_bf16 = jax.block_until_ready(global_pooling_cnn(x, params, temp=TEMP))
    assert out_bf16.shape == (B, NUM_CLASSES)
    assert jnp.allclose(out_bf16, ref, atol=3e-2, rtol=3e-2), (
        f"bf16 max abs err = {jnp.max(jnp.abs(out_bf16 - ref))}")

    # --- tiny batch (B=2): masked-store path still correct -------------------
    B2 = 2
    x2 = jax.random.normal(k_x2, (B2, L, C_IN), jnp.float32)
    ref2 = jax.block_until_ready(reference(x2, params, temp=TEMP))
    out2 = jax.block_until_ready(global_pooling_cnn(x2, params, temp=TEMP))
    assert out2.shape == (B2, NUM_CLASSES)
    assert jnp.allclose(out2, ref2, atol=3e-2, rtol=3e-2), (
        f"bf16 (B=2) max abs err = {jnp.max(jnp.abs(out2 - ref2))}")

    print("KERNEL_OK")
</pallas_src>

<mosaic_0001>
module attributes {stable_mosaic.version = 11 : i64} {
  func.func @gp_cnn_kernel(%arg0: i32, %arg1: memref<8x32x128xf32, #tpu.memory_space<vmem>>, %arg2: memref<128x640xf32, #tpu.memory_space<vmem>>, %arg3: memref<1x128xf32, #tpu.memory_space<vmem>>, %arg4: memref<128x640xf32, #tpu.memory_space<vmem>>, %arg5: memref<1x128xf32, #tpu.memory_space<vmem>>, %arg6: memref<128x640xf32, #tpu.memory_space<vmem>>, %arg7: memref<1x128xf32, #tpu.memory_space<vmem>>, %arg8: memref<128x128xf32, #tpu.memory_space<vmem>>, %arg9: memref<1x128xf32, #tpu.memory_space<vmem>>, %arg10: memref<128x128xf32, #tpu.memory_space<vmem>>, %arg11: memref<1x128xf32, #tpu.memory_space<vmem>>, %arg12: memref<8x128xf32, #tpu.memory_space<vmem>>) attributes {dimension_semantics = [#tpu.dimension_semantics<parallel>], iteration_bounds = array<i64: 2>, scalar_prefetch = 0 : i64, scratch_operands = 0 : i64, tpu.core_type = #tpu.core_type<tc>, window_params = [{transform_indices = @transform_0, window_bounds = array<i64: 8, 32, 128>}, {pipeline_mode = #tpu.pipeline_mode<synchronous>, transform_indices = @transform_1, window_bounds = array<i64: 128, 640>}, {pipeline_mode = #tpu.pipeline_mode<synchronous>, transform_indices = @transform_2, window_bounds = array<i64: 1, 128>}, {pipeline_mode = #tpu.pipeline_mode<synchronous>, transform_indices = @transform_3, window_bounds = array<i64: 128, 640>}, {pipeline_mode = #tpu.pipeline_mode<synchronous>, transform_indices = @transform_4, window_bounds = array<i64: 1, 128>}, {pipeline_mode = #tpu.pipeline_mode<synchronous>, transform_indices = @transform_5, window_bounds = array<i64: 128, 640>}, {pipeline_mode = #tpu.pipeline_mode<synchronous>, transform_indices = @transform_6, window_bounds = array<i64: 1, 128>}, {pipeline_mode = #tpu.pipeline_mode<synchronous>, transform_indices = @transform_7, window_bounds = array<i64: 128, 128>}, {pipeline_mode = #tpu.pipeline_mode<synchronous>, transform_indices = @transform_8, window_bounds = array<i64: 1, 128>}, {pipeline_mode = #tpu.pipeline_mode<synchronous>, transform_indices = @transform_9, window_bounds = array<i64: 128, 128>}, {pipeline_mode = #tpu.pipeline_mode<synchronous>, transform_indices = @transform_10, window_bounds = array<i64: 1, 128>}, {transform_indices = @transform_11, window_bounds = array<i64: 8, 128>}]} {
    %c0 = arith.constant 0 : index
    %c0_0 = arith.constant 0 : index
    %c0_1 = arith.constant 0 : index
    %0 = vector.load %arg1[%c0, %c0_0, %c0_1] : memref<8x32x128xf32, #tpu.memory_space<vmem>>, vector<8x32x128xf32>
    %1 = vector.shape_cast %0 : vector<8x32x128xf32> to vector<256x128xf32>
    %c0_2 = arith.constant 0 : index
    %c0_3 = arith.constant 0 : index
    %2 = vector.load %arg2[%c0_2, %c0_3] : memref<128x640xf32, #tpu.memory_space<vmem>>, vector<128x640xf32>
    %cst = arith.constant dense<0.000000e+00> : vector<256x640xf32>
    %3 = tpu.matmul %1, %2, %cst {dimension_numbers = #tpu.dot_dimension_numbers<[1], [0], [0], [1], [0, 0, 1, 1], [], []>} : vector<256x128xf32>, vector<128x640xf32>, vector<256x640xf32> -> vector<256x640xf32>
    %4 = vector.shape_cast %3 : vector<256x640xf32> to vector<8x32x640xf32>
    %5 = vector.extract_strided_slice %4 {offsets = [0, 0, 0], sizes = [8, 28, 128], strides = [1, 1, 1]} : vector<8x32x640xf32> to vector<8x28x128xf32>
    %6 = vector.extract_strided_slice %4 {offsets = [0, 1, 128], sizes = [8, 28, 128], strides = [1, 1, 1]} : vector<8x32x640xf32> to vector<8x28x128xf32>
    %7 = arith.addf %5, %6 : vector<8x28x128xf32>
    %8 = vector.extract_strided_slice %4 {offsets = [0, 2, 256], sizes = [8, 28, 128], strides = [1, 1, 1]} : vector<8x32x640xf32> to vector<8x28x128xf32>
    %9 = arith.addf %7, %8 : vector<8x28x128xf32>
    %10 = vector.extract_strided_slice %4 {offsets = [0, 3, 384], sizes = [8, 28, 128], strides = [1, 1, 1]} : vector<8x32x640xf32> to vector<8x28x128xf32>
    %11 = arith.addf %9, %10 : vector<8x28x128xf32>
    %12 = vector.extract_strided_slice %4 {offsets = [0, 4, 512], sizes = [8, 28, 128], strides = [1, 1, 1]} : vector<8x32x640xf32> to vector<8x28x128xf32>
    %13 = arith.addf %11, %12 : vector<8x28x128xf32>
    %c0_4 = arith.constant 0 : index
    %c0_5 = arith.constant 0 : index
    %14 = vector.load %arg3[%c0_4, %c0_5] : memref<1x128xf32, #tpu.memory_space<vmem>>, vector<1x128xf32>
    %15 = vector.shape_cast %14 : vector<1x128xf32> to vector<1x1x128xf32>
    %16 = vector.broadcast %15 : vector<1x1x128xf32> to vector<8x28x128xf32>
    %17 = arith.addf %13, %16 : vector<8x28x128xf32>
    %cst_6 = arith.constant 0.000000e+00 : f32
    %18 = vector.broadcast %cst_6 : f32 to vector<8x28x128xf32>
    %19 = arith.maximumf %17, %18 : vector<8x28x128xf32>
    %20 = vector.extract_strided_slice %19 {offsets = [0, 0, 0], sizes = [8, 24, 128], strides = [1, 1, 1]} : vector<8x28x128xf32> to vector<8x24x128xf32>
    %21 = vector.extract_strided_slice %19 {offsets = [0, 1, 0], sizes = [8, 24, 128], strides = [1, 1, 1]} : vector<8x28x128xf32> to vector<8x24x128xf32>
    %22 = arith.maximumf %20, %21 : vector<8x24x128xf32>
    %23 = vector.extract_strided_slice %19 {offsets = [0, 2, 0], sizes = [8, 24, 128], strides = [1, 1, 1]} : vector<8x28x128xf32> to vector<8x24x128xf32>
    %24 = arith.maximumf %22, %23 : vector<8x24x128xf32>
    %25 = vector.extract_strided_slice %19 {offsets = [0, 3, 0], sizes = [8, 24, 128], strides = [1, 1, 1]} : vector<8x28x128xf32> to vector<8x24x128xf32>
    %26 = arith.maximumf %24, %25 : vector<8x24x128xf32>
    %27 = vector.extract_strided_slice %19 {offsets = [0, 4, 0], sizes = [8, 24, 128], strides = [1, 1, 1]} : vector<8x28x128xf32> to vector<8x24x128xf32>
    %28 = arith.maximumf %26, %27 : vector<8x24x128xf32>
    %29 = vector.shape_cast %28 : vector<8x24x128xf32> to vector<192x128xf32>
    %c0_7 = arith.constant 0 : index
    %c0_8 = arith.constant 0 : index
    %30 = vector.load %arg4[%c0_7, %c0_8] : memref<128x640xf32, #tpu.memory_space<vmem>>, vector<128x640xf32>
    %cst_9 = arith.constant dense<0.000000e+00> : vector<192x640xf32>
    %31 = tpu.matmul %29, %30, %cst_9 {dimension_numbers = #tpu.dot_dimension_numbers<[1], [0], [0], [1], [0, 0, 1, 1], [], []>} : vector<192x128xf32>, vector<128x640xf32>, vector<192x640xf32> -> vector<192x640xf32>
    %32 = vector.shape_cast %31 : vector<192x640xf32> to vector<8x24x640xf32>
    %33 = vector.extract_strided_slice %32 {offsets = [0, 0, 0], sizes = [8, 20, 128], strides = [1, 1, 1]} : vector<8x24x640xf32> to vector<8x20x128xf32>
    %34 = vector.extract_strided_slice %32 {offsets = [0, 1, 128], sizes = [8, 20, 128], strides = [1, 1, 1]} : vector<8x24x640xf32> to vector<8x20x128xf32>
    %35 = arith.addf %33, %34 : vector<8x20x128xf32>
    %36 = vector.extract_strided_slice %32 {offsets = [0, 2, 256], sizes = [8, 20, 128], strides = [1, 1, 1]} : vector<8x24x640xf32> to vector<8x20x128xf32>
    %37 = arith.addf %35, %36 : vector<8x20x128xf32>
    %38 = vector.extract_strided_slice %32 {offsets = [0, 3, 384], sizes = [8, 20, 128], strides = [1, 1, 1]} : vector<8x24x640xf32> to vector<8x20x128xf32>
    %39 = arith.addf %37, %38 : vector<8x20x128xf32>
    %40 = vector.extract_strided_slice %32 {offsets = [0, 4, 512], sizes = [8, 20, 128], strides = [1, 1, 1]} : vector<8x24x640xf32> to vector<8x20x128xf32>
    %41 = arith.addf %39, %40 : vector<8x20x128xf32>
    %c0_10 = arith.constant 0 : index
    %c0_11 = arith.constant 0 : index
    %42 = vector.load %arg5[%c0_10, %c0_11] : memref<1x128xf32, #tpu.memory_space<vmem>>, vector<1x128xf32>
    %43 = vector.shape_cast %42 : vector<1x128xf32> to vector<1x1x128xf32>
    %44 = vector.broadcast %43 : vector<1x1x128xf32> to vector<8x20x128xf32>
    %45 = arith.addf %41, %44 : vector<8x20x128xf32>
    %cst_12 = arith.constant 0.000000e+00 : f32
    %46 = vector.broadcast %cst_12 : f32 to vector<8x20x128xf32>
    %47 = arith.maximumf %45, %46 : vector<8x20x128xf32>
    %48 = vector.extract_strided_slice %47 {offsets = [0, 0, 0], sizes = [8, 16, 128], strides = [1, 1, 1]} : vector<8x20x128xf32> to vector<8x16x128xf32>
    %49 = vector.extract_strided_slice %47 {offsets = [0, 1, 0], sizes = [8, 16, 128], strides = [1, 1, 1]} : vector<8x20x128xf32> to vector<8x16x128xf32>
    %50 = arith.maximumf %48, %49 : vector<8x16x128xf32>
    %51 = vector.extract_strided_slice %47 {offsets = [0, 2, 0], sizes = [8, 16, 128], strides = [1, 1, 1]} : vector<8x20x128xf32> to vector<8x16x128xf32>
    %52 = arith.maximumf %50, %51 : vector<8x16x128xf32>
    %53 = vector.extract_strided_slice %47 {offsets = [0, 3, 0], sizes = [8, 16, 128], strides = [1, 1, 1]} : vector<8x20x128xf32> to vector<8x16x128xf32>
    %54 = arith.maximumf %52, %53 : vector<8x16x128xf32>
    %55 = vector.extract_strided_slice %47 {offsets = [0, 4, 0], sizes = [8, 16, 128], strides = [1, 1, 1]} : vector<8x20x128xf32> to vector<8x16x128xf32>
    %56 = arith.maximumf %54, %55 : vector<8x16x128xf32>
    %57 = vector.shape_cast %56 : vector<8x16x128xf32> to vector<128x128xf32>
    %c0_13 = arith.constant 0 : index
    %c0_14 = arith.constant 0 : index
    %58 = vector.load %arg6[%c0_13, %c0_14] : memref<128x640xf32, #tpu.memory_space<vmem>>, vector<128x640xf32>
    %cst_15 = arith.constant dense<0.000000e+00> : vector<128x640xf32>
    %59 = tpu.matmul %57, %58, %cst_15 {dimension_numbers = #tpu.dot_dimension_numbers<[1], [0], [0], [1], [0, 0, 1, 1], [], []>} : vector<128x128xf32>, vector<128x640xf32>, vector<128x640xf32> -> vector<128x640xf32>
    %60 = vector.shape_cast %59 : vector<128x640xf32> to vector<8x16x640xf32>
    %61 = vector.extract_strided_slice %60 {offsets = [0, 0, 0], sizes = [8, 12, 128], strides = [1, 1, 1]} : vector<8x16x640xf32> to vector<8x12x128xf32>
    %62 = vector.extract_strided_slice %60 {offsets = [0, 1, 128], sizes = [8, 12, 128], strides = [1, 1, 1]} : vector<8x16x640xf32> to vector<8x12x128xf32>
    %63 = arith.addf %61, %62 : vector<8x12x128xf32>
    %64 = vector.extract_strided_slice %60 {offsets = [0, 2, 256], sizes = [8, 12, 128], strides = [1, 1, 1]} : vector<8x16x640xf32> to vector<8x12x128xf32>
    %65 = arith.addf %63, %64 : vector<8x12x128xf32>
    %66 = vector.extract_strided_slice %60 {offsets = [0, 3, 384], sizes = [8, 12, 128], strides = [1, 1, 1]} : vector<8x16x640xf32> to vector<8x12x128xf32>
    %67 = arith.addf %65, %66 : vector<8x12x128xf32>
    %68 = vector.extract_strided_slice %60 {offsets = [0, 4, 512], sizes = [8, 12, 128], strides = [1, 1, 1]} : vector<8x16x640xf32> to vector<8x12x128xf32>
    %69 = arith.addf %67, %68 : vector<8x12x128xf32>
    %c0_16 = arith.constant 0 : index
    %c0_17 = arith.constant 0 : index
    %70 = vector.load %arg7[%c0_16, %c0_17] : memref<1x128xf32, #tpu.memory_space<vmem>>, vector<1x128xf32>
    %71 = vector.shape_cast %70 : vector<1x128xf32> to vector<1x1x128xf32>
    %72 = vector.broadcast %71 : vector<1x1x128xf32> to vector<8x12x128xf32>
    %73 = arith.addf %69, %72 : vector<8x12x128xf32>
    %cst_18 = arith.constant 0.000000e+00 : f32
    %74 = vector.broadcast %cst_18 : f32 to vector<8x12x128xf32>
    %75 = arith.maximumf %73, %74 : vector<8x12x128xf32>
    %cst_19 = arith.constant dense<0xFF800000> : vector<8x128xf32>
    %76 = vector.multi_reduction <maximumf>, %75, %cst_19 [1] : vector<8x12x128xf32> to vector<8x128xf32>
    %c0_20 = arith.constant 0 : index
    %c0_21 = arith.constant 0 : index
    %77 = vector.load %arg8[%c0_20, %c0_21] : memref<128x128xf32, #tpu.memory_space<vmem>>, vector<128x128xf32>
    %cst_22 = arith.constant dense<0.000000e+00> : vector<8x128xf32>
    %78 = tpu.matmul %76, %77, %cst_22 {dimension_numbers = #tpu.dot_dimension_numbers<[1], [0], [0], [1], [0, 0, 1, 1], [], []>} : vector<8x128xf32>, vector<128x128xf32>, vector<8x128xf32> -> vector<8x128xf32>
    %c0_23 = arith.constant 0 : index
    %c0_24 = arith.constant 0 : index
    %79 = vector.load %arg9[%c0_23, %c0_24] : memref<1x128xf32, #tpu.memory_space<vmem>>, vector<1x128xf32>
    %80 = vector.broadcast %79 : vector<1x128xf32> to vector<8x128xf32>
    %81 = arith.addf %78, %80 : vector<8x128xf32>
    %cst_25 = arith.constant 0.000000e+00 : f32
    %82 = vector.broadcast %cst_25 : f32 to vector<8x128xf32>
    %83 = arith.maximumf %81, %82 : vector<8x128xf32>
    %c0_26 = arith.constant 0 : index
    %c0_27 = arith.constant 0 : index
    %84 = vector.load %arg10[%c0_26, %c0_27] : memref<128x128xf32, #tpu.memory_space<vmem>>, vector<128x128xf32>
    %cst_28 = arith.constant dense<0.000000e+00> : vector<8x128xf32>
    %85 = tpu.matmul %83, %84, %cst_28 {dimension_numbers = #tpu.dot_dimension_numbers<[1], [0], [0], [1], [0, 0, 1, 1], [], []>} : vector<8x128xf32>, vector<128x128xf32>, vector<8x128xf32> -> vector<8x128xf32>
    %c0_29 = arith.constant 0 : index
    %c0_30 = arith.constant 0 : index
    %86 = vector.load %arg11[%c0_29, %c0_30] : memref<1x128xf32, #tpu.memory_space<vmem>>, vector<1x128xf32>
    %87 = vector.broadcast %86 : vector<1x128xf32> to vector<8x128xf32>
    %88 = arith.addf %85, %87 : vector<8x128xf32>
    %c0_31 = arith.constant 0 : index
    %c0_32 = arith.constant 0 : index
    %89 = vector.load %arg12[%c0_31, %c0_32] : memref<8x128xf32, #tpu.memory_space<vmem>>, vector<8x128xf32>
    tpu.vector_store %arg12[%c0_31, %c0_32], %88 {strides = array<i32>} : memref<8x128xf32, #tpu.memory_space<vmem>>, vector<8x128xf32>,
    return
  }
  func.func @transform_0(%arg0: i32) -> (i32, i32, i32) {
    %c0_i32 = arith.constant 0 : i32
    %c0_i32_0 = arith.constant 0 : i32
    %c0_i32_1 = arith.constant 0 : i32
    return %arg0, %c0_i32, %c0_i32_0 : i32, i32, i32
  }
  func.func @transform_1(%arg0: i32) -> (i32, i32) {
    %c0_i32 = arith.constant 0 : i32
    %c0_i32_0 = arith.constant 0 : i32
    %c0_i32_1 = arith.constant 0 : i32
    return %c0_i32, %c0_i32_0 : i32, i32
  }
  func.func @transform_2(%arg0: i32) -> (i32, i32) {
    %c0_i32 = arith.constant 0 : i32
    %c0_i32_0 = arith.constant 0 : i32
    %c0_i32_1 = arith.constant 0 : i32
    return %c0_i32, %c0_i32_0 : i32, i32
  }
  func.func @transform_3(%arg0: i32) -> (i32, i32) {
    %c0_i32 = arith.constant 0 : i32
    %c0_i32_0 = arith.constant 0 : i32
    %c0_i32_1 = arith.constant 0 : i32
    return %c0_i32, %c0_i32_0 : i32, i32
  }
  func.func @transform_4(%arg0: i32) -> (i32, i32) {
    %c0_i32 = arith.constant 0 : i32
    %c0_i32_0 = arith.constant 0 : i32
    %c0_i32_1 = arith.constant 0 : i32
    return %c0_i32, %c0_i32_0 : i32, i32
  }
  func.func @transform_5(%arg0: i32) -> (i32, i32) {
    %c0_i32 = arith.constant 0 : i32
    %c0_i32_0 = arith.constant 0 : i32
    %c0_i32_1 = arith.constant 0 : i32
    return %c0_i32, %c0_i32_0 : i32, i32
  }
  func.func @transform_6(%arg0: i32) -> (i32, i32) {
    %c0_i32 = arith.constant 0 : i32
    %c0_i32_0 = arith.constant 0 : i32
    %c0_i32_1 = arith.constant 0 : i32
    return %c0_i32, %c0_i32_0 : i32, i32
  }
  func.func @transform_7(%arg0: i32) -> (i32, i32) {
    %c0_i32 = arith.constant 0 : i32
    %c0_i32_0 = arith.constant 0 : i32
    %c0_i32_1 = arith.constant 0 : i32
    return %c0_i32, %c0_i32_0 : i32, i32
  }
  func.func @transform_8(%arg0: i32) -> (i32, i32) {
    %c0_i32 = arith.constant 0 : i32
    %c0_i32_0 = arith.constant 0 : i32
    %c0_i32_1 = arith.constant 0 : i32
    return %c0_i32, %c0_i32_0 : i32, i32
  }
  func.func @transform_9(%arg0: i32) -> (i32, i32) {
    %c0_i32 = arith.constant 0 : i32
    %c0_i32_0 = arith.constant 0 : i32
    %c0_i32_1 = arith.constant 0 : i32
    return %c0_i32, %c0_i32_0 : i32, i32
  }
  func.func @transform_10(%arg0: i32) -> (i32, i32) {
    %c0_i32 = arith.constant 0 : i32
    %c0_i32_0 = arith.constant 0 : i32
    %c0_i32_1 = arith.constant 0 : i32
    return %c0_i32, %c0_i32_0 : i32, i32
  }
  func.func @transform_11(%arg0: i32) -> (i32, i32) {
    %c0_i32 = arith.constant 0 : i32
    %c0_i32_0 = arith.constant 0 : i32
    return %arg0, %c0_i32 : i32, i32
  }
}

</mosaic_0001>

<llo_original>
// kernel: tpu_custom_call.1
$region0: #{tpu_custom_call.1}
  #allocation0 [shape = 'u32[]', space=smem, size = 0x4, offset = 0x4, fixed_abs, tag = 'smem constant byte address 0x4 - core index']
  #allocation1 [shape = 'u32[144,128]{1,0:T(1,128)}', space=vmem, size = 0x12000, scoped, tag = 'internal scratch']
  %s0 = inlined_call_operand.hbm [shape: f32[16,32,128], index: 0, kind: input, shape index: {}]
  %s1 = inlined_call_operand.hbm [shape: f32[128,640], index: 1, kind: input, shape index: {}]
  %s2 = inlined_call_operand.vmem [shape: f32[1,128], index: 2, kind: input, shape index: {}]
  %s3 = inlined_call_operand.hbm [shape: f32[128,640], index: 3, kind: input, shape index: {}]
  %s4 = inlined_call_operand.vmem [shape: f32[1,128], index: 4, kind: input, shape index: {}]
  %s5 = inlined_call_operand.hbm [shape: f32[128,640], index: 5, kind: input, shape index: {}]
  %s6 = inlined_call_operand.vmem [shape: f32[1,128], index: 6, kind: input, shape index: {}]
  %s7 = inlined_call_operand.hbm [shape: f32[128,128], index: 7, kind: input, shape index: {}]
  %s8 = inlined_call_operand.vmem [shape: f32[1,128], index: 8, kind: input, shape index: {}]
  %s9 = inlined_call_operand.hbm [shape: f32[128,128], index: 9, kind: input, shape index: {}]
  %s10 = inlined_call_operand.vmem [shape: f32[1,128], index: 10, kind: input, shape index: {}]
  %s11 = inlined_call_operand.hbm [shape: f32[16,128], index: 11, kind: output, shape index: {}]
  %s12 = sld [smem:[#allocation0]]
  $region101: #{tpu_custom_call.1} parent=0
    _
  %s14 = ssub.s32 1, %s12
  %s15 = scalar_select 0, %s14, %s12
  $region1: #{tpu_custom_call.1} parent=0
    #allocation2 [shape = 'u8[262144]{0}', space=vmem, size = 0x40000, scoped, tag = 'input window, operand 0']
    #allocation3 [shape = 's32[2]{0}', space=sflag, size = 0x8, scoped, tag = 'scoped memory for tpu_custom_call.1']
    #allocation4 [shape = 's32[2]{0}', space=sflag, size = 0x8, scoped, tag = 'scoped memory for tpu_custom_call.1']
    #allocation5 [shape = 'u8[327680]{0}', space=vmem, size = 0x50000, scoped, tag = 'input window, operand 1, single buffered']
    #allocation6 [shape = 's32[1]{0}', space=sflag, size = 0x4, scoped, tag = 'scoped memory for tpu_custom_call.1']
    #allocation7 [shape = 'u8[327680]{0}', space=vmem, size = 0x50000, scoped, tag = 'input window, operand 3, single buffered']
    #allocation8 [shape = 'u8[327680]{0}', space=vmem, size = 0x50000, scoped, tag = 'input window, operand 5, single buffered']
    #allocation9 [shape = 's32[1]{0}', space=sflag, size = 0x4, scoped, tag = 'scoped memory for tpu_custom_call.1']
    #allocation10 [shape = 'u8[65536]{0}', space=vmem, size = 0x10000, scoped, tag = 'input window, operand 7, single buffered']
    #allocation11 [shape = 'u8[65536]{0}', space=vmem, size = 0x10000, scoped, tag = 'input window, operand 9, single buffered']
    #allocation12 [shape = 's32[1]{0}', space=sflag, size = 0x4, scoped, tag = 'scoped memory for tpu_custom_call.1']
    #allocation13 [shape = 'u8[8192]{0}', space=vmem, size = 0x2000, scoped, tag = 'output window, operand 0']
    %16 = vsyncpa [#allocation3], 0
    %s17 = scalar_lea.sflag [#allocation3], 1
    %18 = vsyncpa %s17, 0
    %19 = vsyncpa [#allocation6], 0
    %20 = vsyncpa [#allocation9], 0
    %21 = vsyncpa [#allocation12], 0
    %22 = vsyncpa [#allocation4], 0
    %s23 = scalar_lea.sflag [#allocation4], 1
    %24 = vsyncpa %s23, 0
    loop: start=0, step=1, limit=4
    $region2: #{tpu_custom_call.1} parent=1 // loop_pre_header
      _
    $region3: #{tpu_custom_call.1} parent=1 // loop_header
      %s26 = sphi 0, %s30
      %p27 = scmp.ge.s32.totalorder %s26, 4
      %s36 = sphi 0, %s38
      %s39 = sphi 0, %s36
      %s40 = sphi 0, %s39
      %s56 = sphi 0, %s40
      %s60 = sphi 0, %s60
      %s62 = sphi 0, %s60
      %s63 = sphi 0, %s62
      %s77 = sphi 0, %s63
      %s81 = sphi 0, %s81
      %s83 = sphi 0, %s81
      %s84 = sphi 0, %s83
      %s98 = sphi 0, %s84
      %s102 = sphi 0, %s102
      %s104 = sphi 0, %s102
      %s105 = sphi 0, %s104
      %s119 = sphi 0, %s105
      %s123 = sphi 0, %s123
      %s125 = sphi 0, %s123
      %s126 = sphi 0, %s125
      %s140 = sphi 0, %s126
      %s144 = sphi 0, %s144
      %s146 = sphi 0, %s144
      %s147 = sphi 0, %s146
      %s161 = sphi 0, %s147
      %s165 = sphi 0, %s165
      %s167 = sphi 0, %s165
      %s168 = sphi 0, %s167
      %s182 = sphi 0, %s168
      %s186 = sphi 0, %s186
      %s188 = sphi 0, %s186
      %s189 = sphi 0, %s188
      %s203 = sphi 0, %s189
      %s207 = sphi 0, %s207
      %s209 = sphi 0, %s207
      %s210 = sphi 0, %s209
      %s224 = sphi 0, %s210
      %s228 = sphi 0, %s228
      %s230 = sphi 0, %s228
      %s231 = sphi 0, %s230
      %s245 = sphi 0, %s231
      %s249 = sphi 0, %s249
      %s251 = sphi 0, %s249
      %s252 = sphi 0, %s251
      %s266 = sphi 0, %s252
      %s272 = sphi 0, %s274
      %s275 = sphi 0, %s272
      %s276 = sphi 0, %s275
      %s292 = sphi 0, %s276
    $region4: #{tpu_custom_call.1} parent=1 // loop_header_branch
      %29 = sbr.rel (%p27) target = $region8
    $region5: #{tpu_custom_call.1} parent=1 // loop_body
      %s31 = ssub.s32 %s26, 1
      %s32 = ssub.s32 %s26, 2
      %s33 = sadd.s32 %s26, 1
      %s34 = ssub.s32 %s26, %s33
      %p35 = scmp.eq.s32.totalorder %s34, 0
      %s37 = sadd.s32 %s36, 1
      %s38 = scalar_select %p35, %s36, %s37
      %p41 = pneg %p35
      %p42 = scmp.eq.s32.totalorder %s26, 1
      %p43 = por %p41, %p42
      %p44 = scmp.ne.s32.totalorder %s36, %s39
      %p45 = scmp.eq.s32.totalorder %s26, 0
      %p46 = por %p44, %p45
      %p47 = scmp.ne.s32.totalorder %s36, %s39
      %p48 = scmp.eq.s32.totalorder %s31, 1
      %p49 = por %p47, %p48
      %p50 = scmp.ne.s32.totalorder %s39, %s40
      %p51 = scmp.eq.s32.totalorder %s31, 0
      %p52 = por %p50, %p51
      %p53 = scmp.ne.s32.totalorder %s39, %s40
      %p54 = scmp.eq.s32.totalorder %s32, 1
      %p55 = por %p53, %p54
      %p57 = scmp.ne.s32.totalorder %s40, %s56
      %p58 = scmp.eq.s32.totalorder %s32, 0
      %p59 = por %p57, %p58
      %s61 = sadd.s32 %s60, 1
      %p64 = scmp.eq.s32.totalorder %s26, 1
      %p65 = scmp.ne.s32.totalorder %s60, %s62
      %p66 = scmp.eq.s32.totalorder %s26, 0
      %p67 = por %p65, %p66
      %p68 = scmp.ne.s32.totalorder %s60, %s62
      %p69 = scmp.eq.s32.totalorder %s31, 1
      %p70 = por %p68, %p69
      %p71 = scmp.ne.s32.totalorder %s62, %s63
      %p72 = scmp.eq.s32.totalorder %s31, 0
      %p73 = por %p71, %p72
      %p74 = scmp.ne.s32.totalorder %s62, %s63
      %p75 = scmp.eq.s32.totalorder %s32, 1
      %p76 = por %p74, %p75
      %p78 = scmp.ne.s32.totalorder %s63, %s77
      %p79 = scmp.eq.s32.totalorder %s32, 0
      %p80 = por %p78, %p79
      %s82 = sadd.s32 %s81, 1
      %p85 = scmp.eq.s32.totalorder %s26, 1
      %p86 = scmp.ne.s32.totalorder %s81, %s83
      %p87 = scmp.eq.s32.totalorder %s26, 0
      %p88 = por %p86, %p87
      %p89 = scmp.ne.s32.totalorder %s81, %s83
      %p90 = scmp.eq.s32.totalorder %s31, 1
      %p91 = por %p89, %p90
      %p92 = scmp.ne.s32.totalorder %s83, %s84
      %p93 = scmp.eq.s32.totalorder %s31, 0
      %p94 = por %p92, %p93
      %p95 = scmp.ne.s32.totalorder %s83, %s84
      %p96 = scmp.eq.s32.totalorder %s32, 1
      %p97 = por %p95, %p96
      %p99 = scmp.ne.s32.totalorder %s84, %s98
      %p100 = scmp.eq.s32.totalorder %s32, 0
      %p101 = por %p99, %p100
      %s103 = sadd.s32 %s102, 1
      %p106 = scmp.eq.s32.totalorder %s26, 1
      %p107 = scmp.ne.s32.totalorder %s102, %s104
      %p108 = scmp.eq.s32.totalorder %s26, 0
      %p109 = por %p107, %p108
      %p110 = scmp.ne.s32.totalorder %s102, %s104
      %p111 = scmp.eq.s32.totalorder %s31, 1
      %p112 = por %p110, %p111
      %p113 = scmp.ne.s32.totalorder %s104, %s105
      %p114 = scmp.eq.s32.totalorder %s31, 0
      %p115 = por %p113, %p114
      %p116 = scmp.ne.s32.totalorder %s104, %s105
      %p117 = scmp.eq.s32.totalorder %s32, 1
      %p118 = por %p116, %p117
      %p120 = scmp.ne.s32.totalorder %s105, %s119
      %p121 = scmp.eq.s32.totalorder %s32, 0
      %p122 = por %p120, %p121
      %s124 = sadd.s32 %s123, 1
      %p127 = scmp.eq.s32.totalorder %s26, 1
      %p128 = scmp.ne.s32.totalorder %s123, %s125
      %p129 = scmp.eq.s32.totalorder %s26, 0
      %p130 = por %p128, %p129
      %p131 = scmp.ne.s32.totalorder %s123, %s125
      %p132 = scmp.eq.s32.totalorder %s31, 1
      %p133 = por %p131, %p132
      %p134 = scmp.ne.s32.totalorder %s125, %s126
      %p135 = scmp.eq.s32.totalorder %s31, 0
      %p136 = por %p134, %p135
      %p137 = scmp.ne.s32.totalorder %s125, %s126
      %p138 = scmp.eq.s32.totalorder %s32, 1
      %p139 = por %p137, %p138
      %p141 = scmp.ne.s32.totalorder %s126, %s140
      %p142 = scmp.eq.s32.totalorder %s32, 0
      %p143 = por %p141, %p142
      %s145 = sadd.s32 %s144, 1
      %p148 = scmp.eq.s32.totalorder %s26, 1
      %p149 = scmp.ne.s32.totalorder %s144, %s146
      %p150 = scmp.eq.s32.totalorder %s26, 0
      %p151 = por %p149, %p150
      %p152 = scmp.ne.s32.totalorder %s144, %s146
      %p153 = scmp.eq.s32.totalorder %s31, 1
      %p154 = por %p152, %p153
      %p155 = scmp.ne.s32.totalorder %s146, %s147
      %p156 = scmp.eq.s32.totalorder %s31, 0
      %p157 = por %p155, %p156
      %p158 = scmp.ne.s32.totalorder %s146, %s147
      %p159 = scmp.eq.s32.totalorder %s32, 1
      %p160 = por %p158, %p159
      %p162 = scmp.ne.s32.totalorder %s147, %s161
      %p163 = scmp.eq.s32.totalorder %s32, 0
      %p164 = por %p162, %p163
      %s166 = sadd.s32 %s165, 1
      %p169 = scmp.eq.s32.totalorder %s26, 1
      %p170 = scmp.ne.s32.totalorder %s165, %s167
      %p171 = scmp.eq.s32.totalorder %s26, 0
      %p172 = por %p170, %p171
      %p173 = scmp.ne.s32.totalorder %s165, %s167
      %p174 = scmp.eq.s32.totalorder %s31, 1
      %p175 = por %p173, %p174
      %p176 = scmp.ne.s32.totalorder %s167, %s168
      %p177 = scmp.eq.s32.totalorder %s31, 0
      %p178 = por %p176, %p177
      %p179 = scmp.ne.s32.totalorder %s167, %s168
      %p180 = scmp.eq.s32.totalorder %s32, 1
      %p181 = por %p179, %p180
      %p183 = scmp.ne.s32.totalorder %s168, %s182
      %p184 = scmp.eq.s32.totalorder %s32, 0
      %p185 = por %p183, %p184
      %s187 = sadd.s32 %s186, 1
      %p190 = scmp.eq.s32.totalorder %s26, 1
      %p191 = scmp.ne.s32.totalorder %s186, %s188
      %p192 = scmp.eq.s32.totalorder %s26, 0
      %p193 = por %p191, %p192
      %p194 = scmp.ne.s32.totalorder %s186, %s188
      %p195 = scmp.eq.s32.totalorder %s31, 1
      %p196 = por %p194, %p195
      %p197 = scmp.ne.s32.totalorder %s188, %s189
      %p198 = scmp.eq.s32.totalorder %s31, 0
      %p199 = por %p197, %p198
      %p200 = scmp.ne.s32.totalorder %s188, %s189
      %p201 = scmp.eq.s32.totalorder %s32, 1
      %p202 = por %p200, %p201
      %p204 = scmp.ne.s32.totalorder %s189, %s203
      %p205 = scmp.eq.s32.totalorder %s32, 0
      %p206 = por %p204, %p205
      %s208 = sadd.s32 %s207, 1
      %p211 = scmp.eq.s32.totalorder %s26, 1
      %p212 = scmp.ne.s32.totalorder %s207, %s209
      %p213 = scmp.eq.s32.totalorder %s26, 0
      %p214 = por %p212, %p213
      %p215 = scmp.ne.s32.totalorder %s207, %s209
      %p216 = scmp.eq.s32.totalorder %s31, 1
      %p217 = por %p215, %p216
      %p218 = scmp.ne.s32.totalorder %s209, %s210
      %p219 = scmp.eq.s32.totalorder %s31, 0
      %p220 = por %p218, %p219
      %p221 = scmp.ne.s32.totalorder %s209, %s210
      %p222 = scmp.eq.s32.totalorder %s32, 1
      %p223 = por %p221, %p222
      %p225 = scmp.ne.s32.totalorder %s210, %s224
      %p226 = scmp.eq.s32.totalorder %s32, 0
      %p227 = por %p225, %p226
      %s229 = sadd.s32 %s228, 1
      %p232 = scmp.eq.s32.totalorder %s26, 1
      %p233 = scmp.ne.s32.totalorder %s228, %s230
      %p234 = scmp.eq.s32.totalorder %s26, 0
      %p235 = por %p233, %p234
      %p236 = scmp.ne.s32.totalorder %s228, %s230
      %p237 = scmp.eq.s32.totalorder %s31, 1
      %p238 = por %p236, %p237
      %p239 = scmp.ne.s32.totalorder %s230, %s231
      %p240 = scmp.eq.s32.totalorder %s31, 0
      %p241 = por %p239, %p240
      %p242 = scmp.ne.s32.totalorder %s230, %s231
      %p243 = scmp.eq.s32.totalorder %s32, 1
      %p244 = por %p242, %p243
      %p246 = scmp.ne.s32.totalorder %s231, %s245
      %p247 = scmp.eq.s32.totalorder %s32, 0
      %p248 = por %p246, %p247
      %s250 = sadd.s32 %s249, 1
      %p253 = scmp.eq.s32.totalorder %s26, 1
      %p254 = scmp.ne.s32.totalorder %s249, %s251
      %p255 = scmp.eq.s32.totalorder %s26, 0
      %p256 = por %p254, %p255
      %p257 = scmp.ne.s32.totalorder %s249, %s251
      %p258 = scmp.eq.s32.totalorder %s31, 1
      %p259 = por %p257, %p258
      %p260 = scmp.ne.s32.totalorder %s251, %s252
      %p261 = scmp.eq.s32.totalorder %s31, 0
      %p262 = por %p260, %p261
      %p263 = scmp.ne.s32.totalorder %s251, %s252
      %p264 = scmp.eq.s32.totalorder %s32, 1
      %p265 = por %p263, %p264
      %p267 = scmp.ne.s32.totalorder %s252, %s266
      %p268 = scmp.eq.s32.totalorder %s32, 0
      %p269 = por %p267, %p268
      %s270 = ssub.s32 %s26, %s33
      %p271 = scmp.eq.s32.totalorder %s270, 0
      %s273 = sadd.s32 %s272, 1
      %s274 = scalar_select %p271, %s272, %s273
      %p277 = pneg %p271
      %p278 = scmp.eq.s32.totalorder %s26, 1
      %p279 = por %p277, %p278
      %p280 = scmp.ne.s32.totalorder %s272, %s275
      %p281 = scmp.eq.s32.totalorder %s26, 0
      %p282 = por %p280, %p281
      %p283 = scmp.ne.s32.totalorder %s272, %s275
      %p284 = scmp.eq.s32.totalorder %s31, 1
      %p285 = por %p283, %p284
      %p286 = scmp.ne.s32.totalorder %s275, %s276
      %p287 = scmp.eq.s32.totalorder %s31, 0
      %p288 = por %p286, %p287
      %p289 = scmp.ne.s32.totalorder %s275, %s276
      %p290 = scmp.eq.s32.totalorder %s32, 1
      %p291 = por %p289, %p290
      %p293 = scmp.ne.s32.totalorder %s276, %s292
      %p294 = scmp.eq.s32.totalorder %s32, 0
      %p295 = por %p293, %p294
      %p296 = scmp.le.s32.totalorder 1, %s26
      %p297 = scmp.lt.s32.totalorder %s26, 3
      %p298 = pnand %p296, %p297
      %p299 = pneg %p298
      // Predicated region
      $region9: #{tpu_custom_call.1} parent=5 // pred_check
        _
      $region10: #{tpu_custom_call.1} parent=5 // pred_check_branch
        %301 = sbr.rel (%p298) target = $region12
      $region11: #{tpu_custom_call.1} parent=5 // pred_region
        %s302 = ssub.s32 %s26, 1
        // Predicated region
        $region13: #{tpu_custom_call.1} parent=11 // pred_check
          %p303 = pneg %p73
        $region14: #{tpu_custom_call.1} parent=11 // pred_check_branch
          %305 = sbr.rel (%p303) target = $region16
        $region15: #{tpu_custom_call.1} parent=11 // pred_region
          %s307 = ssub.s32 10240, 10240
          %308 = vsyncadd [#allocation6], %s307
          %s309 = sshll.u32 [#allocation5], 4
          %s310 = int_to_ptr.vmem [resolvable:$true] %s309
          %315 = dma.hbm_to_vmem [thread:$0]  %s1, 10240, %s310, [#allocation6], 640, 640, 40
        $region16: #{tpu_custom_call.1} parent=11 // pred_fallthru
          _
        // Predicated region
        $region17: #{tpu_custom_call.1} parent=11 // pred_check
          %p316 = pneg %p94
        $region18: #{tpu_custom_call.1} parent=11 // pred_check_branch
          %318 = sbr.rel (%p316) target = $region20
        $region19: #{tpu_custom_call.1} parent=11 // pred_region
          _
        $region20: #{tpu_custom_call.1} parent=11 // pred_fallthru
          _
        // Predicated region
        $region21: #{tpu_custom_call.1} parent=11 // pred_check
          %p319 = pneg %p115
        $region22: #{tpu_custom_call.1} parent=11 // pred_check_branch
          %321 = sbr.rel (%p319) target = $region24
        $region23: #{tpu_custom_call.1} parent=11 // pred_region
          %s323 = ssub.s32 10240, 10240
          %324 = vsyncadd [#allocation6], %s323
          %s325 = sshll.u32 [#allocation7], 4
          %s326 = int_to_ptr.vmem [resolvable:$true] %s325
          %331 = dma.hbm_to_vmem [thread:$0]  %s3, 10240, %s326, [#allocation6], 640, 640, 40
        $region24: #{tpu_custom_call.1} parent=11 // pred_fallthru
          _
        // Predicated region
        $region25: #{tpu_custom_call.1} parent=11 // pred_check
          %p332 = pneg %p136
        $region26: #{tpu_custom_call.1} parent=11 // pred_check_branch
          %334 = sbr.rel (%p332) target = $region28
        $region27: #{tpu_custom_call.1} parent=11 // pred_region
          _
        $region28: #{tpu_custom_call.1} parent=11 // pred_fallthru
          _
        // Predicated region
        $region29: #{tpu_custom_call.1} parent=11 // pred_check
          %p335 = pneg %p157
        $region30: #{tpu_custom_call.1} parent=11 // pred_check_branch
          %337 = sbr.rel (%p335) target = $region32
        $region31: #{tpu_custom_call.1} parent=11 // pred_region
          %s339 = ssub.s32 10240, 10240
          %340 = vsyncadd [#allocation9], %s339
          %s341 = sshll.u32 [#allocation8], 4
          %s342 = int_to_ptr.vmem [resolvable:$true] %s341
          %347 = dma.hbm_to_vmem [thread:$0]  %s5, 10240, %s342, [#allocation9], 640, 640, 40
        $region32: #{tpu_custom_call.1} parent=11 // pred_fallthru
          _
        // Predicated region
        $region33: #{tpu_custom_call.1} parent=11 // pred_check
          %p348 = pneg %p178
        $region34: #{tpu_custom_call.1} parent=11 // pred_check_branch
          %350 = sbr.rel (%p348) target = $region36
        $region35: #{tpu_custom_call.1} parent=11 // pred_region
          _
        $region36: #{tpu_custom_call.1} parent=11 // pred_fallthru
          _
        // Predicated region
        $region37: #{tpu_custom_call.1} parent=11 // pred_check
          %p351 = pneg %p199
        $region38: #{tpu_custom_call.1} parent=11 // pred_check_branch
          %353 = sbr.rel (%p351) target = $region40
        $region39: #{tpu_custom_call.1} parent=11 // pred_region
          %s355 = ssub.s32 2048, 2048
          %356 = vsyncadd [#allocation9], %s355
          %s357 = sshll.u32 [#allocation10], 4
          %s358 = int_to_ptr.vmem [resolvable:$true] %s357
          %363 = dma.hbm_to_vmem [thread:$0]  %s7, 2048, %s358, [#allocation9], 128, 128, 8
        $region40: #{tpu_custom_call.1} parent=11 // pred_fallthru
          _
        // Predicated region
        $region41: #{tpu_custom_call.1} parent=11 // pred_check
          %p364 = pneg %p220
        $region42: #{tpu_custom_call.1} parent=11 // pred_check_branch
          %366 = sbr.rel (%p364) target = $region44
        $region43: #{tpu_custom_call.1} parent=11 // pred_region
          _
        $region44: #{tpu_custom_call.1} parent=11 // pred_fallthru
          _
        // Predicated region
        $region45: #{tpu_custom_call.1} parent=11 // pred_check
          %p367 = pneg %p241
        $region46: #{tpu_custom_call.1} parent=11 // pred_check_branch
          %369 = sbr.rel (%p367) target = $region48
        $region47: #{tpu_custom_call.1} parent=11 // pred_region
          %s371 = ssub.s32 2048, 2048
          %372 = vsyncadd [#allocation12], %s371
          %s373 = sshll.u32 [#allocation11], 4
          %s374 = int_to_ptr.vmem [resolvable:$true] %s373
          %379 = dma.hbm_to_vmem [thread:$0]  %s9, 2048, %s374, [#allocation12], 128, 128, 8
        $region48: #{tpu_custom_call.1} parent=11 // pred_fallthru
          _
        // Predicated region
        $region49: #{tpu_custom_call.1} parent=11 // pred_check
          %p380 = pneg %p262
        $region50: #{tpu_custom_call.1} parent=11 // pred_check_branch
          %382 = sbr.rel (%p380) target = $region52
        $region51: #{tpu_custom_call.1} parent=11 // pred_region
          _
        $region52: #{tpu_custom_call.1} parent=11 // pred_fallthru
          _
      $region12: #{tpu_custom_call.1} parent=5 // pred_fallthru
        _
      %p383 = scmp.lt.s32.totalorder %s26, 2
      // Predicated region
      $region53: #{tpu_custom_call.1} parent=5 // pred_check
        %p384 = pneg %p383
      $region54: #{tpu_custom_call.1} parent=5 // pred_check_branch
        %386 = sbr.rel (%p384) target = $region56
      $region55: #{tpu_custom_call.1} parent=5 // pred_region
        // Predicated region
        $region57: #{tpu_custom_call.1} parent=55 // pred_check
          %p387 = pneg %p46
        $region58: #{tpu_custom_call.1} parent=55 // pred_check_branch
          %389 = sbr.rel (%p387) target = $region60
        $region59: #{tpu_custom_call.1} parent=55 // pred_region
          %s390 = sand.u32 %s36, 1
          %s391 = scalar_lea.sflag [#allocation3], %s390
          %s392 = sand.u32 %s36, 1
          %s393 = smul.addr %s392, 256
          %s394 = scalar_lea.vmem [#allocation2], %s393
          %s395 = smul.u32 8, %s26
          %s397 = ssub.s32 4096, 4096
          %398 = vsyncadd %s391, %s397
          %s399 = smul.addr %s395, 4
          %s400 = smul.addr %s399, 128
          %s401 = scalar_lea.hbm %s0, %s400
          %s402 = sshll.u32 %s394, 4
          %s403 = int_to_ptr.vmem [resolvable:$true] %s402
          %408 = dma.hbm_to_vmem [thread:$0]  %s401, 4096, %s403, %s391, 128, 128, 8
        $region60: #{tpu_custom_call.1} parent=55 // pred_fallthru
          _
      $region56: #{tpu_custom_call.1} parent=5 // pred_fallthru
        _
      %p409 = scmp.le.s32.totalorder 1, %s26
      %p410 = scmp.lt.s32.totalorder %s26, 3
      %p411 = pnand %p409, %p410
      %p412 = pneg %p411
      // Predicated region
      $region61: #{tpu_custom_call.1} parent=5 // pred_check
        _
      $region62: #{tpu_custom_call.1} parent=5 // pred_check_branch
        %414 = sbr.rel (%p411) target = $region64
      $region63: #{tpu_custom_call.1} parent=5 // pred_region
        %s415 = ssub.s32 %s26, 1
        %s416 = sand.u32 %s39, 1
        %s417 = scalar_lea.sflag [#allocation3], %s416
        %s418 = sand.u32 %s39, 1
        %s419 = smul.addr %s418, 256
        %s420 = scalar_lea.vmem [#allocation2], %s419
        // Predicated region
        $region65: #{tpu_custom_call.1} parent=63 // pred_check
          %p421 = pneg %p52
        $region66: #{tpu_custom_call.1} parent=63 // pred_check_branch
          %423 = sbr.rel (%p421) target = $region68
        $region67: #{tpu_custom_call.1} parent=63 // pred_region
          %424 = dma.done %s417, 4096
        $region68: #{tpu_custom_call.1} parent=63 // pred_fallthru
          _
        // Predicated region
        $region69: #{tpu_custom_call.1} parent=63 // pred_check
          %p425 = pneg %p73
        $region70: #{tpu_custom_call.1} parent=63 // pred_check_branch
          %427 = sbr.rel (%p425) target = $region72
        $region71: #{tpu_custom_call.1} parent=63 // pred_region
          %428 = dma.done [#allocation6], 10240
        $region72: #{tpu_custom_call.1} parent=63 // pred_fallthru
          _
        // Predicated region
        $region73: #{tpu_custom_call.1} parent=63 // pred_check
          %p429 = pneg %p115
        $region74: #{tpu_custom_call.1} parent=63 // pred_check_branch
          %431 = sbr.rel (%p429) target = $region76
        $region75: #{tpu_custom_call.1} parent=63 // pred_region
          %432 = dma.done [#allocation6], 10240
        $region76: #{tpu_custom_call.1} parent=63 // pred_fallthru
          _
        // Predicated region
        $region77: #{tpu_custom_call.1} parent=63 // pred_check
          %p433 = pneg %p157
        $region78: #{tpu_custom_call.1} parent=63 // pred_check_branch
          %435 = sbr.rel (%p433) target = $region80
        $region79: #{tpu_custom_call.1} parent=63 // pred_region
          %436 = dma.done [#allocation9], 10240
        $region80: #{tpu_custom_call.1} parent=63 // pred_fallthru
          _
        // Predicated region
        $region81: #{tpu_custom_call.1} parent=63 // pred_check
          %p437 = pneg %p199
        $region82: #{tpu_custom_call.1} parent=63 // pred_check_branch
          %439 = sbr.rel (%p437) target = $region84
        $region83: #{tpu_custom_call.1} parent=63 // pred_region
          %440 = dma.done [#allocation9], 2048
        $region84: #{tpu_custom_call.1} parent=63 // pred_fallthru
          _
        // Predicated region
        $region85: #{tpu_custom_call.1} parent=63 // pred_check
          %p441 = pneg %p241
        $region86: #{tpu_custom_call.1} parent=63 // pred_check_branch
          %443 = sbr.rel (%p441) target = $region88
        $region87: #{tpu_custom_call.1} parent=63 // pred_region
          %444 = dma.done [#allocation12], 2048
        $region88: #{tpu_custom_call.1} parent=63 // pred_fallthru
          _
        %s445 = sand.u32 %s39, 1
        %s446 = scalar_lea.sflag [#allocation3], %s445
        %s447 = sand.u32 %s39, 1
        %s448 = smul.addr %s447, 256
        %s449 = scalar_lea.vmem [#allocation2], %s448
        %p450 = pneg %p52
        %p451 = pneg %p49
        %p452 = pneg %p73
        %p453 = pneg %p70
        %p454 = pneg %p94
        %p455 = pneg %p91
        %p456 = pneg %p115
        %p457 = pneg %p112
        %p458 = pneg %p136
        %p459 = pneg %p133
        %p460 = pneg %p157
        %p461 = pneg %p154
        %p462 = pneg %p178
        %p463 = pneg %p175
        %p464 = pneg %p199
        %p465 = pneg %p196
        %p466 = pneg %p220
        %p467 = pneg %p217
        %p468 = pneg %p241
        %p469 = pneg %p238
        %p470 = pneg %p262
        %p471 = pneg %p259
        %p472 = pneg %p288
        %p473 = pneg %p285
        %s474 = sand.u32 %s275, 1
        %s475 = scalar_lea.sflag [#allocation4], %s474
        %s476 = sand.u32 %s275, 1
        %s477 = smul.addr %s476, 8
        %s478 = scalar_lea.vmem [#allocation13], %s477
        %s479 = smul.u32 8, %s31
        %v480 = vld [vmem:[%s420] sm:$0xff]
        %v481 = vld [vmem:[%s420 + $0x8] sm:$0xff]
        %v482 = vld [vmem:[%s420 + $0x10] sm:$0xff]
        %v483 = vld [vmem:[%s420 + $0x18] sm:$0xff]
        %v484 = vld [vmem:[%s420 + $0x20] sm:$0xff]
        %v485 = vld [vmem:[%s420 + $0x28] sm:$0xff]
        %v486 = vld [vmem:[%s420 + $0x30] sm:$0xff]
        %v487 = vld [vmem:[%s420 + $0x38] sm:$0xff]
        %v488 = vld [vmem:[%s420 + $0x40] sm:$0xff]
        %v489 = vld [vmem:[%s420 + $0x48] sm:$0xff]
        %v490 = vld [vmem:[%s420 + $0x50] sm:$0xff]
        %v491 = vld [vmem:[%s420 + $0x58] sm:$0xff]
        %v492 = vld [vmem:[%s420 + $0x60] sm:$0xff]
        %v493 = vld [vmem:[%s420 + $0x68] sm:$0xff]
        %v494 = vld [vmem:[%s420 + $0x70] sm:$0xff]
        %v495 = vld [vmem:[%s420 + $0x78] sm:$0xff]
        %v496 = vld [vmem:[%s420 + $0x80] sm:$0xff]
        %v497 = vld [vmem:[%s420 + $0x88] sm:$0xff]
        %v498 = vld [vmem:[%s420 + $0x90] sm:$0xff]
        %v499 = vld [vmem:[%s420 + $0x98] sm:$0xff]
        %v500 = vld [vmem:[%s420 + $0xa0] sm:$0xff]
        %v501 = vld [vmem:[%s420 + $0xa8] sm:$0xff]
        %v502 = vld [vmem:[%s420 + $0xb0] sm:$0xff]
        %v503 = vld [vmem:[%s420 + $0xb8] sm:$0xff]
        %v504 = vld [vmem:[%s420 + $0xc0] sm:$0xff]
        %v505 = vld [vmem:[%s420 + $0xc8] sm:$0xff]
        %v506 = vld [vmem:[%s420 + $0xd0] sm:$0xff]
        %v507 = vld [vmem:[%s420 + $0xd8] sm:$0xff]
        %v508 = vld [vmem:[%s420 + $0xe0] sm:$0xff]
        %v509 = vld [vmem:[%s420 + $0xe8] sm:$0xff]
        %v510 = vld [vmem:[%s420 + $0xf0] sm:$0xff]
        %v511 = vld [vmem:[%s420 + $0xf8] sm:$0xff]
        %v512 = vld [vmem:[#allocation5] sm:$0xff]
        %v513 = vld [vmem:[#allocation5 + $0x8] sm:$0xff]
        %v514 = vld [vmem:[#allocation5 + $0x10] sm:$0xff]
        %v515 = vld [vmem:[#allocation5 + $0x18] sm:$0xff]
        %v516 = vld [vmem:[#allocation5 + $0x20] sm:$0xff]
        %v517 = vld [vmem:[#allocation5 + $0x28] sm:$0xff]
        %v518 = vld [vmem:[#allocation5 + $0x30] sm:$0xff]
        %v519 = vld [vmem:[#allocation5 + $0x38] sm:$0xff]
        %v520 = vld [vmem:[#allocation5 + $0x40] sm:$0xff]
        %v521 = vld [vmem:[#allocation5 + $0x48] sm:$0xff]
        %v522 = vld [vmem:[#allocation5 + $0x50] sm:$0xff]
        %v523 = vld [vmem:[#allocation5 + $0x58] sm:$0xff]
        %v524 = vld [vmem:[#allocation5 + $0x60] sm:$0xff]
        %v525 = vld [vmem:[#allocation5 + $0x68] sm:$0xff]
        %v526 = vld [vmem:[#allocation5 + $0x70] sm:$0xff]
        %v527 = vld [vmem:[#allocation5 + $0x78] sm:$0xff]
        %v528 = vld [vmem:[#allocation5 + $0x80] sm:$0xff]
        %v529 = vld [vmem:[#allocation5 + $0x88] sm:$0xff]
        %v530 = vld [vmem:[#allocation5 + $0x90] sm:$0xff]
        %v531 = vld [vmem:[#allocation5 + $0x98] sm:$0xff]
        %v532 = vld [vmem:[#allocation5 + $0xa0] sm:$0xff]
        %v533 = vld [vmem:[#allocation5 + $0xa8] sm:$0xff]
        %v534 = vld [vmem:[#allocation5 + $0xb0] sm:$0xff]
        %v535 = vld [vmem:[#allocation5 + $0xb8] sm:$0xff]
        %v536 = vld [vmem:[#allocation5 + $0xc0] sm:$0xff]
        %v537 = vld [vmem:[#allocation5 + $0xc8] sm:$0xff]
        %v538 = vld [vmem:[#allocation5 + $0xd0] sm:$0xff]
        %v539 = vld [vmem:[#allocation5 + $0xd8] sm:$0xff]
        %v540 = vld [vmem:[#allocation5 + $0xe0] sm:$0xff]
        %v541 = vld [vmem:[#allocation5 + $0xe8] sm:$0xff]
        %v542 = vld [vmem:[#allocation5 + $0xf0] sm:$0xff]
        %v543 = vld [vmem:[#allocation5 + $0xf8] sm:$0xff]
        %v544 = vld [vmem:[#allocation5 + $0x100] sm:$0xff]
        %v545 = vld [vmem:[#allocation5 + $0x108] sm:$0xff]
        %v546 = vld [vmem:[#allocation5 + $0x110] sm:$0xff]
        %v547 = vld [vmem:[#allocation5 + $0x118] sm:$0xff]
        %v548 = vld [vmem:[#allocation5 + $0x120] sm:$0xff]
        %v549 = vld [vmem:[#allocation5 + $0x128] sm:$0xff]
        %v550 = vld [vmem:[#allocation5 + $0x130] sm:$0xff]
        %v551 = vld [vmem:[#allocation5 + $0x138] sm:$0xff]
        %v552 = vld [vmem:[#allocation5 + $0x140] sm:$0xff]
        %v553 = vld [vmem:[#allocation5 + $0x148] sm:$0xff]
        %v554 = vld [vmem:[#allocation5 + $0x150] sm:$0xff]
        %v555 = vld [vmem:[#allocation5 + $0x158] sm:$0xff]
        %v556 = vld [vmem:[#allocation5 + $0x160] sm:$0xff]
        %v557 = vld [vmem:[#allocation5 + $0x168] sm:$0xff]
        %v558 = vld [vmem:[#allocation5 + $0x170] sm:$0xff]
        %v559 = vld [vmem:[#allocation5 + $0x178] sm:$0xff]
        %v560 = vld [vmem:[#allocation5 + $0x180] sm:$0xff]
        %v561 = vld [vmem:[#allocation5 + $0x188] sm:$0xff]
        %v562 = vld [vmem:[#allocation5 + $0x190] sm:$0xff]
        %v563 = vld [vmem:[#allocation5 + $0x198] sm:$0xff]
        %v564 = vld [vmem:[#allocation5 + $0x1a0] sm:$0xff]
        %v565 = vld [vmem:[#allocation5 + $0x1a8] sm:$0xff]
        %v566 = vld [vmem:[#allocation5 + $0x1b0] sm:$0xff]
        %v567 = vld [vmem:[#allocation5 + $0x1b8] sm:$0xff]
        %v568 = vld [vmem:[#allocation5 + $0x1c0] sm:$0xff]
        %v569 = vld [vmem:[#allocation5 + $0x1c8] sm:$0xff]
        %v570 = vld [vmem:[#allocation5 + $0x1d0] sm:$0xff]
        %v571 = vld [vmem:[#allocation5 + $0x1d8] sm:$0xff]
        %v572 = vld [vmem:[#allocation5 + $0x1e0] sm:$0xff]
        %v573 = vld [vmem:[#allocation5 + $0x1e8] sm:$0xff]
        %v574 = vld [vmem:[#allocation5 + $0x1f0] sm:$0xff]
        %v575 = vld [vmem:[#allocation5 + $0x1f8] sm:$0xff]
        %v576 = vld [vmem:[#allocation5 + $0x200] sm:$0xff]
        %v577 = vld [vmem:[#allocation5 + $0x208] sm:$0xff]
        %v578 = vld [vmem:[#allocation5 + $0x210] sm:$0xff]
        %v579 = vld [vmem:[#allocation5 + $0x218] sm:$0xff]
        %v580 = vld [vmem:[#allocation5 + $0x220] sm:$0xff]
        %v581 = vld [vmem:[#allocation5 + $0x228] sm:$0xff]
        %v582 = vld [vmem:[#allocation5 + $0x230] sm:$0xff]
        %v583 = vld [vmem:[#allocation5 + $0x238] sm:$0xff]
        %v584 = vld [vmem:[#allocation5 + $0x240] sm:$0xff]
        %v585 = vld [vmem:[#allocation5 + $0x248] sm:$0xff]
        %v586 = vld [vmem:[#allocation5 + $0x250] sm:$0xff]
        %v587 = vld [vmem:[#allocation5 + $0x258] sm:$0xff]
        %v588 = vld [vmem:[#allocation5 + $0x260] sm:$0xff]
        %v589 = vld [vmem:[#allocation5 + $0x268] sm:$0xff]
        %v590 = vld [vmem:[#allocation5 + $0x270] sm:$0xff]
        %v591 = vld [vmem:[#allocation5 + $0x278] sm:$0xff]
        %592 = vmatprep.subr.mxu0 %v513
        %593 = vmatpush1.msra.mxu0 %v512
        %594 = vmatprep.subr.mxu0 %v518
        %595 = vmatpush1.msra.mxu0 %v517
        %596 = vmatprep.subr.mxu0 %v523
        %597 = vmatpush1.msra.mxu0 %v522
        %598 = vmatprep.subr.mxu0 %v528
        %599 = vmatpush1.msra.mxu0 %v527
        %600 = vmatprep.subr.mxu0 %v533
        %601 = vmatpush1.msra.mxu0 %v532
        %602 = vmatprep.subr.mxu0 %v538
        %603 = vmatpush1.msra.mxu0 %v537
        %604 = vmatprep.subr.mxu0 %v543
        %605 = vmatpush1.msra.mxu0 %v542
        %606 = vmatprep.subr.mxu0 %v548
        %607 = vmatpush1.msra.mxu0 %v547
        %608 = vmatprep.subr.mxu0 %v553
        %609 = vmatpush1.msra.mxu0 %v552
        %610 = vmatprep.subr.mxu0 %v558
        %611 = vmatpush1.msra.mxu0 %v557
        %612 = vmatprep.subr.mxu0 %v563
        %613 = vmatpush1.msra.mxu0 %v562
        %614 = vmatprep.subr.mxu0 %v568
        %615 = vmatpush1.msra.mxu0 %v567
        %616 = vmatprep.subr.mxu0 %v573
        %617 = vmatpush1.msra.mxu0 %v572
        %618 = vmatprep.subr.mxu0 %v578
        %619 = vmatpush1.msra.mxu0 %v577
        %620 = vmatprep.subr.mxu0 %v583
        %621 = vmatpush1.msra.mxu0 %v582
        %622 = vmatprep.subr.mxu0 %v588
        %623 = vmatpush1.msra.mxu0 %v587
        %624 = vmatprep.subr.mxu0 0.0
        %625 = vmatpush1.msra.mxu0 0.0
        %626 = vmatprep.subr.mxu0 0.0
        %627 = vmatpush1.msra.mxu0 0.0
        %628 = vmatprep.subr.mxu0 0.0
        %629 = vmatpush1.msra.mxu0 0.0
        %630 = vmatprep.subr.mxu0 0.0
        %631 = vmatpush1.msra.mxu0 0.0
        %632 = vmatprep.subr.mxu0 0.0
        %633 = vmatpush1.msra.mxu0 0.0
        %634 = vmatprep.subr.mxu0 0.0
        %635 = vmatpush1.msra.mxu0 0.0
        %636 = vmatprep.subr.mxu0 0.0
        %637 = vmatpush1.msra.mxu0 0.0
        %638 = vmatprep.subr.mxu0 0.0
        %639 = vmatpush1.msra.mxu0 0.0
        %640 = vmatprep.subr.mxu0 0.0
        %641 = vmatpush1.msra.mxu0 0.0
        %642 = vmatprep.subr.mxu0 0.0
        %643 = vmatpush1.msra.mxu0 0.0
        %644 = vmatprep.subr.mxu0 0.0
        %645 = vmatpush1.msra.mxu0 0.0
        %646 = vmatprep.subr.mxu0 0.0
        %647 = vmatpush1.msra.mxu0 0.0
        %648 = vmatprep.subr.mxu0 0.0
        %649 = vmatpush1.msra.mxu0 0.0
        %650 = vmatprep.subr.mxu0 0.0
        %651 = vmatpush1.msra.mxu0 0.0
        %652 = vmatprep.subr.mxu0 0.0
        %653 = vmatpush1.msra.mxu0 0.0
        %654 = vmatprep.subr.mxu0 0.0
        %655 = vmatpush1.msra.mxu0 0.0
        %656 = vmatprep.mubr.f32.mxu0 0.0
        %657 = vmatmul.mubr.f32.gmra.mrb[0].mxu0 %v480
        %v658 = vpop.f32.mrb[0].mxu0
        %v659 = vadd.f32 0.0, %v658
        %v660 = vpop.f32.mrb[0].mxu0
        %v661 = vadd.f32 0.0, %v660
        %662 = vmatprep.mubr.f32.mxu0 0.0
        %663 = vmatmul.mubr.f32.gmra.mrb[0].mxu0 %v481
        %v664 = vpop.f32.mrb[0].mxu0
        %v665 = vadd.f32 0.0, %v664
        %v666 = vpop.f32.mrb[0].mxu0
        %v667 = vadd.f32 0.0, %v666
        %668 = vmatprep.mubr.f32.mxu0 0.0
        %669 = vmatmul.mubr.f32.gmra.mrb[0].mxu0 %v482
        %v670 = vpop.f32.mrb[0].mxu0
        %v671 = vadd.f32 0.0, %v670
        %v672 = vpop.f32.mrb[0].mxu0
        %v673 = vadd.f32 0.0, %v672
        %674 = vmatprep.mubr.f32.mxu0 0.0
        %675 = vmatmul.mubr.f32.gmra.mrb[0].mxu0 %v483
        %v676 = vpop.f32.mrb[0].mxu0
        %v677 = vadd.f32 0.0, %v676
        %v678 = vpop.f32.mrb[0].mxu0
        %v679 = vadd.f32 0.0, %v678
        %680 = vmatprep.mubr.f32.mxu0 0.0
        %681 = vmatmul.mubr.f32.gmra.mrb[0].mxu0 %v484
        %v682 = vpop.f32.mrb[0].mxu0
        %v683 = vadd.f32 0.0, %v682
        %v684 = vpop.f32.mrb[0].mxu0
        %v685 = vadd.f32 0.0, %v684
        %686 = vmatprep.mubr.f32.mxu0 0.0
        %687 = vmatmul.mubr.f32.gmra.mrb[0].mxu0 %v485
        %v688 = vpop.f32.mrb[0].mxu0
        %v689 = vadd.f32 0.0, %v688
        %v690 = vpop.f32.mrb[0].mxu0
        %v691 = vadd.f32 0.0, %v690
        %692 = vmatprep.mubr.f32.mxu0 0.0
        %693 = vmatmul.mubr.f32.gmra.mrb[0].mxu0 %v486
        %v694 = vpop.f32.mrb[0].mxu0
        %v695 = vadd.f32 0.0, %v694
        %v696 = vpop.f32.mrb[0].mxu0
        %v697 = vadd.f32 0.0, %v696
        %698 = vmatprep.mubr.f32.mxu0 0.0
        %699 = vmatmul.mubr.f32.gmra.mrb[0].mxu0 %v487
        %v700 = vpop.f32.mrb[0].mxu0
        %v701 = vadd.f32 0.0, %v700
        %v702 = vpop.f32.mrb[0].mxu0
        %v703 = vadd.f32 0.0, %v702
        %704 = vmatprep.mubr.f32.mxu0 0.0
        %705 = vmatmul.mubr.f32.gmra.mrb[0].mxu0 %v488
        %v706 = vpop.f32.mrb[0].mxu0
        %v707 = vadd.f32 0.0, %v706
        %v708 = vpop.f32.mrb[0].mxu0
        %v709 = vadd.f32 0.0, %v708
        %710 = vmatprep.mubr.f32.mxu0 0.0
        %711 = vmatmul.mubr.f32.gmra.mrb[0].mxu0 %v489
        %v712 = vpop.f32.mrb[0].mxu0
        %v713 = vadd.f32 0.0, %v712
        %v714 = vpop.f32.mrb[0].mxu0
        %v715 = vadd.f32 0.0, %v714
        %716 = vmatprep.mubr.f32.mxu0 0.0
        %717 = vmatmul.mubr.f32.gmra.mrb[0].mxu0 %v490
        %v718 = vpop.f32.mrb[0].mxu0
        %v719 = vadd.f32 0.0, %v718
        %v720 = vpop.f32.mrb[0].mxu0
        %v721 = vadd.f32 0.0, %v720
        %722 = vmatprep.mubr.f32.mxu0 0.0
        %723 = vmatmul.mubr.f32.gmra.mrb[0].mxu0 %v491
        %v724 = vpop.f32.mrb[0].mxu0
        %v725 = vadd.f32 0.0, %v724
        %v726 = vpop.f32.mrb[0].mxu0
        %v727 = vadd.f32 0.0, %v726
        %728 = vmatprep.mubr.f32.mxu0 0.0
        %729 = vmatmul.mubr.f32.gmra.mrb[0].mxu0 %v492
        %v730 = vpop.f32.mrb[0].mxu0
        %v731 = vadd.f32 0.0, %v730
        %v732 = vpop.f32.mrb[0].mxu0
        %v733 = vadd.f32 0.0, %v732
        %734 = vmatprep.mubr.f32.mxu0 0.0
        %735 = vmatmul.mubr.f32.gmra.mrb[0].mxu0 %v493
        %v736 = vpop.f32.mrb[0].mxu0
        %v737 = vadd.f32 0.0, %v736
        %v738 = vpop.f32.mrb[0].mxu0
        %v739 = vadd.f32 0.0, %v738
        %740 = vmatprep.mubr.f32.mxu0 0.0
        %741 = vmatmul.mubr.f32.gmra.mrb[0].mxu0 %v494
        %v742 = vpop.f32.mrb[0].mxu0
        %v743 = vadd.f32 0.0, %v742
        %v744 = vpop.f32.mrb[0].mxu0
        %v745 = vadd.f32 0.0, %v744
        %746 = vmatprep.mubr.f32.mxu0 0.0
        %747 = vmatmul.mubr.f32.gmra.mrb[0].mxu0 %v495
        %v748 = vpop.f32.mrb[0].mxu0
        %v749 = vadd.f32 0.0, %v748
        %v750 = vpop.f32.mrb[0].mxu0
        %v751 = vadd.f32 0.0, %v750
        %752 = vmatprep.mubr.f32.mxu0 0.0
        %753 = vmatmul.mubr.f32.gmra.mrb[0].mxu0 %v496
        %v754 = vpop.f32.mrb[0].mxu0
        %v755 = vadd.f32 0.0, %v754
        %v756 = vpop.f32.mrb[0].mxu0
        %v757 = vadd.f32 0.0, %v756
        %758 = vmatprep.mubr.f32.mxu0 0.0
        %759 = vmatmul.mubr.f32.gmra.mrb[0].mxu0 %v497
        %v760 = vpop.f32.mrb[0].mxu0
        %v761 = vadd.f32 0.0, %v760
        %v762 = vpop.f32.mrb[0].mxu0
        %v763 = vadd.f32 0.0, %v762
        %764 = vmatprep.mubr.f32.mxu0 0.0
        %765 = vmatmul.mubr.f32.gmra.mrb[0].mxu0 %v498
        %v766 = vpop.f32.mrb[0].mxu0
        %v767 = vadd.f32 0.0, %v766
        %v768 = vpop.f32.mrb[0].mxu0
        %v769 = vadd.f32 0.0, %v768
        %770 = vmatprep.mubr.f32.mxu0 0.0
        %771 = vmatmul.mubr.f32.gmra.mrb[0].mxu0 %v499
        %v772 = vpop.f32.mrb[0].mxu0
        %v773 = vadd.f32 0.0, %v772
        %v774 = vpop.f32.mrb[0].mxu0
        %v775 = vadd.f32 0.0, %v774
        %776 = vmatprep.mubr.f32.mxu0 0.0
        %777 = vmatmul.mubr.f32.gmra.mrb[0].mxu0 %v500
        %v778 = vpop.f32.mrb[0].mxu0
        %v779 = vadd.f32 0.0, %v778
        %v780 = vpop.f32.mrb[0].mxu0
        %v781 = vadd.f32 0.0, %v780
        %782 = vmatprep.mubr.f32.mxu0 0.0
        %783 = vmatmul.mubr.f32.gmra.mrb[0].mxu0 %v501
        %v784 = vpop.f32.mrb[0].mxu0
        %v785 = vadd.f32 0.0, %v784
        %v786 = vpop.f32.mrb[0].mxu0
        %v787 = vadd.f32 0.0, %v786
        %788 = vmatprep.mubr.f32.mxu0 0.0
        %789 = vmatmul.mubr.f32.gmra.mrb[0].mxu0 %v502
        %v790 = vpop.f32.mrb[0].mxu0
        %v791 = vadd.f32 0.0, %v790
        %v792 = vpop.f32.mrb[0].mxu0
        %v793 = vadd.f32 0.0, %v792
        %794 = vmatprep.mubr.f32.mxu0 0.0
        %795 = vmatmul.mubr.f32.gmra.mrb[0].mxu0 %v503
        %v796 = vpop.f32.mrb[0].mxu0
        %v797 = vadd.f32 0.0, %v796
        %v798 = vpop.f32.mrb[0].mxu0
        %v799 = vadd.f32 0.0, %v798
        %800 = vmatprep.mubr.f32.mxu0 0.0
        %801 = vmatmul.mubr.f32.gmra.mrb[0].mxu0 %v504
        %v802 = vpop.f32.mrb[0].mxu0
        %v803 = vadd.f32 0.0, %v802
        %v804 = vpop.f32.mrb[0].mxu0
        %v805 = vadd.f32 0.0, %v804
        %806 = vmatprep.mubr.f32.mxu0 0.0
        %807 = vmatmul.mubr.f32.gmra.mrb[0].mxu0 %v505
        %v808 = vpop.f32.mrb[0].mxu0
        %v809 = vadd.f32 0.0, %v808
        %v810 = vpop.f32.mrb[0].mxu0
        %v811 = vadd.f32 0.0, %v810
        %812 = vmatprep.mubr.f32.mxu0 0.0
        %813 = vmatmul.mubr.f32.gmra.mrb[0].mxu0 %v506
        %v814 = vpop.f32.mrb[0].mxu0
        %v815 = vadd.f32 0.0, %v814
        %v816 = vpop.f32.mrb[0].mxu0
        %v817 = vadd.f32 0.0, %v816
        %818 = vmatprep.mubr.f32.mxu0 0.0
        %819 = vmatmul.mubr.f32.gmra.mrb[0].mxu0 %v507
        %v820 = vpop.f32.mrb[0].mxu0
        %v821 = vadd.f32 0.0, %v820
        %v822 = vpop.f32.mrb[0].mxu0
        %v823 = vadd.f32 0.0, %v822
        %824 = vmatprep.mubr.f32.mxu0 0.0
        %825 = vmatmul.mubr.f32.gmra.mrb[0].mxu0 %v508
        %v826 = vpop.f32.mrb[0].mxu0
        %v827 = vadd.f32 0.0, %v826
        %v828 = vpop.f32.mrb[0].mxu0
        %v829 = vadd.f32 0.0, %v828
        %830 = vmatprep.mubr.f32.mxu0 0.0
        %831 = vmatmul.mubr.f32.gmra.mrb[0].mxu0 %v509
        %v832 = vpop.f32.mrb[0].mxu0
        %v833 = vadd.f32 0.0, %v832
        %v834 = vpop.f32.mrb[0].mxu0
        %v835 = vadd.f32 0.0, %v834
        %836 = vmatprep.mubr.f32.mxu0 0.0
        %837 = vmatmul.mubr.f32.gmra.mrb[0].mxu0 %v510
        %v838 = vpop.f32.mrb[0].mxu0
        %v839 = vadd.f32 0.0, %v838
        %v840 = vpop.f32.mrb[0].mxu0
        %v841 = vadd.f32 0.0, %v840
        %842 = vmatprep.mubr.f32.mxu0 0.0
        %843 = vmatmul.mubr.f32.gmra.mrb[0].mxu0 %v511
        %v844 = vpop.f32.mrb[0].mxu0
        %v845 = vadd.f32 0.0, %v844
        %v846 = vpop.f32.mrb[0].mxu0
        %v847 = vadd.f32 0.0, %v846
        %848 = vdwg.mxu0
        %849 = vmatprep.subr.mxu0 %v515
        %850 = vmatpush1.msra.mxu0 %v514
        %851 = vmatprep.subr.mxu0 %v520
        %852 = vmatpush1.msra.mxu0 %v519
        %853 = vmatprep.subr.mxu0 %v525
        %854 = vmatpush1.msra.mxu0 %v524
        %855 = vmatprep.subr.mxu0 %v530
        %856 = vmatpush1.msra.mxu0 %v529
        %857 = vmatprep.subr.mxu0 %v535
        %858 = vmatpush1.msra.mxu0 %v534
        %859 = vmatprep.subr.mxu0 %v540
        %860 = vmatpush1.msra.mxu0 %v539
        %861 = vmatprep.subr.mxu0 %v545
        %862 = vmatpush1.msra.mxu0 %v544
        %863 = vmatprep.subr.mxu0 %v550
        %864 = vmatpush1.msra.mxu0 %v549
        %865 = vmatprep.subr.mxu0 %v555
        %866 = vmatpush1.msra.mxu0 %v554
        %867 = vmatprep.subr.mxu0 %v560
        %868 = vmatpush1.msra.mxu0 %v559
        %869 = vmatprep.subr.mxu0 %v565
        %870 = vmatpush1.msra.mxu0 %v564
        %871 = vmatprep.subr.mxu0 %v570
        %872 = vmatpush1.msra.mxu0 %v569
        %873 = vmatprep.subr.mxu0 %v575
        %874 = vmatpush1.msra.mxu0 %v574
        %875 = vmatprep.subr.mxu0 %v580
        %876 = vmatpush1.msra.mxu0 %v579
        %877 = vmatprep.subr.mxu0 %v585
        %878 = vmatpush1.msra.mxu0 %v584
        %879 = vmatprep.subr.mxu0 %v590
        %880 = vmatpush1.msra.mxu0 %v589
        %881 = vmatprep.subr.mxu0 0.0
        %882 = vmatpush1.msra.mxu0 0.0
        %883 = vmatprep.subr.mxu0 0.0
        %884 = vmatpush1.msra.mxu0 0.0
        %885 = vmatprep.subr.mxu0 0.0
        %886 = vmatpush1.msra.mxu0 0.0
        %887 = vmatprep.subr.mxu0 0.0
        %888 = vmatpush1.msra.mxu0 0.0
        %889 = vmatprep.subr.mxu0 0.0
        %890 = vmatpush1.msra.mxu0 0.0
        %891 = vmatprep.subr.mxu0 0.0
        %892 = vmatpush1.msra.mxu0 0.0
        %893 = vmatprep.subr.mxu0 0.0
        %894 = vmatpush1.msra.mxu0 0.0
        %895 = vmatprep.subr.mxu0 0.0
        %896 = vmatpush1.msra.mxu0 0.0
        %897 = vmatprep.subr.mxu0 0.0
        %898 = vmatpush1.msra.mxu0 0.0
        %899 = vmatprep.subr.mxu0 0.0
        %900 = vmatpush1.msra.mxu0 0.0
        %901 = vmatprep.subr.mxu0 0.0
        %902 = vmatpush1.msra.mxu0 0.0
        %903 = vmatprep.subr.mxu0 0.0
        %904 = vmatpush1.msra.mxu0 0.0
        %905 = vmatprep.subr.mxu0 0.0
        %906 = vmatpush1.msra.mxu0 0.0
        %907 = vmatprep.subr.mxu0 0.0
        %908 = vmatpush1.msra.mxu0 0.0
        %909 = vmatprep.subr.mxu0 0.0
        %910 = vmatpush1.msra.mxu0 0.0
        %911 = vmatprep.subr.mxu0 0.0
        %912 = vmatpush1.msra.mxu0 0.0
        %913 = vmatprep.mubr.f32.mxu0 0.0
        %914 = vmatmul.mubr.f32.gmra.mrb[0].mxu0 %v480
        %v915 = vpop.f32.mrb[0].mxu0
        %v916 = vadd.f32 0.0, %v915
        %v917 = vpop.f32.mrb[0].mxu0
        %v918 = vadd.f32 0.0, %v917
        %919 = vmatprep.mubr.f32.mxu0 0.0
        %920 = vmatmul.mubr.f32.gmra.mrb[0].mxu0 %v481
        %v921 = vpop.f32.mrb[0].mxu0
        %v922 = vadd.f32 0.0, %v921
        %v923 = vpop.f32.mrb[0].mxu0
        %v924 = vadd.f32 0.0, %v923
        %925 = vmatprep.mubr.f32.mxu0 0.0
        %926 = vmatmul.mubr.f32.gmra.mrb[0].mxu0 %v482
        %v927 = vpop.f32.mrb[0].mxu0
        %v928 = vadd.f32 0.0, %v927
        %v929 = vpop.f32.mrb[0].mxu0
        %v930 = vadd.f32 0.0, %v929
        %931 = vmatprep.mubr.f32.mxu0 0.0
        %932 = vmatmul.mubr.f32.gmra.mrb[0].mxu0 %v483
        %v933 = vpop.f32.mrb[0].mxu0
        %v934 = vadd.f32 0.0, %v933
        %v935 = vpop.f32.mrb[0].mxu0
        %v936 = vadd.f32 0.0, %v935
        %937 = vmatprep.mubr.f32.mxu0 0.0
        %938 = vmatmul.mubr.f32.gmra.mrb[0].mxu0 %v484
        %v939 = vpop.f32.mrb[0].mxu0
        %v940 = vadd.f32 0.0, %v939
        %v941 = vpop.f32.mrb[0].mxu0
        %v942 = vadd.f32 0.0, %v941
        %943 = vmatprep.mubr.f32.mxu0 0.0
        %944 = vmatmul.mubr.f32.gmra.mrb[0].mxu0 %v485
        %v945 = vpop.f32.mrb[0].mxu0
        %v946 = vadd.f32 0.0, %v945
        %v947 = vpop.f32.mrb[0].mxu0
        %v948 = vadd.f32 0.0, %v947
        %949 = vmatprep.mubr.f32.mxu0 0.0
        %950 = vmatmul.mubr.f32.gmra.mrb[0].mxu0 %v486
        %v951 = vpop.f32.mrb[0].mxu0
        %v952 = vadd.f32 0.0, %v951
        %v953 = vpop.f32.mrb[0].mxu0
        %v954 = vadd.f32 0.0, %v953
        %955 = vmatprep.mubr.f32.mxu0 0.0
        %956 = vmatmul.mubr.f32.gmra.mrb[0].mxu0 %v487
        %v957 = vpop.f32.mrb[0].mxu0
        %v958 = vadd.f32 0.0, %v957
        %v959 = vpop.f32.mrb[0].mxu0
        %v960 = vadd.f32 0.0, %v959
        %961 = vmatprep.mubr.f32.mxu0 0.0
        %962 = vmatmul.mubr.f32.gmra.mrb[0].mxu0 %v488
        %v963 = vpop.f32.mrb[0].mxu0
        %v964 = vadd.f32 0.0, %v963
        %v965 = vpop.f32.mrb[0].mxu0
        %v966 = vadd.f32 0.0, %v965
        %967 = vmatprep.mubr.f32.mxu0 0.0
        %968 = vmatmul.mubr.f32.gmra.mrb[0].mxu0 %v489
        %v969 = vpop.f32.mrb[0].mxu0
        %v970 = vadd.f32 0.0, %v969
        %v971 = vpop.f32.mrb[0].mxu0
        %v972 = vadd.f32 0.0, %v971
        %973 = vmatprep.mubr.f32.mxu0 0.0
        %974 = vmatmul.mubr.f32.gmra.mrb[0].mxu0 %v490
        %v975 = vpop.f32.mrb[0].mxu0
        %v976 = vadd.f32 0.0, %v975
        %v977 = vpop.f32.mrb[0].mxu0
        %v978 = vadd.f32 0.0, %v977
        %979 = vmatprep.mubr.f32.mxu0 0.0
        %980 = vmatmul.mubr.f32.gmra.mrb[0].mxu0 %v491
        %v981 = vpop.f32.mrb[0].mxu0
        %v982 = vadd.f32 0.0, %v981
        %v983 = vpop.f32.mrb[0].mxu0
        %v984 = vadd.f32 0.0, %v983
        %985 = vmatprep.mubr.f32.mxu0 0.0
        %986 = vmatmul.mubr.f32.gmra.mrb[0].mxu0 %v492
        %v987 = vpop.f32.mrb[0].mxu0
        %v988 = vadd.f32 0.0, %v987
        %v989 = vpop.f32.mrb[0].mxu0
        %v990 = vadd.f32 0.0, %v989
        %991 = vmatprep.mubr.f32.mxu0 0.0
        %992 = vmatmul.mubr.f32.gmra.mrb[0].mxu0 %v493
        %v993 = vpop.f32.mrb[0].mxu0
        %v994 = vadd.f32 0.0, %v993
        %v995 = vpop.f32.mrb[0].mxu0
        %v996 = vadd.f32 0.0, %v995
        %997 = vmatprep.mubr.f32.mxu0 0.0
        %998 = vmatmul.mubr.f32.gmra.mrb[0].mxu0 %v494
        %v999 = vpop.f32.mrb[0].mxu0
        %v1000 = vadd.f32 0.0, %v999
        %v1001 = vpop.f32.mrb[0].mxu0
        %v1002 = vadd.f32 0.0, %v1001
        %1003 = vmatprep.mubr.f32.mxu0 0.0
        %1004 = vmatmul.mubr.f32.gmra.mrb[0].mxu0 %v495
        %v1005 = vpop.f32.mrb[0].mxu0
        %v1006 = vadd.f32 0.0, %v1005
        %v1007 = vpop.f32.mrb[0].mxu0
        %v1008 = vadd.f32 0.0, %v1007
        %1009 = vmatprep.mubr.f32.mxu0 0.0
        %1010 = vmatmul.mubr.f32.gmra.mrb[0].mxu0 %v496
        %v1011 = vpop.f32.mrb[0].mxu0
        %v1012 = vadd.f32 0.0, %v1011
        %v1013 = vpop.f32.mrb[0].mxu0
        %v1014 = vadd.f32 0.0, %v1013
        %1015 = vmatprep.mubr.f32.mxu0 0.0
        %1016 = vmatmul.mubr.f32.gmra.mrb[0].mxu0 %v497
        %v1017 = vpop.f32.mrb[0].mxu0
        %v1018 = vadd.f32 0.0, %v1017
        %v1019 = vpop.f32.mrb[0].mxu0
        %v1020 = vadd.f32 0.0, %v1019
        %1021 = vmatprep.mubr.f32.mxu0 0.0
        %1022 = vmatmul.mubr.f32.gmra.mrb[0].mxu0 %v498
        %v1023 = vpop.f32.mrb[0].mxu0
        %v1024 = vadd.f32 0.0, %v1023
        %v1025 = vpop.f32.mrb[0].mxu0
        %v1026 = vadd.f32 0.0, %v1025
        %1027 = vmatprep.mubr.f32.mxu0 0.0
        %1028 = vmatmul.mubr.f32.gmra.mrb[0].mxu0 %v499
        %v1029 = vpop.f32.mrb[0].mxu0
        %v1030 = vadd.f32 0.0, %v1029
        %v1031 = vpop.f32.mrb[0].mxu0
        %v1032 = vadd.f32 0.0, %v1031
        %1033 = vmatprep.mubr.f32.mxu0 0.0
        %1034 = vmatmul.mubr.f32.gmra.mrb[0].mxu0 %v500
        %v1035 = vpop.f32.mrb[0].mxu0
        %v1036 = vadd.f32 0.0, %v1035
        %v1037 = vpop.f32.mrb[0].mxu0
        %v1038 = vadd.f32 0.0, %v1037
        %1039 = vmatprep.mubr.f32.mxu0 0.0
        %1040 = vmatmul.mubr.f32.gmra.mrb[0].mxu0 %v501
        %v1041 = vpop.f32.mrb[0].mxu0
        %v1042 = vadd.f32 0.0, %v1041
        %v1043 = vpop.f32.mrb[0].mxu0
        %v1044 = vadd.f32 0.0, %v1043
        %1045 = vmatprep.mubr.f32.mxu0 0.0
        %1046 = vmatmul.mubr.f32.gmra.mrb[0].mxu0 %v502
        %v1047 = vpop.f32.mrb[0].mxu0
        %v1048 = vadd.f32 0.0, %v1047
        %v1049 = vpop.f32.mrb[0].mxu0
        %v1050 = vadd.f32 0.0, %v1049
        %1051 = vmatprep.mubr.f32.mxu0 0.0
        %1052 = vmatmul.mubr.f32.gmra.mrb[0].mxu0 %v503
        %v1053 = vpop.f32.mrb[0].mxu0
        %v1054 = vadd.f32 0.0, %v1053
        %v1055 = vpop.f32.mrb[0].mxu0
        %v1056 = vadd.f32 0.0, %v1055
        %1057 = vmatprep.mubr.f32.mxu0 0.0
        %1058 = vmatmul.mubr.f32.gmra.mrb[0].mxu0 %v504
        %v1059 = vpop.f32.mrb[0].mxu0
        %v1060 = vadd.f32 0.0, %v1059
        %v1061 = vpop.f32.mrb[0].mxu0
        %v1062 = vadd.f32 0.0, %v1061
        %1063 = vmatprep.mubr.f32.mxu0 0.0
        %1064 = vmatmul.mubr.f32.gmra.mrb[0].mxu0 %v505
        %v1065 = vpop.f32.mrb[0].mxu0
        %v1066 = vadd.f32 0.0, %v1065
        %v1067 = vpop.f32.mrb[0].mxu0
        %v1068 = vadd.f32 0.0, %v1067
        %1069 = vmatprep.mubr.f32.mxu0 0.0
        %1070 = vmatmul.mubr.f32.gmra.mrb[0].mxu0 %v506
        %v1071 = vpop.f32.mrb[0].mxu0
        %v1072 = vadd.f32 0.0, %v1071
        %v1073 = vpop.f32.mrb[0].mxu0
        %v1074 = vadd.f32 0.0, %v1073
        %1075 = vmatprep.mubr.f32.mxu0 0.0
        %1076 = vmatmul.mubr.f32.gmra.mrb[0].mxu0 %v507
        %v1077 = vpop.f32.mrb[0].mxu0
        %v1078 = vadd.f32 0.0, %v1077
        %v1079 = vpop.f32.mrb[0].mxu0
        %v1080 = vadd.f32 0.0, %v1079
        %1081 = vmatprep.mubr.f32.mxu0 0.0
        %1082 = vmatmul.mubr.f32.gmra.mrb[0].mxu0 %v508
        %v1083 = vpop.f32.mrb[0].mxu0
        %v1084 = vadd.f32 0.0, %v1083
        %v1085 = vpop.f32.mrb[0].mxu0
        %v1086 = vadd.f32 0.0, %v1085
        %1087 = vmatprep.mubr.f32.mxu0 0.0
        %1088 = vmatmul.mubr.f32.gmra.mrb[0].mxu0 %v509
        %v1089 = vpop.f32.mrb[0].mxu0
        %v1090 = vadd.f32 0.0, %v1089
        %v1091 = vpop.f32.mrb[0].mxu0
        %v1092 = vadd.f32 0.0, %v1091
        %1093 = vmatprep.mubr.f32.mxu0 0.0
        %1094 = vmatmul.mubr.f32.gmra.mrb[0].mxu0 %v510
        %v1095 = vpop.f32.mrb[0].mxu0
        %v1096 = vadd.f32 0.0, %v1095
        %v1097 = vpop.f32.mrb[0].mxu0
        %v1098 = vadd.f32 0.0, %v1097
        %1099 = vmatprep.mubr.f32.mxu0 0.0
        %1100 = vmatmul.mubr.f32.gmra.mrb[0].mxu0 %v511
        %v1101 = vpop.f32.mrb[0].mxu0
        %v1102 = vadd.f32 0.0, %v1101
        %v1103 = vpop.f32.mrb[0].mxu0
        %v1104 = vadd.f32 0.0, %v1103
        %1105 = vdwg.mxu0
        %1106 = vmatprep.subr.mxu0 0.0
        %1107 = vmatpush1.msra.mxu0 %v516
        %1108 = vmatprep.subr.mxu0 0.0
        %1109 = vmatpush1.msra.mxu0 %v521
        %1110 = vmatprep.subr.mxu0 0.0
        %1111 = vmatpush1.msra.mxu0 %v526
        %1112 = vmatprep.subr.mxu0 0.0
        %1113 = vmatpush1.msra.mxu0 %v531
        %1114 = vmatprep.subr.mxu0 0.0
        %1115 = vmatpush1.msra.mxu0 %v536
        %1116 = vmatprep.subr.mxu0 0.0
        %1117 = vmatpush1.msra.mxu0 %v541
        %1118 = vmatprep.subr.mxu0 0.0
        %1119 = vmatpush1.msra.mxu0 %v546
        %1120 = vmatprep.subr.mxu0 0.0
        %1121 = vmatpush1.msra.mxu0 %v551
        %1122 = vmatprep.subr.mxu0 0.0
        %1123 = vmatpush1.msra.mxu0 %v556
        %1124 = vmatprep.subr.mxu0 0.0
        %1125 = vmatpush1.msra.mxu0 %v561
        %1126 = vmatprep.subr.mxu0 0.0
        %1127 = vmatpush1.msra.mxu0 %v566
        %1128 = vmatprep.subr.mxu0 0.0
        %1129 = vmatpush1.msra.mxu0 %v571
        %1130 = vmatprep.subr.mxu0 0.0
        %1131 = vmatpush1.msra.mxu0 %v576
        %1132 = vmatprep.subr.mxu0 0.0
        %1133 = vmatpush1.msra.mxu0 %v581
        %1134 = vmatprep.subr.mxu0 0.0
        %1135 = vmatpush1.msra.mxu0 %v586
        %1136 = vmatprep.subr.mxu0 0.0
        %1137 = vmatpush1.msra.mxu0 %v591
        %1138 = vmatprep.subr.mxu0 0.0
        %1139 = vmatpush1.msra.mxu0 0.0
        %1140 = vmatprep.subr.mxu0 0.0
        %1141 = vmatpush1.msra.mxu0 0.0
        %1142 = vmatprep.subr.mxu0 0.0
        %1143 = vmatpush1.msra.mxu0 0.0
        %1144 = vmatprep.subr.mxu0 0.0
        %1145 = vmatpush1.msra.mxu0 0.0
        %1146 = vmatprep.subr.mxu0 0.0
        %1147 = vmatpush1.msra.mxu0 0.0
        %1148 = vmatprep.subr.mxu0 0.0
        %1149 = vmatpush1.msra.mxu0 0.0
        %1150 = vmatprep.subr.mxu0 0.0
        %1151 = vmatpush1.msra.mxu0 0.0
        %1152 = vmatprep.subr.mxu0 0.0
        %1153 = vmatpush1.msra.mxu0 0.0
        %1154 = vmatprep.subr.mxu0 0.0
        %1155 = vmatpush1.msra.mxu0 0.0
        %1156 = vmatprep.subr.mxu0 0.0
        %1157 = vmatpush1.msra.mxu0 0.0
        %1158 = vmatprep.subr.mxu0 0.0
        %1159 = vmatpush1.msra.mxu0 0.0
        %1160 = vmatprep.subr.mxu0 0.0
        %1161 = vmatpush1.msra.mxu0 0.0
        %1162 = vmatprep.subr.mxu0 0.0
        %1163 = vmatpush1.msra.mxu0 0.0
        %1164 = vmatprep.subr.mxu0 0.0
        %1165 = vmatpush1.msra.mxu0 0.0
        %1166 = vmatprep.subr.mxu0 0.0
        %1167 = vmatpush1.msra.mxu0 0.0
        %1168 = vmatprep.subr.mxu0 0.0
        %1169 = vmatpush1.msra.mxu0 0.0
        %1170 = vmatprep.mubr.f32.mxu0 0.0
        %1171 = vmatmul.mubr.f32.gmra.mrb[0].mxu0 %v480
        %v1172 = vpop.f32.mrb[0].mxu0
        %v1173 = vadd.f32 0.0, %v1172
        %v1174 = vpop.f32.mrb[0].mxu0
        %1175 = vmatprep.mubr.f32.mxu0 0.0
        %1176 = vmatmul.mubr.f32.gmra.mrb[0].mxu0 %v481
        %v1177 = vpop.f32.mrb[0].mxu0
        %v1178 = vadd.f32 0.0, %v1177
        %v1179 = vpop.f32.mrb[0].mxu0
        %1180 = vmatprep.mubr.f32.mxu0 0.0
        %1181 = vmatmul.mubr.f32.gmra.mrb[0].mxu0 %v482
        %v1182 = vpop.f32.mrb[0].mxu0
        %v1183 = vadd.f32 0.0, %v1182
        %v1184 = vpop.f32.mrb[0].mxu0
        %1185 = vmatprep.mubr.f32.mxu0 0.0
        %1186 = vmatmul.mubr.f32.gmra.mrb[0].mxu0 %v483
        %v1187 = vpop.f32.mrb[0].mxu0
        %v1188 = vadd.f32 0.0, %v1187
        %v1189 = vpop.f32.mrb[0].mxu0
        %1190 = vmatprep.mubr.f32.mxu0 0.0
        %1191 = vmatmul.mubr.f32.gmra.mrb[0].mxu0 %v484
        %v1192 = vpop.f32.mrb[0].mxu0
        %v1193 = vadd.f32 0.0, %v1192
        %v1194 = vpop.f32.mrb[0].mxu0
        %1195 = vmatprep.mubr.f32.mxu0 0.0
        %1196 = vmatmul.mubr.f32.gmra.mrb[0].mxu0 %v485
        %v1197 = vpop.f32.mrb[0].mxu0
        %v1198 = vadd.f32 0.0, %v1197
        %v1199 = vpop.f32.mrb[0].mxu0
        %1200 = vmatprep.mubr.f32.mxu0 0.0
        %1201 = vmatmul.mubr.f32.gmra.mrb[0].mxu0 %v486
        %v1202 = vpop.f32.mrb[0].mxu0
        %v1203 = vadd.f32 0.0, %v1202
        %v1204 = vpop.f32.mrb[0].mxu0
        %1205 = vmatprep.mubr.f32.mxu0 0.0
        %1206 = vmatmul.mubr.f32.gmra.mrb[0].mxu0 %v487
        %v1207 = vpop.f32.mrb[0].mxu0
        %v1208 = vadd.f32 0.0, %v1207
        %v1209 = vpop.f32.mrb[0].mxu0
        %1210 = vmatprep.mubr.f32.mxu0 0.0
        %1211 = vmatmul.mubr.f32.gmra.mrb[0].mxu0 %v488
        %v1212 = vpop.f32.mrb[0].mxu0
        %v1213 = vadd.f32 0.0, %v1212
        %v1214 = vpop.f32.mrb[0].mxu0
        %1215 = vmatprep.mubr.f32.mxu0 0.0
        %1216 = vmatmul.mubr.f32.gmra.mrb[0].mxu0 %v489
        %v1217 = vpop.f32.mrb[0].mxu0
        %v1218 = vadd.f32 0.0, %v1217
        %v1219 = vpop.f32.mrb[0].mxu0
        %1220 = vmatprep.mubr.f32.mxu0 0.0
        %1221 = vmatmul.mubr.f32.gmra.mrb[0].mxu0 %v490
        %v1222 = vpop.f32.mrb[0].mxu0
        %v1223 = vadd.f32 0.0, %v1222
        %v1224 = vpop.f32.mrb[0].mxu0
        %1225 = vmatprep.mubr.f32.mxu0 0.0
        %1226 = vmatmul.mubr.f32.gmra.mrb[0].mxu0 %v491
        %v1227 = vpop.f32.mrb[0].mxu0
        %v1228 = vadd.f32 0.0, %v1227
        %v1229 = vpop.f32.mrb[0].mxu0
        %1230 = vmatprep.mubr.f32.mxu0 0.0
        %1231 = vmatmul.mubr.f32.gmra.mrb[0].mxu0 %v492
        %v1232 = vpop.f32.mrb[0].mxu0
        %v1233 = vadd.f32 0.0, %v1232
        %v1234 = vpop.f32.mrb[0].mxu0
        %1235 = vmatprep.mubr.f32.mxu0 0.0
        %1236 = vmatmul.mubr.f32.gmra.mrb[0].mxu0 %v493
        %v1237 = vpop.f32.mrb[0].mxu0
        %v1238 = vadd.f32 0.0, %v1237
        %v1239 = vpop.f32.mrb[0].mxu0
        %1240 = vmatprep.mubr.f32.mxu0 0.0
        %1241 = vmatmul.mubr.f32.gmra.mrb[0].mxu0 %v494
        %v1242 = vpop.f32.mrb[0].mxu0
        %v1243 = vadd.f32 0.0, %v1242
        %v1244 = vpop.f32.mrb[0].mxu0
        %1245 = vmatprep.mubr.f32.mxu0 0.0
        %1246 = vmatmul.mubr.f32.gmra.mrb[0].mxu0 %v495
        %v1247 = vpop.f32.mrb[0].mxu0
        %v1248 = vadd.f32 0.0, %v1247
        %v1249 = vpop.f32.mrb[0].mxu0
        %1250 = vmatprep.mubr.f32.mxu0 0.0
        %1251 = vmatmul.mubr.f32.gmra.mrb[0].mxu0 %v496
        %v1252 = vpop.f32.mrb[0].mxu0
        %v1253 = vadd.f32 0.0, %v1252
        %v1254 = vpop.f32.mrb[0].mxu0
        %1255 = vmatprep.mubr.f32.mxu0 0.0
        %1256 = vmatmul.mubr.f32.gmra.mrb[0].mxu0 %v497
        %v1257 = vpop.f32.mrb[0].mxu0
        %v1258 = vadd.f32 0.0, %v1257
        %v1259 = vpop.f32.mrb[0].mxu0
        %1260 = vmatprep.mubr.f32.mxu0 0.0
        %1261 = vmatmul.mubr.f32.gmra.mrb[0].mxu0 %v498
        %v1262 = vpop.f32.mrb[0].mxu0
        %v1263 = vadd.f32 0.0, %v1262
        %v1264 = vpop.f32.mrb[0].mxu0
        %1265 = vmatprep.mubr.f32.mxu0 0.0
        %1266 = vmatmul.mubr.f32.gmra.mrb[0].mxu0 %v499
        %v1267 = vpop.f32.mrb[0].mxu0
        %v1268 = vadd.f32 0.0, %v1267
        %v1269 = vpop.f32.mrb[0].mxu0
        %1270 = vmatprep.mubr.f32.mxu0 0.0
        %1271 = vmatmul.mubr.f32.gmra.mrb[0].mxu0 %v500
        %v1272 = vpop.f32.mrb[0].mxu0
        %v1273 = vadd.f32 0.0, %v1272
        %v1274 = vpop.f32.mrb[0].mxu0
        %1275 = vmatprep.mubr.f32.mxu0 0.0
        %1276 = vmatmul.mubr.f32.gmra.mrb[0].mxu0 %v501
        %v1277 = vpop.f32.mrb[0].mxu0
        %v1278 = vadd.f32 0.0, %v1277
        %v1279 = vpop.f32.mrb[0].mxu0
        %1280 = vmatprep.mubr.f32.mxu0 0.0
        %1281 = vmatmul.mubr.f32.gmra.mrb[0].mxu0 %v502
        %v1282 = vpop.f32.mrb[0].mxu0
        %v1283 = vadd.f32 0.0, %v1282
        %v1284 = vpop.f32.mrb[0].mxu0
        %1285 = vmatprep.mubr.f32.mxu0 0.0
        %1286 = vmatmul.mubr.f32.gmra.mrb[0].mxu0 %v503
        %v1287 = vpop.f32.mrb[0].mxu0
        %v1288 = vadd.f32 0.0, %v1287
        %v1289 = vpop.f32.mrb[0].mxu0
        %1290 = vmatprep.mubr.f32.mxu0 0.0
        %1291 = vmatmul.mubr.f32.gmra.mrb[0].mxu0 %v504
        %v1292 = vpop.f32.mrb[0].mxu0
        %v1293 = vadd.f32 0.0, %v1292
        %v1294 = vpop.f32.mrb[0].mxu0
        %1295 = vmatprep.mubr.f32.mxu0 0.0
        %1296 = vmatmul.mubr.f32.gmra.mrb[0].mxu0 %v505
        %v1297 = vpop.f32.mrb[0].mxu0
        %v1298 = vadd.f32 0.0, %v1297
        %v1299 = vpop.f32.mrb[0].mxu0
        %1300 = vmatprep.mubr.f32.mxu0 0.0
        %1301 = vmatmul.mubr.f32.gmra.mrb[0].mxu0 %v506
        %v1302 = vpop.f32.mrb[0].mxu0
        %v1303 = vadd.f32 0.0, %v1302
        %v1304 = vpop.f32.mrb[0].mxu0
        %1305 = vmatprep.mubr.f32.mxu0 0.0
        %1306 = vmatmul.mubr.f32.gmra.mrb[0].mxu0 %v507
        %v1307 = vpop.f32.mrb[0].mxu0
        %v1308 = vadd.f32 0.0, %v1307
        %v1309 = vpop.f32.mrb[0].mxu0
        %1310 = vmatprep.mubr.f32.mxu0 0.0
        %1311 = vmatmul.mubr.f32.gmra.mrb[0].mxu0 %v508
        %v1312 = vpop.f32.mrb[0].mxu0
        %v1313 = vadd.f32 0.0, %v1312
        %v1314 = vpop.f32.mrb[0].mxu0
        %1315 = vmatprep.mubr.f32.mxu0 0.0
        %1316 = vmatmul.mubr.f32.gmra.mrb[0].mxu0 %v509
        %v1317 = vpop.f32.mrb[0].mxu0
        %v1318 = vadd.f32 0.0, %v1317
        %v1319 = vpop.f32.mrb[0].mxu0
        %1320 = vmatprep.mubr.f32.mxu0 0.0
        %1321 = vmatmul.mubr.f32.gmra.mrb[0].mxu0 %v510
        %v1322 = vpop.f32.mrb[0].mxu0
        %v1323 = vadd.f32 0.0, %v1322
        %v1324 = vpop.f32.mrb[0].mxu0
        %1325 = vmatprep.mubr.f32.mxu0 0.0
        %1326 = vmatmul.mubr.f32.gmra.mrb[0].mxu0 %v511
        %v1327 = vpop.f32.mrb[0].mxu0
        %v1328 = vadd.f32 0.0, %v1327
        %v1329 = vpop.f32.mrb[0].mxu0
        %1330 = vdwg.mxu0
        %vm1363 = vcmask 1046528
        %v1364 = vrot.slane %v661, 1
        %v1365 = vrot.slane %v667, 1
        %v1366 = vsel %vm1363, %v1364, %v1365
        %v1367 = vrot.slane %v673, 1
        %v1368 = vsel %vm1363, %v1365, %v1367
        %v1369 = vrot.slane %v679, 1
        %v1370 = vsel %vm1363, %v1367, %v1369
        %v1371 = vrot.slane %v685, 1
        %v1372 = vrot.slane %v691, 1
        %v1373 = vsel %vm1363, %v1371, %v1372
        %v1374 = vrot.slane %v697, 1
        %v1375 = vsel %vm1363, %v1372, %v1374
        %v1376 = vrot.slane %v703, 1
        %v1377 = vsel %vm1363, %v1374, %v1376
        %v1378 = vrot.slane %v709, 1
        %v1379 = vrot.slane %v715, 1
        %v1380 = vsel %vm1363, %v1378, %v1379
        %v1381 = vrot.slane %v721, 1
        %v1382 = vsel %vm1363, %v1379, %v1381
        %v1383 = vrot.slane %v727, 1
        %v1384 = vsel %vm1363, %v1381, %v1383
        %v1385 = vrot.slane %v733, 1
        %v1386 = vrot.slane %v739, 1
        %v1387 = vsel %vm1363, %v1385, %v1386
        %v1388 = vrot.slane %v745, 1
        %v1389 = vsel %vm1363, %v1386, %v1388
        %v1390 = vrot.slane %v751, 1
        %v1391 = vsel %vm1363, %v1388, %v1390
        %v1392 = vrot.slane %v757, 1
        %v1393 = vrot.slane %v763, 1
        %v1394 = vsel %vm1363, %v1392, %v1393
        %v1395 = vrot.slane %v769, 1
        %v1396 = vsel %vm1363, %v1393, %v1395
        %v1397 = vrot.slane %v775, 1
        %v1398 = vsel %vm1363, %v1395, %v1397
        %v1399 = vrot.slane %v781, 1
        %v1400 = vrot.slane %v787, 1
        %v1401 = vsel %vm1363, %v1399, %v1400
        %v1402 = vrot.slane %v793, 1
        %v1403 = vsel %vm1363, %v1400, %v1402
        %v1404 = vrot.slane %v799, 1
        %v1405 = vsel %vm1363, %v1402, %v1404
        %v1406 = vrot.slane %v805, 1
        %v1407 = vrot.slane %v811, 1
        %v1408 = vsel %vm1363, %v1406, %v1407
        %v1409 = vrot.slane %v817, 1
        %v1410 = vsel %vm1363, %v1407, %v1409
        %v1411 = vrot.slane %v823, 1
        %v1412 = vsel %vm1363, %v1409, %v1411
        %v1413 = vrot.slane %v829, 1
        %v1414 = vrot.slane %v835, 1
        %v1415 = vsel %vm1363, %v1413, %v1414
        %v1416 = vrot.slane %v841, 1
        %v1417 = vsel %vm1363, %v1414, %v1416
        %v1418 = vrot.slane %v847, 1
        %v1419 = vsel %vm1363, %v1416, %v1418
        %v1452 = vadd.f32 %v659, %v1366
        %v1453 = vadd.f32 %v665, %v1368
        %v1454 = vadd.f32 %v671, %v1370
        %v1455 = vadd.f32 %v677, %v1369
        %v1456 = vadd.f32 %v683, %v1373
        %v1457 = vadd.f32 %v689, %v1375
        %v1458 = vadd.f32 %v695, %v1377
        %v1459 = vadd.f32 %v701, %v1376
        %v1460 = vadd.f32 %v707, %v1380
        %v1461 = vadd.f32 %v713, %v1382
        %v1462 = vadd.f32 %v719, %v1384
        %v1463 = vadd.f32 %v725, %v1383
        %v1464 = vadd.f32 %v731, %v1387
        %v1465 = vadd.f32 %v737, %v1389
        %v1466 = vadd.f32 %v743, %v1391
        %v1467 = vadd.f32 %v749, %v1390
        %v1468 = vadd.f32 %v755, %v1394
        %v1469 = vadd.f32 %v761, %v1396
        %v1470 = vadd.f32 %v767, %v1398
        %v1471 = vadd.f32 %v773, %v1397
        %v1472 = vadd.f32 %v779, %v1401
        %v1473 = vadd.f32 %v785, %v1403
        %v1474 = vadd.f32 %v791, %v1405
        %v1475 = vadd.f32 %v797, %v1404
        %v1476 = vadd.f32 %v803, %v1408
        %v1477 = vadd.f32 %v809, %v1410
        %v1478 = vadd.f32 %v815, %v1412
        %v1479 = vadd.f32 %v821, %v1411
        %v1480 = vadd.f32 %v827, %v1415
        %v1481 = vadd.f32 %v833, %v1417
        %v1482 = vadd.f32 %v839, %v1419
        %v1483 = vadd.f32 %v845, %v1418
        %vm1516 = vcmask 1045504
        %v1517 = vrot.slane %v916, 2
        %v1518 = vrot.slane %v922, 2
        %v1519 = vsel %vm1516, %v1517, %v1518
        %v1520 = vrot.slane %v928, 2
        %v1521 = vsel %vm1516, %v1518, %v1520
        %v1522 = vrot.slane %v934, 2
        %v1523 = vsel %vm1516, %v1520, %v1522
        %v1524 = vrot.slane %v940, 2
        %v1525 = vrot.slane %v946, 2
        %v1526 = vsel %vm1516, %v1524, %v1525
        %v1527 = vrot.slane %v952, 2
        %v1528 = vsel %vm1516, %v1525, %v1527
        %v1529 = vrot.slane %v958, 2
        %v1530 = vsel %vm1516, %v1527, %v1529
        %v1531 = vrot.slane %v964, 2
        %v1532 = vrot.slane %v970, 2
        %v1533 = vsel %vm1516, %v1531, %v1532
        %v1534 = vrot.slane %v976, 2
        %v1535 = vsel %vm1516, %v1532, %v1534
        %v1536 = vrot.slane %v982, 2
        %v1537 = vsel %vm1516, %v1534, %v1536
        %v1538 = vrot.slane %v988, 2
        %v1539 = vrot.slane %v994, 2
        %v1540 = vsel %vm1516, %v1538, %v1539
        %v1541 = vrot.slane %v1000, 2
        %v1542 = vsel %vm1516, %v1539, %v1541
        %v1543 = vrot.slane %v1006, 2
        %v1544 = vsel %vm1516, %v1541, %v1543
        %v1545 = vrot.slane %v1012, 2
        %v1546 = vrot.slane %v1018, 2
        %v1547 = vsel %vm1516, %v1545, %v1546
        %v1548 = vrot.slane %v1024, 2
        %v1549 = vsel %vm1516, %v1546, %v1548
        %v1550 = vrot.slane %v1030, 2
        %v1551 = vsel %vm1516, %v1548, %v1550
        %v1552 = vrot.slane %v1036, 2
        %v1553 = vrot.slane %v1042, 2
        %v1554 = vsel %vm1516, %v1552, %v1553
        %v1555 = vrot.slane %v1048, 2
        %v1556 = vsel %vm1516, %v1553, %v1555
        %v1557 = vrot.slane %v1054, 2
        %v1558 = vsel %vm1516, %v1555, %v1557
        %v1559 = vrot.slane %v1060, 2
        %v1560 = vrot.slane %v1066, 2
        %v1561 = vsel %vm1516, %v1559, %v1560
        %v1562 = vrot.slane %v1072, 2
        %v1563 = vsel %vm1516, %v1560, %v1562
        %v1564 = vrot.slane %v1078, 2
        %v1565 = vsel %vm1516, %v1562, %v1564
        %v1566 = vrot.slane %v1084, 2
        %v1567 = vrot.slane %v1090, 2
        %v1568 = vsel %vm1516, %v1566, %v1567
        %v1569 = vrot.slane %v1096, 2
        %v1570 = vsel %vm1516, %v1567, %v1569
        %v1571 = vrot.slane %v1102, 2
        %v1572 = vsel %vm1516, %v1569, %v1571
        %v1605 = vadd.f32 %v1452, %v1519
        %v1606 = vadd.f32 %v1453, %v1521
        %v1607 = vadd.f32 %v1454, %v1523
        %v1608 = vadd.f32 %v1455, %v1522
        %v1609 = vadd.f32 %v1456, %v1526
        %v1610 = vadd.f32 %v1457, %v1528
        %v1611 = vadd.f32 %v1458, %v1530
        %v1612 = vadd.f32 %v1459, %v1529
        %v1613 = vadd.f32 %v1460, %v1533
        %v1614 = vadd.f32 %v1461, %v1535
        %v1615 = vadd.f32 %v1462, %v1537
        %v1616 = vadd.f32 %v1463, %v1536
        %v1617 = vadd.f32 %v1464, %v1540
        %v1618 = vadd.f32 %v1465, %v1542
        %v1619 = vadd.f32 %v1466, %v1544
        %v1620 = vadd.f32 %v1467, %v1543
        %v1621 = vadd.f32 %v1468, %v1547
        %v1622 = vadd.f32 %v1469, %v1549
        %v1623 = vadd.f32 %v1470, %v1551
        %v1624 = vadd.f32 %v1471, %v1550
        %v1625 = vadd.f32 %v1472, %v1554
        %v1626 = vadd.f32 %v1473, %v1556
        %v1627 = vadd.f32 %v1474, %v1558
        %v1628 = vadd.f32 %v1475, %v1557
        %v1629 = vadd.f32 %v1476, %v1561
        %v1630 = vadd.f32 %v1477, %v1563
        %v1631 = vadd.f32 %v1478, %v1565
        %v1632 = vadd.f32 %v1479, %v1564
        %v1633 = vadd.f32 %v1480, %v1568
        %v1634 = vadd.f32 %v1481, %v1570
        %v1635 = vadd.f32 %v1482, %v1572
        %v1636 = vadd.f32 %v1483, %v1571
        %vm1669 = vcmask 1044480
        %v1670 = vrot.slane %v918, 3
        %v1671 = vrot.slane %v924, 3
        %v1672 = vsel %vm1669, %v1670, %v1671
        %v1673 = vrot.slane %v930, 3
        %v1674 = vsel %vm1669, %v1671, %v1673
        %v1675 = vrot.slane %v936, 3
        %v1676 = vsel %vm1669, %v1673, %v1675
        %v1677 = vrot.slane %v942, 3
        %v1678 = vrot.slane %v948, 3
        %v1679 = vsel %vm1669, %v1677, %v1678
        %v1680 = vrot.slane %v954, 3
        %v1681 = vsel %vm1669, %v1678, %v1680
        %v1682 = vrot.slane %v960, 3
        %v1683 = vsel %vm1669, %v1680, %v1682
        %v1684 = vrot.slane %v966, 3
        %v1685 = vrot.slane %v972, 3
        %v1686 = vsel %vm1669, %v1684, %v1685
        %v1687 = vrot.slane %v978, 3
        %v1688 = vsel %vm1669, %v1685, %v1687
        %v1689 = vrot.slane %v984, 3
        %v1690 = vsel %vm1669, %v1687, %v1689
        %v1691 = vrot.slane %v990, 3
        %v1692 = vrot.slane %v996, 3
        %v1693 = vsel %vm1669, %v1691, %v1692
        %v1694 = vrot.slane %v1002, 3
        %v1695 = vsel %vm1669, %v1692, %v1694
        %v1696 = vrot.slane %v1008, 3
        %v1697 = vsel %vm1669, %v1694, %v1696
        %v1698 = vrot.slane %v1014, 3
        %v1699 = vrot.slane %v1020, 3
        %v1700 = vsel %vm1669, %v1698, %v1699
        %v1701 = vrot.slane %v1026, 3
        %v1702 = vsel %vm1669, %v1699, %v1701
        %v1703 = vrot.slane %v1032, 3
        %v1704 = vsel %vm1669, %v1701, %v1703
        %v1705 = vrot.slane %v1038, 3
        %v1706 = vrot.slane %v1044, 3
        %v1707 = vsel %vm1669, %v1705, %v1706
        %v1708 = vrot.slane %v1050, 3
        %v1709 = vsel %vm1669, %v1706, %v1708
        %v1710 = vrot.slane %v1056, 3
        %v1711 = vsel %vm1669, %v1708, %v1710
        %v1712 = vrot.slane %v1062, 3
        %v1713 = vrot.slane %v1068, 3
        %v1714 = vsel %vm1669, %v1712, %v1713
        %v1715 = vrot.slane %v1074, 3
        %v1716 = vsel %vm1669, %v1713, %v1715
        %v1717 = vrot.slane %v1080, 3
        %v1718 = vsel %vm1669, %v1715, %v1717
        %v1719 = vrot.slane %v1086, 3
        %v1720 = vrot.slane %v1092, 3
        %v1721 = vsel %vm1669, %v1719, %v1720
        %v1722 = vrot.slane %v1098, 3
        %v1723 = vsel %vm1669, %v1720, %v1722
        %v1724 = vrot.slane %v1104, 3
        %v1725 = vsel %vm1669, %v1722, %v1724
        %v1758 = vadd.f32 %v1605, %v1672
        %v1759 = vadd.f32 %v1606, %v1674
        %v1760 = vadd.f32 %v1607, %v1676
        %v1761 = vadd.f32 %v1608, %v1675
        %v1762 = vadd.f32 %v1609, %v1679
        %v1763 = vadd.f32 %v1610, %v1681
        %v1764 = vadd.f32 %v1611, %v1683
        %v1765 = vadd.f32 %v1612, %v1682
        %v1766 = vadd.f32 %v1613, %v1686
        %v1767 = vadd.f32 %v1614, %v1688
        %v1768 = vadd.f32 %v1615, %v1690
        %v1769 = vadd.f32 %v1616, %v1689
        %v1770 = vadd.f32 %v1617, %v1693
        %v1771 = vadd.f32 %v1618, %v1695
        %v1772 = vadd.f32 %v1619, %v1697
        %v1773 = vadd.f32 %v1620, %v1696
        %v1774 = vadd.f32 %v1621, %v1700
        %v1775 = vadd.f32 %v1622, %v1702
        %v1776 = vadd.f32 %v1623, %v1704
        %v1777 = vadd.f32 %v1624, %v1703
        %v1778 = vadd.f32 %v1625, %v1707
        %v1779 = vadd.f32 %v1626, %v1709
        %v1780 = vadd.f32 %v1627, %v1711
        %v1781 = vadd.f32 %v1628, %v1710
        %v1782 = vadd.f32 %v1629, %v1714
        %v1783 = vadd.f32 %v1630, %v1716
        %v1784 = vadd.f32 %v1631, %v1718
        %v1785 = vadd.f32 %v1632, %v1717
        %v1786 = vadd.f32 %v1633, %v1721
        %v1787 = vadd.f32 %v1634, %v1723
        %v1788 = vadd.f32 %v1635, %v1725
        %v1789 = vadd.f32 %v1636, %v1724
        %vm1822 = vcmask 1043456
        %v1823 = vrot.slane %v1173, 4
        %v1824 = vrot.slane %v1178, 4
        %v1825 = vsel %vm1822, %v1823, %v1824
        %v1826 = vrot.slane %v1183, 4
        %v1827 = vsel %vm1822, %v1824, %v1826
        %v1828 = vrot.slane %v1188, 4
        %v1829 = vsel %vm1822, %v1826, %v1828
        %v1830 = vrot.slane %v1193, 4
        %v1831 = vrot.slane %v1198, 4
        %v1832 = vsel %vm1822, %v1830, %v1831
        %v1833 = vrot.slane %v1203, 4
        %v1834 = vsel %vm1822, %v1831, %v1833
        %v1835 = vrot.slane %v1208, 4
        %v1836 = vsel %vm1822, %v1833, %v1835
        %v1837 = vrot.slane %v1213, 4
        %v1838 = vrot.slane %v1218, 4
        %v1839 = vsel %vm1822, %v1837, %v1838
        %v1840 = vrot.slane %v1223, 4
        %v1841 = vsel %vm1822, %v1838, %v1840
        %v1842 = vrot.slane %v1228, 4
        %v1843 = vsel %vm1822, %v1840, %v1842
        %v1844 = vrot.slane %v1233, 4
        %v1845 = vrot.slane %v1238, 4
        %v1846 = vsel %vm1822, %v1844, %v1845
        %v1847 = vrot.slane %v1243, 4
        %v1848 = vsel %vm1822, %v1845, %v1847
        %v1849 = vrot.slane %v1248, 4
        %v1850 = vsel %vm1822, %v1847, %v1849
        %v1851 = vrot.slane %v1253, 4
        %v1852 = vrot.slane %v1258, 4
        %v1853 = vsel %vm1822, %v1851, %v1852
        %v1854 = vrot.slane %v1263, 4
        %v1855 = vsel %vm1822, %v1852, %v1854
        %v1856 = vrot.slane %v1268, 4
        %v1857 = vsel %vm1822, %v1854, %v1856
        %v1858 = vrot.slane %v1273, 4
        %v1859 = vrot.slane %v1278, 4
        %v1860 = vsel %vm1822, %v1858, %v1859
        %v1861 = vrot.slane %v1283, 4
        %v1862 = vsel %vm1822, %v1859, %v1861
        %v1863 = vrot.slane %v1288, 4
        %v1864 = vsel %vm1822, %v1861, %v1863
        %v1865 = vrot.slane %v1293, 4
        %v1866 = vrot.slane %v1298, 4
        %v1867 = vsel %vm1822, %v1865, %v1866
        %v1868 = vrot.slane %v1303, 4
        %v1869 = vsel %vm1822, %v1866, %v1868
        %v1870 = vrot.slane %v1308, 4
        %v1871 = vsel %vm1822, %v1868, %v1870
        %v1872 = vrot.slane %v1313, 4
        %v1873 = vrot.slane %v1318, 4
        %v1874 = vsel %vm1822, %v1872, %v1873
        %v1875 = vrot.slane %v1323, 4
        %v1876 = vsel %vm1822, %v1873, %v1875
        %v1877 = vrot.slane %v1328, 4
        %v1878 = vsel %vm1822, %v1875, %v1877
        %v1911 = vadd.f32 %v1758, %v1825
        %v1912 = vadd.f32 %v1759, %v1827
        %v1913 = vadd.f32 %v1760, %v1829
        %v1914 = vadd.f32 %v1761, %v1828
        %v1915 = vadd.f32 %v1762, %v1832
        %v1916 = vadd.f32 %v1763, %v1834
        %v1917 = vadd.f32 %v1764, %v1836
        %v1918 = vadd.f32 %v1765, %v1835
        %v1919 = vadd.f32 %v1766, %v1839
        %v1920 = vadd.f32 %v1767, %v1841
        %v1921 = vadd.f32 %v1768, %v1843
        %v1922 = vadd.f32 %v1769, %v1842
        %v1923 = vadd.f32 %v1770, %v1846
        %v1924 = vadd.f32 %v1771, %v1848
        %v1925 = vadd.f32 %v1772, %v1850
        %v1926 = vadd.f32 %v1773, %v1849
        %v1927 = vadd.f32 %v1774, %v1853
        %v1928 = vadd.f32 %v1775, %v1855
        %v1929 = vadd.f32 %v1776, %v1857
        %v1930 = vadd.f32 %v1777, %v1856
        %v1931 = vadd.f32 %v1778, %v1860
        %v1932 = vadd.f32 %v1779, %v1862
        %v1933 = vadd.f32 %v1780, %v1864
        %v1934 = vadd.f32 %v1781, %v1863
        %v1935 = vadd.f32 %v1782, %v1867
        %v1936 = vadd.f32 %v1783, %v1869
        %v1937 = vadd.f32 %v1784, %v1871
        %v1938 = vadd.f32 %v1785, %v1870
        %v1939 = vadd.f32 %v1786, %v1874
        %v1940 = vadd.f32 %v1787, %v1876
        %v1941 = vadd.f32 %v1788, %v1878
        %v1942 = vadd.f32 %v1789, %v1877
        %v1943 = vld [vmem:[%s2] sm:$0x1]
        %v1945 = vlaneseq
        %v1946 = vshrl.u32 %v1945, 7
        %v1947 = vsub.s32 0, %v1946
        %v1948 = vrot.slane %v1943, %v1947
        %v1950 = vadd.f32 %v1911, %v1948
        %v1951 = vadd.f32 %v1912, %v1948
        %v1952 = vadd.f32 %v1913, %v1948
        %v1953 = vadd.f32 %v1914, %v1948
        %v1954 = vadd.f32 %v1915, %v1948
        %v1955 = vadd.f32 %v1916, %v1948
        %v1956 = vadd.f32 %v1917, %v1948
        %v1957 = vadd.f32 %v1918, %v1948
        %v1958 = vadd.f32 %v1919, %v1948
        %v1959 = vadd.f32 %v1920, %v1948
        %v1960 = vadd.f32 %v1921, %v1948
        %v1961 = vadd.f32 %v1922, %v1948
        %v1962 = vadd.f32 %v1923, %v1948
        %v1963 = vadd.f32 %v1924, %v1948
        %v1964 = vadd.f32 %v1925, %v1948
        %v1965 = vadd.f32 %v1926, %v1948
        %v1966 = vadd.f32 %v1927, %v1948
        %v1967 = vadd.f32 %v1928, %v1948
        %v1968 = vadd.f32 %v1929, %v1948
        %v1969 = vadd.f32 %v1930, %v1948
        %v1970 = vadd.f32 %v1931, %v1948
        %v1971 = vadd.f32 %v1932, %v1948
        %v1972 = vadd.f32 %v1933, %v1948
        %v1973 = vadd.f32 %v1934, %v1948
        %v1974 = vadd.f32 %v1935, %v1948
        %v1975 = vadd.f32 %v1936, %v1948
        %v1976 = vadd.f32 %v1937, %v1948
        %v1977 = vadd.f32 %v1938, %v1948
        %v1978 = vadd.f32 %v1939, %v1948
        %v1979 = vadd.f32 %v1940, %v1948
        %v1980 = vadd.f32 %v1941, %v1948
        %v1981 = vadd.f32 %v1942, %v1948
        %v1982 = vmax.f32 %v1950, 0.0
        %v1983 = vmax.f32 %v1951, 0.0
        %v1984 = vmax.f32 %v1952, 0.0
        %v1985 = vmax.f32 %v1953, 0.0
        %v1986 = vmax.f32 %v1954, 0.0
        %v1987 = vmax.f32 %v1955, 0.0
        %v1988 = vmax.f32 %v1956, 0.0
        %v1989 = vmax.f32 %v1957, 0.0
        %v1990 = vmax.f32 %v1958, 0.0
        %v1991 = vmax.f32 %v1959, 0.0
        %v1992 = vmax.f32 %v1960, 0.0
        %v1993 = vmax.f32 %v1961, 0.0
        %v1994 = vmax.f32 %v1962, 0.0
        %v1995 = vmax.f32 %v1963, 0.0
        %v1996 = vmax.f32 %v1964, 0.0
        %v1997 = vmax.f32 %v1965, 0.0
        %v1998 = vmax.f32 %v1966, 0.0
        %v1999 = vmax.f32 %v1967, 0.0
        %v2000 = vmax.f32 %v1968, 0.0
        %v2001 = vmax.f32 %v1969, 0.0
        %v2002 = vmax.f32 %v1970, 0.0
        %v2003 = vmax.f32 %v1971, 0.0
        %v2004 = vmax.f32 %v1972, 0.0
        %v2005 = vmax.f32 %v1973, 0.0
        %v2006 = vmax.f32 %v1974, 0.0
        %v2007 = vmax.f32 %v1975, 0.0
        %v2008 = vmax.f32 %v1976, 0.0
        %v2009 = vmax.f32 %v1977, 0.0
        %v2010 = vmax.f32 %v1978, 0.0
        %v2011 = vmax.f32 %v1979, 0.0
        %v2012 = vmax.f32 %v1980, 0.0
        %v2013 = vmax.f32 %v1981, 0.0
        %v2046 = vrot.slane %v1982, 1
        %v2047 = vrot.slane %v1983, 1
        %v2048 = vsel %vm1363, %v2046, %v2047
        %v2049 = vrot.slane %v1984, 1
        %v2050 = vsel %vm1363, %v2047, %v2049
        %v2051 = vrot.slane %v1985, 1
        %v2052 = vsel %vm1363, %v2049, %v2051
        %v2053 = vrot.slane %v1986, 1
        %v2054 = vrot.slane %v1987, 1
        %v2055 = vsel %vm1363, %v2053, %v2054
        %v2056 = vrot.slane %v1988, 1
        %v2057 = vsel %vm1363, %v2054, %v2056
        %v2058 = vrot.slane %v1989, 1
        %v2059 = vsel %vm1363, %v2056, %v2058
        %v2060 = vrot.slane %v1990, 1
        %v2061 = vrot.slane %v1991, 1
        %v2062 = vsel %vm1363, %v2060, %v2061
        %v2063 = vrot.slane %v1992, 1
        %v2064 = vsel %vm1363, %v2061, %v2063
        %v2065 = vrot.slane %v1993, 1
        %v2066 = vsel %vm1363, %v2063, %v2065
        %v2067 = vrot.slane %v1994, 1
        %v2068 = vrot.slane %v1995, 1
        %v2069 = vsel %vm1363, %v2067, %v2068
        %v2070 = vrot.slane %v1996, 1
        %v2071 = vsel %vm1363, %v2068, %v2070
        %v2072 = vrot.slane %v1997, 1
        %v2073 = vsel %vm1363, %v2070, %v2072
        %v2074 = vrot.slane %v1998, 1
        %v2075 = vrot.slane %v1999, 1
        %v2076 = vsel %vm1363, %v2074, %v2075
        %v2077 = vrot.slane %v2000, 1
        %v2078 = vsel %vm1363, %v2075, %v2077
        %v2079 = vrot.slane %v2001, 1
        %v2080 = vsel %vm1363, %v2077, %v2079
        %v2081 = vrot.slane %v2002, 1
        %v2082 = vrot.slane %v2003, 1
        %v2083 = vsel %vm1363, %v2081, %v2082
        %v2084 = vrot.slane %v2004, 1
        %v2085 = vsel %vm1363, %v2082, %v2084
        %v2086 = vrot.slane %v2005, 1
        %v2087 = vsel %vm1363, %v2084, %v2086
        %v2088 = vrot.slane %v2006, 1
        %v2089 = vrot.slane %v2007, 1
        %v2090 = vsel %vm1363, %v2088, %v2089
        %v2091 = vrot.slane %v2008, 1
        %v2092 = vsel %vm1363, %v2089, %v2091
        %v2093 = vrot.slane %v2009, 1
        %v2094 = vsel %vm1363, %v2091, %v2093
        %v2095 = vrot.slane %v2010, 1
        %v2096 = vrot.slane %v2011, 1
        %v2097 = vsel %vm1363, %v2095, %v2096
        %v2098 = vrot.slane %v2012, 1
        %v2099 = vsel %vm1363, %v2096, %v2098
        %v2100 = vrot.slane %v2013, 1
        %v2101 = vsel %vm1363, %v2098, %v2100
        %v2126 = vmax.f32 %v1982, %v2048
        %v2127 = vmax.f32 %v1983, %v2050
        %v2128 = vmax.f32 %v1984, %v2052
        %v2129 = vmax.f32 %v1986, %v2055
        %v2130 = vmax.f32 %v1987, %v2057
        %v2131 = vmax.f32 %v1988, %v2059
        %v2132 = vmax.f32 %v1990, %v2062
        %v2133 = vmax.f32 %v1991, %v2064
        %v2134 = vmax.f32 %v1992, %v2066
        %v2135 = vmax.f32 %v1994, %v2069
        %v2136 = vmax.f32 %v1995, %v2071
        %v2137 = vmax.f32 %v1996, %v2073
        %v2138 = vmax.f32 %v1998, %v2076
        %v2139 = vmax.f32 %v1999, %v2078
        %v2140 = vmax.f32 %v2000, %v2080
        %v2141 = vmax.f32 %v2002, %v2083
        %v2142 = vmax.f32 %v2003, %v2085
        %v2143 = vmax.f32 %v2004, %v2087
        %v2144 = vmax.f32 %v2006, %v2090
        %v2145 = vmax.f32 %v2007, %v2092
        %v2146 = vmax.f32 %v2008, %v2094
        %v2147 = vmax.f32 %v2010, %v2097
        %v2148 = vmax.f32 %v2011, %v2099
        %v2149 = vmax.f32 %v2012, %v2101
        %v2150 = vrot.slane %v1982, 2
        %v2151 = vrot.slane %v1983, 2
        %v2152 = vsel %vm1516, %v2150, %v2151
        %v2153 = vrot.slane %v1984, 2
        %v2154 = vsel %vm1516, %v2151, %v2153
        %v2155 = vrot.slane %v1985, 2
        %v2156 = vsel %vm1516, %v2153, %v2155
        %v2157 = vrot.slane %v1986, 2
        %v2158 = vrot.slane %v1987, 2
        %v2159 = vsel %vm1516, %v2157, %v2158
        %v2160 = vrot.slane %v1988, 2
        %v2161 = vsel %vm1516, %v2158, %v2160
        %v2162 = vrot.slane %v1989, 2
        %v2163 = vsel %vm1516, %v2160, %v2162
        %v2164 = vrot.slane %v1990, 2
        %v2165 = vrot.slane %v1991, 2
        %v2166 = vsel %vm1516, %v2164, %v2165
        %v2167 = vrot.slane %v1992, 2
        %v2168 = vsel %vm1516, %v2165, %v2167
        %v2169 = vrot.slane %v1993, 2
        %v2170 = vsel %vm1516, %v2167, %v2169
        %v2171 = vrot.slane %v1994, 2
        %v2172 = vrot.slane %v1995, 2
        %v2173 = vsel %vm1516, %v2171, %v2172
        %v2174 = vrot.slane %v1996, 2
        %v2175 = vsel %vm1516, %v2172, %v2174
        %v2176 = vrot.slane %v1997, 2
        %v2177 = vsel %vm1516, %v2174, %v2176
        %v2178 = vrot.slane %v1998, 2
        %v2179 = vrot.slane %v1999, 2
        %v2180 = vsel %vm1516, %v2178, %v2179
        %v2181 = vrot.slane %v2000, 2
        %v2182 = vsel %vm1516, %v2179, %v2181
        %v2183 = vrot.slane %v2001, 2
        %v2184 = vsel %vm1516, %v2181, %v2183
        %v2185 = vrot.slane %v2002, 2
        %v2186 = vrot.slane %v2003, 2
        %v2187 = vsel %vm1516, %v2185, %v2186
        %v2188 = vrot.slane %v2004, 2
        %v2189 = vsel %vm1516, %v2186, %v2188
        %v2190 = vrot.slane %v2005, 2
        %v2191 = vsel %vm1516, %v2188, %v2190
        %v2192 = vrot.slane %v2006, 2
        %v2193 = vrot.slane %v2007, 2
        %v2194 = vsel %vm1516, %v2192, %v2193
        %v2195 = vrot.slane %v2008, 2
        %v2196 = vsel %vm1516, %v2193, %v2195
        %v2197 = vrot.slane %v2009, 2
        %v2198 = vsel %vm1516, %v2195, %v2197
        %v2199 = vrot.slane %v2010, 2
        %v2200 = vrot.slane %v2011, 2
        %v2201 = vsel %vm1516, %v2199, %v2200
        %v2202 = vrot.slane %v2012, 2
        %v2203 = vsel %vm1516, %v2200, %v2202
        %v2204 = vrot.slane %v2013, 2
        %v2205 = vsel %vm1516, %v2202, %v2204
        %v2230 = vmax.f32 %v2126, %v2152
        %v2231 = vmax.f32 %v2127, %v2154
        %v2232 = vmax.f32 %v2128, %v2156
        %v2233 = vmax.f32 %v2129, %v2159
        %v2234 = vmax.f32 %v2130, %v2161
        %v2235 = vmax.f32 %v2131, %v2163
        %v2236 = vmax.f32 %v2132, %v2166
        %v2237 = vmax.f32 %v2133, %v2168
        %v2238 = vmax.f32 %v2134, %v2170
        %v2239 = vmax.f32 %v2135, %v2173
        %v2240 = vmax.f32 %v2136, %v2175
        %v2241 = vmax.f32 %v2137, %v2177
        %v2242 = vmax.f32 %v2138, %v2180
        %v2243 = vmax.f32 %v2139, %v2182
        %v2244 = vmax.f32 %v2140, %v2184
        %v2245 = vmax.f32 %v2141, %v2187
        %v2246 = vmax.f32 %v2142, %v2189
        %v2247 = vmax.f32 %v2143, %v2191
        %v2248 = vmax.f32 %v2144, %v2194
        %v2249 = vmax.f32 %v2145, %v2196
        %v2250 = vmax.f32 %v2146, %v2198
        %v2251 = vmax.f32 %v2147, %v2201
        %v2252 = vmax.f32 %v2148, %v2203
        %v2253 = vmax.f32 %v2149, %v2205
        %v2254 = vrot.slane %v1982, 3
        %v2255 = vrot.slane %v1983, 3
        %v2256 = vsel %vm1669, %v2254, %v2255
        %v2257 = vrot.slane %v1984, 3
        %v2258 = vsel %vm1669, %v2255, %v2257
        %v2259 = vrot.slane %v1985, 3
        %v2260 = vsel %vm1669, %v2257, %v2259
        %v2261 = vrot.slane %v1986, 3
        %v2262 = vrot.slane %v1987, 3
        %v2263 = vsel %vm1669, %v2261, %v2262
        %v2264 = vrot.slane %v1988, 3
        %v2265 = vsel %vm1669, %v2262, %v2264
        %v2266 = vrot.slane %v1989, 3
        %v2267 = vsel %vm1669, %v2264, %v2266
        %v2268 = vrot.slane %v1990, 3
        %v2269 = vrot.slane %v1991, 3
        %v2270 = vsel %vm1669, %v2268, %v2269
        %v2271 = vrot.slane %v1992, 3
        %v2272 = vsel %vm1669, %v2269, %v2271
        %v2273 = vrot.slane %v1993, 3
        %v2274 = vsel %vm1669, %v2271, %v2273
        %v2275 = vrot.slane %v1994, 3
        %v2276 = vrot.slane %v1995, 3
        %v2277 = vsel %vm1669, %v2275, %v2276
        %v2278 = vrot.slane %v1996, 3
        %v2279 = vsel %vm1669, %v2276, %v2278
        %v2280 = vrot.slane %v1997, 3
        %v2281 = vsel %vm1669, %v2278, %v2280
        %v2282 = vrot.slane %v1998, 3
        %v2283 = vrot.slane %v1999, 3
        %v2284 = vsel %vm1669, %v2282, %v2283
        %v2285 = vrot.slane %v2000, 3
        %v2286 = vsel %vm1669, %v2283, %v2285
        %v2287 = vrot.slane %v2001, 3
        %v2288 = vsel %vm1669, %v2285, %v2287
        %v2289 = vrot.slane %v2002, 3
        %v2290 = vrot.slane %v2003, 3
        %v2291 = vsel %vm1669, %v2289, %v2290
        %v2292 = vrot.slane %v2004, 3
        %v2293 = vsel %vm1669, %v2290, %v2292
        %v2294 = vrot.slane %v2005, 3
        %v2295 = vsel %vm1669, %v2292, %v2294
        %v2296 = vrot.slane %v2006, 3
        %v2297 = vrot.slane %v2007, 3
        %v2298 = vsel %vm1669, %v2296, %v2297
        %v2299 = vrot.slane %v2008, 3
        %v2300 = vsel %vm1669, %v2297, %v2299
        %v2301 = vrot.slane %v2009, 3
        %v2302 = vsel %vm1669, %v2299, %v2301
        %v2303 = vrot.slane %v2010, 3
        %v2304 = vrot.slane %v2011, 3
        %v2305 = vsel %vm1669, %v2303, %v2304
        %v2306 = vrot.slane %v2012, 3
        %v2307 = vsel %vm1669, %v2304, %v2306
        %v2308 = vrot.slane %v2013, 3
        %v2309 = vsel %vm1669, %v2306, %v2308
        %v2334 = vmax.f32 %v2230, %v2256
        %v2335 = vmax.f32 %v2231, %v2258
        %v2336 = vmax.f32 %v2232, %v2260
        %v2337 = vmax.f32 %v2233, %v2263
        %v2338 = vmax.f32 %v2234, %v2265
        %v2339 = vmax.f32 %v2235, %v2267
        %v2340 = vmax.f32 %v2236, %v2270
        %v2341 = vmax.f32 %v2237, %v2272
        %v2342 = vmax.f32 %v2238, %v2274
        %v2343 = vmax.f32 %v2239, %v2277
        %v2344 = vmax.f32 %v2240, %v2279
        %v2345 = vmax.f32 %v2241, %v2281
        %v2346 = vmax.f32 %v2242, %v2284
        %v2347 = vmax.f32 %v2243, %v2286
        %v2348 = vmax.f32 %v2244, %v2288
        %v2349 = vmax.f32 %v2245, %v2291
        %v2350 = vmax.f32 %v2246, %v2293
        %v2351 = vmax.f32 %v2247, %v2295
        %v2352 = vmax.f32 %v2248, %v2298
        %v2353 = vmax.f32 %v2249, %v2300
        %v2354 = vmax.f32 %v2250, %v2302
        %v2355 = vmax.f32 %v2251, %v2305
        %v2356 = vmax.f32 %v2252, %v2307
        %v2357 = vmax.f32 %v2253, %v2309
        %v2358 = vrot.slane %v1982, 4
        %v2359 = vrot.slane %v1983, 4
        %v2360 = vsel %vm1822, %v2358, %v2359
        %v2361 = vrot.slane %v1984, 4
        %v2362 = vsel %vm1822, %v2359, %v2361
        %v2363 = vrot.slane %v1985, 4
        %v2364 = vsel %vm1822, %v2361, %v2363
        %v2365 = vrot.slane %v1986, 4
        %v2366 = vrot.slane %v1987, 4
        %v2367 = vsel %vm1822, %v2365, %v2366
        %v2368 = vrot.slane %v1988, 4
        %v2369 = vsel %vm1822, %v2366, %v2368
        %v2370 = vrot.slane %v1989, 4
        %v2371 = vsel %vm1822, %v2368, %v2370
        %v2372 = vrot.slane %v1990, 4
        %v2373 = vrot.slane %v1991, 4
        %v2374 = vsel %vm1822, %v2372, %v2373
        %v2375 = vrot.slane %v1992, 4
        %v2376 = vsel %vm1822, %v2373, %v2375
        %v2377 = vrot.slane %v1993, 4
        %v2378 = vsel %vm1822, %v2375, %v2377
        %v2379 = vrot.slane %v1994, 4
        %v2380 = vrot.slane %v1995, 4
        %v2381 = vsel %vm1822, %v2379, %v2380
        %v2382 = vrot.slane %v1996, 4
        %v2383 = vsel %vm1822, %v2380, %v2382
        %v2384 = vrot.slane %v1997, 4
        %v2385 = vsel %vm1822, %v2382, %v2384
        %v2386 = vrot.slane %v1998, 4
        %v2387 = vrot.slane %v1999, 4
        %v2388 = vsel %vm1822, %v2386, %v2387
        %v2389 = vrot.slane %v2000, 4
        %v2390 = vsel %vm1822, %v2387, %v2389
        %v2391 = vrot.slane %v2001, 4
        %v2392 = vsel %vm1822, %v2389, %v2391
        %v2393 = vrot.slane %v2002, 4
        %v2394 = vrot.slane %v2003, 4
        %v2395 = vsel %vm1822, %v2393, %v2394
        %v2396 = vrot.slane %v2004, 4
        %v2397 = vsel %vm1822, %v2394, %v2396
        %v2398 = vrot.slane %v2005, 4
        %v2399 = vsel %vm1822, %v2396, %v2398
        %v2400 = vrot.slane %v2006, 4
        %v2401 = vrot.slane %v2007, 4
        %v2402 = vsel %vm1822, %v2400, %v2401
        %v2403 = vrot.slane %v2008, 4
        %v2404 = vsel %vm1822, %v2401, %v2403
        %v2405 = vrot.slane %v2009, 4
        %v2406 = vsel %vm1822, %v2403, %v2405
        %v2407 = vrot.slane %v2010, 4
        %v2408 = vrot.slane %v2011, 4
        %v2409 = vsel %vm1822, %v2407, %v2408
        %v2410 = vrot.slane %v2012, 4
        %v2411 = vsel %vm1822, %v2408, %v2410
        %v2412 = vrot.slane %v2013, 4
        %v2413 = vsel %vm1822, %v2410, %v2412
        %v2438 = vmax.f32 %v2334, %v2360
        %v2439 = vmax.f32 %v2335, %v2362
        %v2440 = vmax.f32 %v2336, %v2364
        %v2441 = vmax.f32 %v2337, %v2367
        %v2442 = vmax.f32 %v2338, %v2369
        %v2443 = vmax.f32 %v2339, %v2371
        %v2444 = vmax.f32 %v2340, %v2374
        %v2445 = vmax.f32 %v2341, %v2376
        %v2446 = vmax.f32 %v2342, %v2378
        %v2447 = vmax.f32 %v2343, %v2381
        %v2448 = vmax.f32 %v2344, %v2383
        %v2449 = vmax.f32 %v2345, %v2385
        %v2450 = vmax.f32 %v2346, %v2388
        %v2451 = vmax.f32 %v2347, %v2390
        %v2452 = vmax.f32 %v2348, %v2392
        %v2453 = vmax.f32 %v2349, %v2395
        %v2454 = vmax.f32 %v2350, %v2397
        %v2455 = vmax.f32 %v2351, %v2399
        %v2456 = vmax.f32 %v2352, %v2402
        %v2457 = vmax.f32 %v2353, %v2404
        %v2458 = vmax.f32 %v2354, %v2406
        %v2459 = vmax.f32 %v2355, %v2409
        %v2460 = vmax.f32 %v2356, %v2411
        %v2461 = vmax.f32 %v2357, %v2413
        %v2462 = vld [vmem:[#allocation7] sm:$0xff]
        %v2463 = vld [vmem:[#allocation7 + $0x8] sm:$0xff]
        %v2464 = vld [vmem:[#allocation7 + $0x10] sm:$0xff]
        %v2465 = vld [vmem:[#allocation7 + $0x18] sm:$0xff]
        %v2466 = vld [vmem:[#allocation7 + $0x20] sm:$0xff]
        %v2467 = vld [vmem:[#allocation7 + $0x28] sm:$0xff]
        %v2468 = vld [vmem:[#allocation7 + $0x30] sm:$0xff]
        %v2469 = vld [vmem:[#allocation7 + $0x38] sm:$0xff]
        %v2470 = vld [vmem:[#allocation7 + $0x40] sm:$0xff]
        %v2471 = vld [vmem:[#allocation7 + $0x48] sm:$0xff]
        %v2472 = vld [vmem:[#allocation7 + $0x50] sm:$0xff]
        %v2473 = vld [vmem:[#allocation7 + $0x58] sm:$0xff]
        %v2474 = vld [vmem:[#allocation7 + $0x60] sm:$0xff]
        %v2475 = vld [vmem:[#allocation7 + $0x68] sm:$0xff]
        %v2476 = vld [vmem:[#allocation7 + $0x70] sm:$0xff]
        %v2477 = vld [vmem:[#allocation7 + $0x78] sm:$0xff]
        %v2478 = vld [vmem:[#allocation7 + $0x80] sm:$0xff]
        %v2479 = vld [vmem:[#allocation7 + $0x88] sm:$0xff]
        %v2480 = vld [vmem:[#allocation7 + $0x90] sm:$0xff]
        %v2481 = vld [vmem:[#allocation7 + $0x98] sm:$0xff]
        %v2482 = vld [vmem:[#allocation7 + $0xa0] sm:$0xff]
        %v2483 = vld [vmem:[#allocation7 + $0xa8] sm:$0xff]
        %v2484 = vld [vmem:[#allocation7 + $0xb0] sm:$0xff]
        %v2485 = vld [vmem:[#allocation7 + $0xb8] sm:$0xff]
        %v2486 = vld [vmem:[#allocation7 + $0xc0] sm:$0xff]
        %v2487 = vld [vmem:[#allocation7 + $0xc8] sm:$0xff]
        %v2488 = vld [vmem:[#allocation7 + $0xd0] sm:$0xff]
        %v2489 = vld [vmem:[#allocation7 + $0xd8] sm:$0xff]
        %v2490 = vld [vmem:[#allocation7 + $0xe0] sm:$0xff]
        %v2491 = vld [vmem:[#allocation7 + $0xe8] sm:$0xff]
        %v2492 = vld [vmem:[#allocation7 + $0xf0] sm:$0xff]
        %v2493 = vld [vmem:[#allocation7 + $0xf8] sm:$0xff]
        %v2494 = vld [vmem:[#allocation7 + $0x100] sm:$0xff]
        %v2495 = vld [vmem:[#allocation7 + $0x108] sm:$0xff]
        %v2496 = vld [vmem:[#allocation7 + $0x110] sm:$0xff]
        %v2497 = vld [vmem:[#allocation7 + $0x118] sm:$0xff]
        %v2498 = vld [vmem:[#allocation7 + $0x120] sm:$0xff]
        %v2499 = vld [vmem:[#allocation7 + $0x128] sm:$0xff]
        %v2500 = vld [vmem:[#allocation7 + $0x130] sm:$0xff]
        %v2501 = vld [vmem:[#allocation7 + $0x138] sm:$0xff]
        %v2502 = vld [vmem:[#allocation7 + $0x140] sm:$0xff]
        %v2503 = vld [vmem:[#allocation7 + $0x148] sm:$0xff]
        %v2504 = vld [vmem:[#allocation7 + $0x150] sm:$0xff]
        %v2505 = vld [vmem:[#allocation7 + $0x158] sm:$0xff]
        %v2506 = vld [vmem:[#allocation7 + $0x160] sm:$0xff]
        %v2507 = vld [vmem:[#allocation7 + $0x168] sm:$0xff]
        %v2508 = vld [vmem:[#allocation7 + $0x170] sm:$0xff]
        %v2509 = vld [vmem:[#allocation7 + $0x178] sm:$0xff]
        %v2510 = vld [vmem:[#allocation7 + $0x180] sm:$0xff]
        %v2511 = vld [vmem:[#allocation7 + $0x188] sm:$0xff]
        %v2512 = vld [vmem:[#allocation7 + $0x190] sm:$0xff]
        %v2513 = vld [vmem:[#allocation7 + $0x198] sm:$0xff]
        %v2514 = vld [vmem:[#allocation7 + $0x1a0] sm:$0xff]
        %v2515 = vld [vmem:[#allocation7 + $0x1a8] sm:$0xff]
        %v2516 = vld [vmem:[#allocation7 + $0x1b0] sm:$0xff]
        %v2517 = vld [vmem:[#allocation7 + $0x1b8] sm:$0xff]
        %v2518 = vld [vmem:[#allocation7 + $0x1c0] sm:$0xff]
        %v2519 = vld [vmem:[#allocation7 + $0x1c8] sm:$0xff]
        %v2520 = vld [vmem:[#allocation7 + $0x1d0] sm:$0xff]
        %v2521 = vld [vmem:[#allocation7 + $0x1d8] sm:$0xff]
        %v2522 = vld [vmem:[#allocation7 + $0x1e0] sm:$0xff]
        %v2523 = vld [vmem:[#allocation7 + $0x1e8] sm:$0xff]
        %v2524 = vld [vmem:[#allocation7 + $0x1f0] sm:$0xff]
        %v2525 = vld [vmem:[#allocation7 + $0x1f8] sm:$0xff]
        %v2526 = vld [vmem:[#allocation7 + $0x200] sm:$0xff]
        %v2527 = vld [vmem:[#allocation7 + $0x208] sm:$0xff]
        %v2528 = vld [vmem:[#allocation7 + $0x210] sm:$0xff]
        %v2529 = vld [vmem:[#allocation7 + $0x218] sm:$0xff]
        %v2530 = vld [vmem:[#allocation7 + $0x220] sm:$0xff]
        %v2531 = vld [vmem:[#allocation7 + $0x228] sm:$0xff]
        %v2532 = vld [vmem:[#allocation7 + $0x230] sm:$0xff]
        %v2533 = vld [vmem:[#allocation7 + $0x238] sm:$0xff]
        %v2534 = vld [vmem:[#allocation7 + $0x240] sm:$0xff]
        %v2535 = vld [vmem:[#allocation7 + $0x248] sm:$0xff]
        %v2536 = vld [vmem:[#allocation7 + $0x250] sm:$0xff]
        %v2537 = vld [vmem:[#allocation7 + $0x258] sm:$0xff]
        %v2538 = vld [vmem:[#allocation7 + $0x260] sm:$0xff]
        %v2539 = vld [vmem:[#allocation7 + $0x268] sm:$0xff]
        %v2540 = vld [vmem:[#allocation7 + $0x270] sm:$0xff]
        %v2541 = vld [vmem:[#allocation7 + $0x278] sm:$0xff]
        %2542 = vmatprep.subr.mxu0 %v2463
        %2543 = vmatpush1.msra.mxu0 %v2462
        %2544 = vmatprep.subr.mxu0 %v2468
        %2545 = vmatpush1.msra.mxu0 %v2467
        %2546 = vmatprep.subr.mxu0 %v2473
        %2547 = vmatpush1.msra.mxu0 %v2472
        %2548 = vmatprep.subr.mxu0 %v2478
        %2549 = vmatpush1.msra.mxu0 %v2477
        %2550 = vmatprep.subr.mxu0 %v2483
        %2551 = vmatpush1.msra.mxu0 %v2482
        %2552 = vmatprep.subr.mxu0 %v2488
        %2553 = vmatpush1.msra.mxu0 %v2487
        %2554 = vmatprep.subr.mxu0 %v2493
        %2555 = vmatpush1.msra.mxu0 %v2492
        %2556 = vmatprep.subr.mxu0 %v2498
        %2557 = vmatpush1.msra.mxu0 %v2497
        %2558 = vmatprep.subr.mxu0 %v2503
        %2559 = vmatpush1.msra.mxu0 %v2502
        %2560 = vmatprep.subr.mxu0 %v2508
        %2561 = vmatpush1.msra.mxu0 %v2507
        %2562 = vmatprep.subr.mxu0 %v2513
        %2563 = vmatpush1.msra.mxu0 %v2512
        %2564 = vmatprep.subr.mxu0 %v2518
        %2565 = vmatpush1.msra.mxu0 %v2517
        %2566 = vmatprep.subr.mxu0 %v2523
        %2567 = vmatpush1.msra.mxu0 %v2522
        %2568 = vmatprep.subr.mxu0 %v2528
        %2569 = vmatpush1.msra.mxu0 %v2527
        %2570 = vmatprep.subr.mxu0 %v2533
        %2571 = vmatpush1.msra.mxu0 %v2532
        %2572 = vmatprep.subr.mxu0 %v2538
        %2573 = vmatpush1.msra.mxu0 %v2537
        %2574 = vmatprep.subr.mxu0 0.0
        %2575 = vmatpush1.msra.mxu0 0.0
        %2576 = vmatprep.subr.mxu0 0.0
        %2577 = vmatpush1.msra.mxu0 0.0
        %2578 = vmatprep.subr.mxu0 0.0
        %2579 = vmatpush1.msra.mxu0 0.0
        %2580 = vmatprep.subr.mxu0 0.0
        %2581 = vmatpush1.msra.mxu0 0.0
        %2582 = vmatprep.subr.mxu0 0.0
        %2583 = vmatpush1.msra.mxu0 0.0
        %2584 = vmatprep.subr.mxu0 0.0
        %2585 = vmatpush1.msra.mxu0 0.0
        %2586 = vmatprep.subr.mxu0 0.0
        %2587 = vmatpush1.msra.mxu0 0.0
        %2588 = vmatprep.subr.mxu0 0.0
        %2589 = vmatpush1.msra.mxu0 0.0
        %2590 = vmatprep.subr.mxu0 0.0
        %2591 = vmatpush1.msra.mxu0 0.0
        %2592 = vmatprep.subr.mxu0 0.0
        %2593 = vmatpush1.msra.mxu0 0.0
        %2594 = vmatprep.subr.mxu0 0.0
        %2595 = vmatpush1.msra.mxu0 0.0
        %2596 = vmatprep.subr.mxu0 0.0
        %2597 = vmatpush1.msra.mxu0 0.0
        %2598 = vmatprep.subr.mxu0 0.0
        %2599 = vmatpush1.msra.mxu0 0.0
        %2600 = vmatprep.subr.mxu0 0.0
        %2601 = vmatpush1.msra.mxu0 0.0
        %2602 = vmatprep.subr.mxu0 0.0
        %2603 = vmatpush1.msra.mxu0 0.0
        %2604 = vmatprep.subr.mxu0 0.0
        %2605 = vmatpush1.msra.mxu0 0.0
        %2606 = vmatprep.mubr.f32.mxu0 0.0
        %2607 = vmatmul.mubr.f32.gmra.mrb[0].mxu0 %v2438
        %v2608 = vpop.f32.mrb[0].mxu0
        %v2609 = vadd.f32 0.0, %v2608
        %v2610 = vpop.f32.mrb[0].mxu0
        %v2611 = vadd.f32 0.0, %v2610
        %2612 = vmatprep.mubr.f32.mxu0 0.0
        %2613 = vmatmul.mubr.f32.gmra.mrb[0].mxu0 %v2439
        %v2614 = vpop.f32.mrb[0].mxu0
        %v2615 = vadd.f32 0.0, %v2614
        %v2616 = vpop.f32.mrb[0].mxu0
        %v2617 = vadd.f32 0.0, %v2616
        %2618 = vmatprep.mubr.f32.mxu0 0.0
        %2619 = vmatmul.mubr.f32.gmra.mrb[0].mxu0 %v2440
        %v2620 = vpop.f32.mrb[0].mxu0
        %v2621 = vadd.f32 0.0, %v2620
        %v2622 = vpop.f32.mrb[0].mxu0
        %v2623 = vadd.f32 0.0, %v2622
        %2624 = vmatprep.mubr.f32.mxu0 0.0
        %2625 = vmatmul.mubr.f32.gmra.mrb[0].mxu0 %v2441
        %v2626 = vpop.f32.mrb[0].mxu0
        %v2627 = vadd.f32 0.0, %v2626
        %v2628 = vpop.f32.mrb[0].mxu0
        %v2629 = vadd.f32 0.0, %v2628
        %2630 = vmatprep.mubr.f32.mxu0 0.0
        %2631 = vmatmul.mubr.f32.gmra.mrb[0].mxu0 %v2442
        %v2632 = vpop.f32.mrb[0].mxu0
        %v2633 = vadd.f32 0.0, %v2632
        %v2634 = vpop.f32.mrb[0].mxu0
        %v2635 = vadd.f32 0.0, %v2634
        %2636 = vmatprep.mubr.f32.mxu0 0.0
        %2637 = vmatmul.mubr.f32.gmra.mrb[0].mxu0 %v2443
        %v2638 = vpop.f32.mrb[0].mxu0
        %v2639 = vadd.f32 0.0, %v2638
        %v2640 = vpop.f32.mrb[0].mxu0
        %v2641 = vadd.f32 0.0, %v2640
        %2642 = vmatprep.mubr.f32.mxu0 0.0
        %2643 = vmatmul.mubr.f32.gmra.mrb[0].mxu0 %v2444
        %v2644 = vpop.f32.mrb[0].mxu0
        %v2645 = vadd.f32 0.0, %v2644
        %v2646 = vpop.f32.mrb[0].mxu0
        %v2647 = vadd.f32 0.0, %v2646
        %2648 = vmatprep.mubr.f32.mxu0 0.0
        %2649 = vmatmul.mubr.f32.gmra.mrb[0].mxu0 %v2445
        %v2650 = vpop.f32.mrb[0].mxu0
        %v2651 = vadd.f32 0.0, %v2650
        %v2652 = vpop.f32.mrb[0].mxu0
        %v2653 = vadd.f32 0.0, %v2652
        %2654 = vmatprep.mubr.f32.mxu0 0.0
        %2655 = vmatmul.mubr.f32.gmra.mrb[0].mxu0 %v2446
        %v2656 = vpop.f32.mrb[0].mxu0
        %v2657 = vadd.f32 0.0, %v2656
        %v2658 = vpop.f32.mrb[0].mxu0
        %v2659 = vadd.f32 0.0, %v2658
        %2660 = vmatprep.mubr.f32.mxu0 0.0
        %2661 = vmatmul.mubr.f32.gmra.mrb[0].mxu0 %v2447
        %v2662 = vpop.f32.mrb[0].mxu0
        %v2663 = vadd.f32 0.0, %v2662
        %v2664 = vpop.f32.mrb[0].mxu0
        %v2665 = vadd.f32 0.0, %v2664
        %2666 = vmatprep.mubr.f32.mxu0 0.0
        %2667 = vmatmul.mubr.f32.gmra.mrb[0].mxu0 %v2448
        %v2668 = vpop.f32.mrb[0].mxu0
        %v2669 = vadd.f32 0.0, %v2668
        %v2670 = vpop.f32.mrb[0].mxu0
        %v2671 = vadd.f32 0.0, %v2670
        %2672 = vmatprep.mubr.f32.mxu0 0.0
        %2673 = vmatmul.mubr.f32.gmra.mrb[0].mxu0 %v2449
        %v2674 = vpop.f32.mrb[0].mxu0
        %v2675 = vadd.f32 0.0, %v2674
        %v2676 = vpop.f32.mrb[0].mxu0
        %v2677 = vadd.f32 0.0, %v2676
        %2678 = vmatprep.mubr.f32.mxu0 0.0
        %2679 = vmatmul.mubr.f32.gmra.mrb[0].mxu0 %v2450
        %v2680 = vpop.f32.mrb[0].mxu0
        %v2681 = vadd.f32 0.0, %v2680
        %v2682 = vpop.f32.mrb[0].mxu0
        %v2683 = vadd.f32 0.0, %v2682
        %2684 = vmatprep.mubr.f32.mxu0 0.0
        %2685 = vmatmul.mubr.f32.gmra.mrb[0].mxu0 %v2451
        %v2686 = vpop.f32.mrb[0].mxu0
        %v2687 = vadd.f32 0.0, %v2686
        %v2688 = vpop.f32.mrb[0].mxu0
        %v2689 = vadd.f32 0.0, %v2688
        %2690 = vmatprep.mubr.f32.mxu0 0.0
        %2691 = vmatmul.mubr.f32.gmra.mrb[0].mxu0 %v2452
        %v2692 = vpop.f32.mrb[0].mxu0
        %v2693 = vadd.f32 0.0, %v2692
        %v2694 = vpop.f32.mrb[0].mxu0
        %v2695 = vadd.f32 0.0, %v2694
        %2696 = vmatprep.mubr.f32.mxu0 0.0
        %2697 = vmatmul.mubr.f32.gmra.mrb[0].mxu0 %v2453
        %v2698 = vpop.f32.mrb[0].mxu0
        %v2699 = vadd.f32 0.0, %v2698
        %v2700 = vpop.f32.mrb[0].mxu0
        %v2701 = vadd.f32 0.0, %v2700
        %2702 = vmatprep.mubr.f32.mxu0 0.0
        %2703 = vmatmul.mubr.f32.gmra.mrb[0].mxu0 %v2454
        %v2704 = vpop.f32.mrb[0].mxu0
        %v2705 = vadd.f32 0.0, %v2704
        %v2706 = vpop.f32.mrb[0].mxu0
        %v2707 = vadd.f32 0.0, %v2706
        %2708 = vmatprep.mubr.f32.mxu0 0.0
        %2709 = vmatmul.mubr.f32.gmra.mrb[0].mxu0 %v2455
        %v2710 = vpop.f32.mrb[0].mxu0
        %v2711 = vadd.f32 0.0, %v2710
        %v2712 = vpop.f32.mrb[0].mxu0
        %v2713 = vadd.f32 0.0, %v2712
        %2714 = vmatprep.mubr.f32.mxu0 0.0
        %2715 = vmatmul.mubr.f32.gmra.mrb[0].mxu0 %v2456
        %v2716 = vpop.f32.mrb[0].mxu0
        %v2717 = vadd.f32 0.0, %v2716
        %v2718 = vpop.f32.mrb[0].mxu0
        %v2719 = vadd.f32 0.0, %v2718
        %2720 = vmatprep.mubr.f32.mxu0 0.0
        %2721 = vmatmul.mubr.f32.gmra.mrb[0].mxu0 %v2457
        %v2722 = vpop.f32.mrb[0].mxu0
        %v2723 = vadd.f32 0.0, %v2722
        %v2724 = vpop.f32.mrb[0].mxu0
        %v2725 = vadd.f32 0.0, %v2724
        %2726 = vmatprep.mubr.f32.mxu0 0.0
        %2727 = vmatmul.mubr.f32.gmra.mrb[0].mxu0 %v2458
        %v2728 = vpop.f32.mrb[0].mxu0
        %v2729 = vadd.f32 0.0, %v2728
        %v2730 = vpop.f32.mrb[0].mxu0
        %v2731 = vadd.f32 0.0, %v2730
        %2732 = vmatprep.mubr.f32.mxu0 0.0
        %2733 = vmatmul.mubr.f32.gmra.mrb[0].mxu0 %v2459
        %v2734 = vpop.f32.mrb[0].mxu0
        %v2735 = vadd.f32 0.0, %v2734
        %v2736 = vpop.f32.mrb[0].mxu0
        %v2737 = vadd.f32 0.0, %v2736
        %2738 = vmatprep.mubr.f32.mxu0 0.0
        %2739 = vmatmul.mubr.f32.gmra.mrb[0].mxu0 %v2460
        %v2740 = vpop.f32.mrb[0].mxu0
        %v2741 = vadd.f32 0.0, %v2740
        %v2742 = vpop.f32.mrb[0].mxu0
        %v2743 = vadd.f32 0.0, %v2742
        %2744 = vmatprep.mubr.f32.mxu0 0.0
        %2745 = vmatmul.mubr.f32.gmra.mrb[0].mxu0 %v2461
        %v2746 = vpop.f32.mrb[0].mxu0
        %v2747 = vadd.f32 0.0, %v2746
        %v2748 = vpop.f32.mrb[0].mxu0
        %v2749 = vadd.f32 0.0, %v2748
        %2750 = vdwg.mxu0
        %2751 = vmatprep.subr.mxu0 %v2465
        %2752 = vmatpush1.msra.mxu0 %v2464
        %2753 = vmatprep.subr.mxu0 %v2470
        %2754 = vmatpush1.msra.mxu0 %v2469
        %2755 = vmatprep.subr.mxu0 %v2475
        %2756 = vmatpush1.msra.mxu0 %v2474
        %2757 = vmatprep.subr.mxu0 %v2480
        %2758 = vmatpush1.msra.mxu0 %v2479
        %2759 = vmatprep.subr.mxu0 %v2485
        %2760 = vmatpush1.msra.mxu0 %v2484
        %2761 = vmatprep.subr.mxu0 %v2490
        %2762 = vmatpush1.msra.mxu0 %v2489
        %2763 = vmatprep.subr.mxu0 %v2495
        %2764 = vmatpush1.msra.mxu0 %v2494
        %2765 = vmatprep.subr.mxu0 %v2500
        %2766 = vmatpush1.msra.mxu0 %v2499
        %2767 = vmatprep.subr.mxu0 %v2505
        %2768 = vmatpush1.msra.mxu0 %v2504
        %2769 = vmatprep.subr.mxu0 %v2510
        %2770 = vmatpush1.msra.mxu0 %v2509
        %2771 = vmatprep.subr.mxu0 %v2515
        %2772 = vmatpush1.msra.mxu0 %v2514
        %2773 = vmatprep.subr.mxu0 %v2520
        %2774 = vmatpush1.msra.mxu0 %v2519
        %2775 = vmatprep.subr.mxu0 %v2525
        %2776 = vmatpush1.msra.mxu0 %v2524
        %2777 = vmatprep.subr.mxu0 %v2530
        %2778 = vmatpush1.msra.mxu0 %v2529
        %2779 = vmatprep.subr.mxu0 %v2535
        %2780 = vmatpush1.msra.mxu0 %v2534
        %2781 = vmatprep.subr.mxu0 %v2540
        %2782 = vmatpush1.msra.mxu0 %v2539
        %2783 = vmatprep.subr.mxu0 0.0
        %2784 = vmatpush1.msra.mxu0 0.0
        %2785 = vmatprep.subr.mxu0 0.0
        %2786 = vmatpush1.msra.mxu0 0.0
        %2787 = vmatprep.subr.mxu0 0.0
        %2788 = vmatpush1.msra.mxu0 0.0
        %2789 = vmatprep.subr.mxu0 0.0
        %2790 = vmatpush1.msra.mxu0 0.0
        %2791 = vmatprep.subr.mxu0 0.0
        %2792 = vmatpush1.msra.mxu0 0.0
        %2793 = vmatprep.subr.mxu0 0.0
        %2794 = vmatpush1.msra.mxu0 0.0
        %2795 = vmatprep.subr.mxu0 0.0
        %2796 = vmatpush1.msra.mxu0 0.0
        %2797 = vmatprep.subr.mxu0 0.0
        %2798 = vmatpush1.msra.mxu0 0.0
        %2799 = vmatprep.subr.mxu0 0.0
        %2800 = vmatpush1.msra.mxu0 0.0
        %2801 = vmatprep.subr.mxu0 0.0
        %2802 = vmatpush1.msra.mxu0 0.0
        %2803 = vmatprep.subr.mxu0 0.0
        %2804 = vmatpush1.msra.mxu0 0.0
        %2805 = vmatprep.subr.mxu0 0.0
        %2806 = vmatpush1.msra.mxu0 0.0
        %2807 = vmatprep.subr.mxu0 0.0
        %2808 = vmatpush1.msra.mxu0 0.0
        %2809 = vmatprep.subr.mxu0 0.0
        %2810 = vmatpush1.msra.mxu0 0.0
        %2811 = vmatprep.subr.mxu0 0.0
        %2812 = vmatpush1.msra.mxu0 0.0
        %2813 = vmatprep.subr.mxu0 0.0
        %2814 = vmatpush1.msra.mxu0 0.0
        %2815 = vmatprep.mubr.f32.mxu0 0.0
        %2816 = vmatmul.mubr.f32.gmra.mrb[0].mxu0 %v2438
        %v2817 = vpop.f32.mrb[0].mxu0
        %v2818 = vadd.f32 0.0, %v2817
        %v2819 = vpop.f32.mrb[0].mxu0
        %v2820 = vadd.f32 0.0, %v2819
        %2821 = vmatprep.mubr.f32.mxu0 0.0
        %2822 = vmatmul.mubr.f32.gmra.mrb[0].mxu0 %v2439
        %v2823 = vpop.f32.mrb[0].mxu0
        %v2824 = vadd.f32 0.0, %v2823
        %v2825 = vpop.f32.mrb[0].mxu0
        %v2826 = vadd.f32 0.0, %v2825
        %2827 = vmatprep.mubr.f32.mxu0 0.0
        %2828 = vmatmul.mubr.f32.gmra.mrb[0].mxu0 %v2440
        %v2829 = vpop.f32.mrb[0].mxu0
        %v2830 = vadd.f32 0.0, %v2829
        %v2831 = vpop.f32.mrb[0].mxu0
        %v2832 = vadd.f32 0.0, %v2831
        %2833 = vmatprep.mubr.f32.mxu0 0.0
        %2834 = vmatmul.mubr.f32.gmra.mrb[0].mxu0 %v2441
        %v2835 = vpop.f32.mrb[0].mxu0
        %v2836 = vadd.f32 0.0, %v2835
        %v2837 = vpop.f32.mrb[0].mxu0
        %v2838 = vadd.f32 0.0, %v2837
        %2839 = vmatprep.mubr.f32.mxu0 0.0
        %2840 = vmatmul.mubr.f32.gmra.mrb[0].mxu0 %v2442
        %v2841 = vpop.f32.mrb[0].mxu0
        %v2842 = vadd.f32 0.0, %v2841
        %v2843 = vpop.f32.mrb[0].mxu0
        %v2844 = vadd.f32 0.0, %v2843
        %2845 = vmatprep.mubr.f32.mxu0 0.0
        %2846 = vmatmul.mubr.f32.gmra.mrb[0].mxu0 %v2443
        %v2847 = vpop.f32.mrb[0].mxu0
        %v2848 = vadd.f32 0.0, %v2847
        %v2849 = vpop.f32.mrb[0].mxu0
        %v2850 = vadd.f32 0.0, %v2849
        %2851 = vmatprep.mubr.f32.mxu0 0.0
        %2852 = vmatmul.mubr.f32.gmra.mrb[0].mxu0 %v2444
        %v2853 = vpop.f32.mrb[0].mxu0
        %v2854 = vadd.f32 0.0, %v2853
        %v2855 = vpop.f32.mrb[0].mxu0
        %v2856 = vadd.f32 0.0, %v2855
        %2857 = vmatprep.mubr.f32.mxu0 0.0
        %2858 = vmatmul.mubr.f32.gmra.mrb[0].mxu0 %v2445
        %v2859 = vpop.f32.mrb[0].mxu0
        %v2860 = vadd.f32 0.0, %v2859
        %v2861 = vpop.f32.mrb[0].mxu0
        %v2862 = vadd.f32 0.0, %v2861
        %2863 = vmatprep.mubr.f32.mxu0 0.0
        %2864 = vmatmul.mubr.f32.gmra.mrb[0].mxu0 %v2446
        %v2865 = vpop.f32.mrb[0].mxu0
        %v2866 = vadd.f32 0.0, %v2865
        %v2867 = vpop.f32.mrb[0].mxu0
        %v2868 = vadd.f32 0.0, %v2867
        %2869 = vmatprep.mubr.f32.mxu0 0.0
        %2870 = vmatmul.mubr.f32.gmra.mrb[0].mxu0 %v2447
        %v2871 = vpop.f32.mrb[0].mxu0
        %v2872 = vadd.f32 0.0, %v2871
        %v2873 = vpop.f32.mrb[0].mxu0
        %v2874 = vadd.f32 0.0, %v2873
        %2875 = vmatprep.mubr.f32.mxu0 0.0
        %2876 = vmatmul.mubr.f32.gmra.mrb[0].mxu0 %v2448
        %v2877 = vpop.f32.mrb[0].mxu0
        %v2878 = vadd.f32 0.0, %v2877
        %v2879 = vpop.f32.mrb[0].mxu0
        %v2880 = vadd.f32 0.0, %v2879
        %2881 = vmatprep.mubr.f32.mxu0 0.0
        %2882 = vmatmul.mubr.f32.gmra.mrb[0].mxu0 %v2449
        %v2883 = vpop.f32.mrb[0].mxu0
        %v2884 = vadd.f32 0.0, %v2883
        %v2885 = vpop.f32.mrb[0].mxu0
        %v2886 = vadd.f32 0.0, %v2885
        %2887 = vmatprep.mubr.f32.mxu0 0.0
        %2888 = vmatmul.mubr.f32.gmra.mrb[0].mxu0 %v2450
        %v2889 = vpop.f32.mrb[0].mxu0
        %v2890 = vadd.f32 0.0, %v2889
        %v2891 = vpop.f32.mrb[0].mxu0
        %v2892 = vadd.f32 0.0, %v2891
        %2893 = vmatprep.mubr.f32.mxu0 0.0
        %2894 = vmatmul.mubr.f32.gmra.mrb[0].mxu0 %v2451
        %v2895 = vpop.f32.mrb[0].mxu0
        %v2896 = vadd.f32 0.0, %v2895
        %v2897 = vpop.f32.mrb[0].mxu0
        %v2898 = vadd.f32 0.0, %v2897
        %2899 = vmatprep.mubr.f32.mxu0 0.0
        %2900 = vmatmul.mubr.f32.gmra.mrb[0].mxu0 %v2452
        %v2901 = vpop.f32.mrb[0].mxu0
        %v2902 = vadd.f32 0.0, %v2901
        %v2903 = vpop.f32.mrb[0].mxu0
        %v2904 = vadd.f32 0.0, %v2903
        %2905 = vmatprep.mubr.f32.mxu0 0.0
        %2906 = vmatmul.mubr.f32.gmra.mrb[0].mxu0 %v2453
        %v2907 = vpop.f32.mrb[0].mxu0
        %v2908 = vadd.f32 0.0, %v2907
        %v2909 = vpop.f32.mrb[0].mxu0
        %v2910 = vadd.f32 0.0, %v2909
        %2911 = vmatprep.mubr.f32.mxu0 0.0
        %2912 = vmatmul.mubr.f32.gmra.mrb[0].mxu0 %v2454
        %v2913 = vpop.f32.mrb[0].mxu0
        %v2914 = vadd.f32 0.0, %v2913
        %v2915 = vpop.f32.mrb[0].mxu0
        %v2916 = vadd.f32 0.0, %v2915
        %2917 = vmatprep.mubr.f32.mxu0 0.0
        %2918 = vmatmul.mubr.f32.gmra.mrb[0].mxu0 %v2455
        %v2919 = vpop.f32.mrb[0].mxu0
        %v2920 = vadd.f32 0.0, %v2919
        %v2921 = vpop.f32.mrb[0].mxu0
        %v2922 = vadd.f32 0.0, %v2921
        %2923 = vmatprep.mubr.f32.mxu0 0.0
        %2924 = vmatmul.mubr.f32.gmra.mrb[0].mxu0 %v2456
        %v2925 = vpop.f32.mrb[0].mxu0
        %v2926 = vadd.f32 0.0, %v2925
        %v2927 = vpop.f32.mrb[0].mxu0
        %v2928 = vadd.f32 0.0, %v2927
        %2929 = vmatprep.mubr.f32.mxu0 0.0
        %2930 = vmatmul.mubr.f32.gmra.mrb[0].mxu0 %v2457
        %v2931 = vpop.f32.mrb[0].mxu0
        %v2932 = vadd.f32 0.0, %v2931
        %v2933 = vpop.f32.mrb[0].mxu0
        %v2934 = vadd.f32 0.0, %v2933
        %2935 = vmatprep.mubr.f32.mxu0 0.0
        %2936 = vmatmul.mubr.f32.gmra.mrb[0].mxu0 %v2458
        %v2937 = vpop.f32.mrb[0].mxu0
        %v2938 = vadd.f32 0.0, %v2937
        %v2939 = vpop.f32.mrb[0].mxu0
        %v2940 = vadd.f32 0.0, %v2939
        %2941 = vmatprep.mubr.f32.mxu0 0.0
        %2942 = vmatmul.mubr.f32.gmra.mrb[0].mxu0 %v2459
        %v2943 = vpop.f32.mrb[0].mxu0
        %v2944 = vadd.f32 0.0, %v2943
        %v2945 = vpop.f32.mrb[0].mxu0
        %v2946 = vadd.f32 0.0, %v2945
        %2947 = vmatprep.mubr.f32.mxu0 0.0
        %2948 = vmatmul.mubr.f32.gmra.mrb[0].mxu0 %v2460
        %v2949 = vpop.f32.mrb[0].mxu0
        %v2950 = vadd.f32 0.0, %v2949
        %v2951 = vpop.f32.mrb[0].mxu0
        %v2952 = vadd.f32 0.0, %v2951
        %2953 = vmatprep.mubr.f32.mxu0 0.0
        %2954 = vmatmul.mubr.f32.gmra.mrb[0].mxu0 %v2461
        %v2955 = vpop.f32.mrb[0].mxu0
        %v2956 = vadd.f32 0.0, %v2955
        %v2957 = vpop.f32.mrb[0].mxu0
        %v2958 = vadd.f32 0.0, %v2957
        %2959 = vdwg.mxu0
        %2960 = vmatprep.subr.mxu0 0.0
        %2961 = vmatpush1.msra.mxu0 %v2466
        %2962 = vmatprep.subr.mxu0 0.0
        %2963 = vmatpush1.msra.mxu0 %v2471
        %2964 = vmatprep.subr.mxu0 0.0
        %2965 = vmatpush1.msra.mxu0 %v2476
        %2966 = vmatprep.subr.mxu0 0.0
        %2967 = vmatpush1.msra.mxu0 %v2481
        %2968 = vmatprep.subr.mxu0 0.0
        %2969 = vmatpush1.msra.mxu0 %v2486
        %2970 = vmatprep.subr.mxu0 0.0
        %2971 = vmatpush1.msra.mxu0 %v2491
        %2972 = vmatprep.subr.mxu0 0.0
        %2973 = vmatpush1.msra.mxu0 %v2496
        %2974 = vmatprep.subr.mxu0 0.0
        %2975 = vmatpush1.msra.mxu0 %v2501
        %2976 = vmatprep.subr.mxu0 0.0
        %2977 = vmatpush1.msra.mxu0 %v2506
        %2978 = vmatprep.subr.mxu0 0.0
        %2979 = vmatpush1.msra.mxu0 %v2511
        %2980 = vmatprep.subr.mxu0 0.0
        %2981 = vmatpush1.msra.mxu0 %v2516
        %2982 = vmatprep.subr.mxu0 0.0
        %2983 = vmatpush1.msra.mxu0 %v2521
        %2984 = vmatprep.subr.mxu0 0.0
        %2985 = vmatpush1.msra.mxu0 %v2526
        %2986 = vmatprep.subr.mxu0 0.0
        %2987 = vmatpush1.msra.mxu0 %v2531
        %2988 = vmatprep.subr.mxu0 0.0
        %2989 = vmatpush1.msra.mxu0 %v2536
        %2990 = vmatprep.subr.mxu0 0.0
        %2991 = vmatpush1.msra.mxu0 %v2541
        %2992 = vmatprep.subr.mxu0 0.0
        %2993 = vmatpush1.msra.mxu0 0.0
        %2994 = vmatprep.subr.mxu0 0.0
        %2995 = vmatpush1.msra.mxu0 0.0
        %2996 = vmatprep.subr.mxu0 0.0
        %2997 = vmatpush1.msra.mxu0 0.0
        %2998 = vmatprep.subr.mxu0 0.0
        %2999 = vmatpush1.msra.mxu0 0.0
        %3000 = vmatprep.subr.mxu0 0.0
        %3001 = vmatpush1.msra.mxu0 0.0
        %3002 = vmatprep.subr.mxu0 0.0
        %3003 = vmatpush1.msra.mxu0 0.0
        %3004 = vmatprep.subr.mxu0 0.0
        %3005 = vmatpush1.msra.mxu0 0.0
        %3006 = vmatprep.subr.mxu0 0.0
        %3007 = vmatpush1.msra.mxu0 0.0
        %3008 = vmatprep.subr.mxu0 0.0
        %3009 = vmatpush1.msra.mxu0 0.0
        %3010 = vmatprep.subr.mxu0 0.0
        %3011 = vmatpush1.msra.mxu0 0.0
        %3012 = vmatprep.subr.mxu0 0.0
        %3013 = vmatpush1.msra.mxu0 0.0
        %3014 = vmatprep.subr.mxu0 0.0
        %3015 = vmatpush1.msra.mxu0 0.0
        %3016 = vmatprep.subr.mxu0 0.0
        %3017 = vmatpush1.msra.mxu0 0.0
        %3018 = vmatprep.subr.mxu0 0.0
        %3019 = vmatpush1.msra.mxu0 0.0
        %3020 = vmatprep.subr.mxu0 0.0
        %3021 = vmatpush1.msra.mxu0 0.0
        %3022 = vmatprep.subr.mxu0 0.0
        %3023 = vmatpush1.msra.mxu0 0.0
        %3024 = vmatprep.mubr.f32.mxu0 0.0
        %3025 = vmatmul.mubr.f32.gmra.mrb[0].mxu0 %v2438
        %v3026 = vpop.f32.mrb[0].mxu0
        %v3027 = vadd.f32 0.0, %v3026
        %v3028 = vpop.f32.mrb[0].mxu0
        %3029 = vmatprep.mubr.f32.mxu0 0.0
        %3030 = vmatmul.mubr.f32.gmra.mrb[0].mxu0 %v2439
        %v3031 = vpop.f32.mrb[0].mxu0
        %v3032 = vadd.f32 0.0, %v3031
        %v3033 = vpop.f32.mrb[0].mxu0
        %3034 = vmatprep.mubr.f32.mxu0 0.0
        %3035 = vmatmul.mubr.f32.gmra.mrb[0].mxu0 %v2440
        %v3036 = vpop.f32.mrb[0].mxu0
        %v3037 = vadd.f32 0.0, %v3036
        %v3038 = vpop.f32.mrb[0].mxu0
        %3039 = vmatprep.mubr.f32.mxu0 0.0
        %3040 = vmatmul.mubr.f32.gmra.mrb[0].mxu0 %v2441
        %v3041 = vpop.f32.mrb[0].mxu0
        %v3042 = vadd.f32 0.0, %v3041
        %v3043 = vpop.f32.mrb[0].mxu0
        %3044 = vmatprep.mubr.f32.mxu0 0.0
        %3045 = vmatmul.mubr.f32.gmra.mrb[0].mxu0 %v2442
        %v3046 = vpop.f32.mrb[0].mxu0
        %v3047 = vadd.f32 0.0, %v3046
        %v3048 = vpop.f32.mrb[0].mxu0
        %3049 = vmatprep.mubr.f32.mxu0 0.0
        %3050 = vmatmul.mubr.f32.gmra.mrb[0].mxu0 %v2443
        %v3051 = vpop.f32.mrb[0].mxu0
        %v3052 = vadd.f32 0.0, %v3051
        %v3053 = vpop.f32.mrb[0].mxu0
        %3054 = vmatprep.mubr.f32.mxu0 0.0
        %3055 = vmatmul.mubr.f32.gmra.mrb[0].mxu0 %v2444
        %v3056 = vpop.f32.mrb[0].mxu0
        %v3057 = vadd.f32 0.0, %v3056
        %v3058 = vpop.f32.mrb[0].mxu0
        %3059 = vmatprep.mubr.f32.mxu0 0.0
        %3060 = vmatmul.mubr.f32.gmra.mrb[0].mxu0 %v2445
        %v3061 = vpop.f32.mrb[0].mxu0
        %v3062 = vadd.f32 0.0, %v3061
        %v3063 = vpop.f32.mrb[0].mxu0
        %3064 = vmatprep.mubr.f32.mxu0 0.0
        %3065 = vmatmul.mubr.f32.gmra.mrb[0].mxu0 %v2446
        %v3066 = vpop.f32.mrb[0].mxu0
        %v3067 = vadd.f32 0.0, %v3066
        %v3068 = vpop.f32.mrb[0].mxu0
        %3069 = vmatprep.mubr.f32.mxu0 0.0
        %3070 = vmatmul.mubr.f32.gmra.mrb[0].mxu0 %v2447
        %v3071 = vpop.f32.mrb[0].mxu0
        %v3072 = vadd.f32 0.0, %v3071
        %v3073 = vpop.f32.mrb[0].mxu0
        %3074 = vmatprep.mubr.f32.mxu0 0.0
        %3075 = vmatmul.mubr.f32.gmra.mrb[0].mxu0 %v2448
        %v3076 = vpop.f32.mrb[0].mxu0
        %v3077 = vadd.f32 0.0, %v3076
        %v3078 = vpop.f32.mrb[0].mxu0
        %3079 = vmatprep.mubr.f32.mxu0 0.0
        %3080 = vmatmul.mubr.f32.gmra.mrb[0].mxu0 %v2449
        %v3081 = vpop.f32.mrb[0].mxu0
        %v3082 = vadd.f32 0.0, %v3081
        %v3083 = vpop.f32.mrb[0].mxu0
        %3084 = vmatprep.mubr.f32.mxu0 0.0
        %3085 = vmatmul.mubr.f32.gmra.mrb[0].mxu0 %v2450
        %v3086 = vpop.f32.mrb[0].mxu0
        %v3087 = vadd.f32 0.0, %v3086
        %v3088 = vpop.f32.mrb[0].mxu0
        %3089 = vmatprep.mubr.f32.mxu0 0.0
        %3090 = vmatmul.mubr.f32.gmra.mrb[0].mxu0 %v2451
        %v3091 = vpop.f32.mrb[0].mxu0
        %v3092 = vadd.f32 0.0, %v3091
        %v3093 = vpop.f32.mrb[0].mxu0
        %3094 = vmatprep.mubr.f32.mxu0 0.0
        %3095 = vmatmul.mubr.f32.gmra.mrb[0].mxu0 %v2452
        %v3096 = vpop.f32.mrb[0].mxu0
        %v3097 = vadd.f32 0.0, %v3096
        %v3098 = vpop.f32.mrb[0].mxu0
        %3099 = vmatprep.mubr.f32.mxu0 0.0
        %3100 = vmatmul.mubr.f32.gmra.mrb[0].mxu0 %v2453
        %v3101 = vpop.f32.mrb[0].mxu0
        %v3102 = vadd.f32 0.0, %v3101
        %v3103 = vpop.f32.mrb[0].mxu0
        %3104 = vmatprep.mubr.f32.mxu0 0.0
        %3105 = vmatmul.mubr.f32.gmra.mrb[0].mxu0 %v2454
        %v3106 = vpop.f32.mrb[0].mxu0
        %v3107 = vadd.f32 0.0, %v3106
        %v3108 = vpop.f32.mrb[0].mxu0
        %3109 = vmatprep.mubr.f32.mxu0 0.0
        %3110 = vmatmul.mubr.f32.gmra.mrb[0].mxu0 %v2455
        %v3111 = vpop.f32.mrb[0].mxu0
        %v3112 = vadd.f32 0.0, %v3111
        %v3113 = vpop.f32.mrb[0].mxu0
        %3114 = vmatprep.mubr.f32.mxu0 0.0
        %3115 = vmatmul.mubr.f32.gmra.mrb[0].mxu0 %v2456
        %v3116 = vpop.f32.mrb[0].mxu0
        %v3117 = vadd.f32 0.0, %v3116
        %v3118 = vpop.f32.mrb[0].mxu0
        %3119 = vmatprep.mubr.f32.mxu0 0.0
        %3120 = vmatmul.mubr.f32.gmra.mrb[0].mxu0 %v2457
        %v3121 = vpop.f32.mrb[0].mxu0
        %v3122 = vadd.f32 0.0, %v3121
        %v3123 = vpop.f32.mrb[0].mxu0
        %3124 = vmatprep.mubr.f32.mxu0 0.0
        %3125 = vmatmul.mubr.f32.gmra.mrb[0].mxu0 %v2458
        %v3126 = vpop.f32.mrb[0].mxu0
        %v3127 = vadd.f32 0.0, %v3126
        %v3128 = vpop.f32.mrb[0].mxu0
        %3129 = vmatprep.mubr.f32.mxu0 0.0
        %3130 = vmatmul.mubr.f32.gmra.mrb[0].mxu0 %v2459
        %v3131 = vpop.f32.mrb[0].mxu0
        %v3132 = vadd.f32 0.0, %v3131
        %v3133 = vpop.f32.mrb[0].mxu0
        %3134 = vmatprep.mubr.f32.mxu0 0.0
        %3135 = vmatmul.mubr.f32.gmra.mrb[0].mxu0 %v2460
        %v3136 = vpop.f32.mrb[0].mxu0
        %v3137 = vadd.f32 0.0, %v3136
        %v3138 = vpop.f32.mrb[0].mxu0
        %3139 = vmatprep.mubr.f32.mxu0 0.0
        %3140 = vmatmul.mubr.f32.gmra.mrb[0].mxu0 %v2461
        %v3141 = vpop.f32.mrb[0].mxu0
        %v3142 = vadd.f32 0.0, %v3141
        %v3143 = vpop.f32.mrb[0].mxu0
        %3144 = vdwg.mxu0
        %v3169 = vrot.slane %v2611, 1
        %v3170 = vrot.slane %v2617, 1
        %v3171 = vsel %vm1363, %v3169, %v3170
        %v3172 = vrot.slane %v2623, 1
        %v3173 = vsel %vm1363, %v3170, %v3172
        %v3174 = vrot.slane %v2629, 1
        %v3175 = vrot.slane %v2635, 1
        %v3176 = vsel %vm1363, %v3174, %v3175
        %v3177 = vrot.slane %v2641, 1
        %v3178 = vsel %vm1363, %v3175, %v3177
        %v3179 = vrot.slane %v2647, 1
        %v3180 = vrot.slane %v2653, 1
        %v3181 = vsel %vm1363, %v3179, %v3180
        %v3182 = vrot.slane %v2659, 1
        %v3183 = vsel %vm1363, %v3180, %v3182
        %v3184 = vrot.slane %v2665, 1
        %v3185 = vrot.slane %v2671, 1
        %v3186 = vsel %vm1363, %v3184, %v3185
        %v3187 = vrot.slane %v2677, 1
        %v3188 = vsel %vm1363, %v3185, %v3187
        %v3189 = vrot.slane %v2683, 1
        %v3190 = vrot.slane %v2689, 1
        %v3191 = vsel %vm1363, %v3189, %v3190
        %v3192 = vrot.slane %v2695, 1
        %v3193 = vsel %vm1363, %v3190, %v3192
        %v3194 = vrot.slane %v2701, 1
        %v3195 = vrot.slane %v2707, 1
        %v3196 = vsel %vm1363, %v3194, %v3195
        %v3197 = vrot.slane %v2713, 1
        %v3198 = vsel %vm1363, %v3195, %v3197
        %v3199 = vrot.slane %v2719, 1
        %v3200 = vrot.slane %v2725, 1
        %v3201 = vsel %vm1363, %v3199, %v3200
        %v3202 = vrot.slane %v2731, 1
        %v3203 = vsel %vm1363, %v3200, %v3202
        %v3204 = vrot.slane %v2737, 1
        %v3205 = vrot.slane %v2743, 1
        %v3206 = vsel %vm1363, %v3204, %v3205
        %v3207 = vrot.slane %v2749, 1
        %v3208 = vsel %vm1363, %v3205, %v3207
        %v3233 = vadd.f32 %v2609, %v3171
        %v3234 = vadd.f32 %v2615, %v3173
        %v3235 = vadd.f32 %v2621, %v3172
        %v3236 = vadd.f32 %v2627, %v3176
        %v3237 = vadd.f32 %v2633, %v3178
        %v3238 = vadd.f32 %v2639, %v3177
        %v3239 = vadd.f32 %v2645, %v3181
        %v3240 = vadd.f32 %v2651, %v3183
        %v3241 = vadd.f32 %v2657, %v3182
        %v3242 = vadd.f32 %v2663, %v3186
        %v3243 = vadd.f32 %v2669, %v3188
        %v3244 = vadd.f32 %v2675, %v3187
        %v3245 = vadd.f32 %v2681, %v3191
        %v3246 = vadd.f32 %v2687, %v3193
        %v3247 = vadd.f32 %v2693, %v3192
        %v3248 = vadd.f32 %v2699, %v3196
        %v3249 = vadd.f32 %v2705, %v3198
        %v3250 = vadd.f32 %v2711, %v3197
        %v3251 = vadd.f32 %v2717, %v3201
        %v3252 = vadd.f32 %v2723, %v3203
        %v3253 = vadd.f32 %v2729, %v3202
        %v3254 = vadd.f32 %v2735, %v3206
        %v3255 = vadd.f32 %v2741, %v3208
        %v3256 = vadd.f32 %v2747, %v3207
        %v3281 = vrot.slane %v2818, 2
        %v3282 = vrot.slane %v2824, 2
        %v3283 = vsel %vm1516, %v3281, %v3282
        %v3284 = vrot.slane %v2830, 2
        %v3285 = vsel %vm1516, %v3282, %v3284
        %v3286 = vrot.slane %v2836, 2
        %v3287 = vrot.slane %v2842, 2
        %v3288 = vsel %vm1516, %v3286, %v3287
        %v3289 = vrot.slane %v2848, 2
        %v3290 = vsel %vm1516, %v3287, %v3289
        %v3291 = vrot.slane %v2854, 2
        %v3292 = vrot.slane %v2860, 2
        %v3293 = vsel %vm1516, %v3291, %v3292
        %v3294 = vrot.slane %v2866, 2
        %v3295 = vsel %vm1516, %v3292, %v3294
        %v3296 = vrot.slane %v2872, 2
        %v3297 = vrot.slane %v2878, 2
        %v3298 = vsel %vm1516, %v3296, %v3297
        %v3299 = vrot.slane %v2884, 2
        %v3300 = vsel %vm1516, %v3297, %v3299
        %v3301 = vrot.slane %v2890, 2
        %v3302 = vrot.slane %v2896, 2
        %v3303 = vsel %vm1516, %v3301, %v3302
        %v3304 = vrot.slane %v2902, 2
        %v3305 = vsel %vm1516, %v3302, %v3304
        %v3306 = vrot.slane %v2908, 2
        %v3307 = vrot.slane %v2914, 2
        %v3308 = vsel %vm1516, %v3306, %v3307
        %v3309 = vrot.slane %v2920, 2
        %v3310 = vsel %vm1516, %v3307, %v3309
        %v3311 = vrot.slane %v2926, 2
        %v3312 = vrot.slane %v2932, 2
        %v3313 = vsel %vm1516, %v3311, %v3312
        %v3314 = vrot.slane %v2938, 2
        %v3315 = vsel %vm1516, %v3312, %v3314
        %v3316 = vrot.slane %v2944, 2
        %v3317 = vrot.slane %v2950, 2
        %v3318 = vsel %vm1516, %v3316, %v3317
        %v3319 = vrot.slane %v2956, 2
        %v3320 = vsel %vm1516, %v3317, %v3319
        %v3345 = vadd.f32 %v3233, %v3283
        %v3346 = vadd.f32 %v3234, %v3285
        %v3347 = vadd.f32 %v3235, %v3284
        %v3348 = vadd.f32 %v3236, %v3288
        %v3349 = vadd.f32 %v3237, %v3290
        %v3350 = vadd.f32 %v3238, %v3289
        %v3351 = vadd.f32 %v3239, %v3293
        %v3352 = vadd.f32 %v3240, %v3295
        %v3353 = vadd.f32 %v3241, %v3294
        %v3354 = vadd.f32 %v3242, %v3298
        %v3355 = vadd.f32 %v3243, %v3300
        %v3356 = vadd.f32 %v3244, %v3299
        %v3357 = vadd.f32 %v3245, %v3303
        %v3358 = vadd.f32 %v3246, %v3305
        %v3359 = vadd.f32 %v3247, %v3304
        %v3360 = vadd.f32 %v3248, %v3308
        %v3361 = vadd.f32 %v3249, %v3310
        %v3362 = vadd.f32 %v3250, %v3309
        %v3363 = vadd.f32 %v3251, %v3313
        %v3364 = vadd.f32 %v3252, %v3315
        %v3365 = vadd.f32 %v3253, %v3314
        %v3366 = vadd.f32 %v3254, %v3318
        %v3367 = vadd.f32 %v3255, %v3320
        %v3368 = vadd.f32 %v3256, %v3319
        %v3393 = vrot.slane %v2820, 3
        %v3394 = vrot.slane %v2826, 3
        %v3395 = vsel %vm1669, %v3393, %v3394
        %v3396 = vrot.slane %v2832, 3
        %v3397 = vsel %vm1669, %v3394, %v3396
        %v3398 = vrot.slane %v2838, 3
        %v3399 = vrot.slane %v2844, 3
        %v3400 = vsel %vm1669, %v3398, %v3399
        %v3401 = vrot.slane %v2850, 3
        %v3402 = vsel %vm1669, %v3399, %v3401
        %v3403 = vrot.slane %v2856, 3
        %v3404 = vrot.slane %v2862, 3
        %v3405 = vsel %vm1669, %v3403, %v3404
        %v3406 = vrot.slane %v2868, 3
        %v3407 = vsel %vm1669, %v3404, %v3406
        %v3408 = vrot.slane %v2874, 3
        %v3409 = vrot.slane %v2880, 3
        %v3410 = vsel %vm1669, %v3408, %v3409
        %v3411 = vrot.slane %v2886, 3
        %v3412 = vsel %vm1669, %v3409, %v3411
        %v3413 = vrot.slane %v2892, 3
        %v3414 = vrot.slane %v2898, 3
        %v3415 = vsel %vm1669, %v3413, %v3414
        %v3416 = vrot.slane %v2904, 3
        %v3417 = vsel %vm1669, %v3414, %v3416
        %v3418 = vrot.slane %v2910, 3
        %v3419 = vrot.slane %v2916, 3
        %v3420 = vsel %vm1669, %v3418, %v3419
        %v3421 = vrot.slane %v2922, 3
        %v3422 = vsel %vm1669, %v3419, %v3421
        %v3423 = vrot.slane %v2928, 3
        %v3424 = vrot.slane %v2934, 3
        %v3425 = vsel %vm1669, %v3423, %v3424
        %v3426 = vrot.slane %v2940, 3
        %v3427 = vsel %vm1669, %v3424, %v3426
        %v3428 = vrot.slane %v2946, 3
        %v3429 = vrot.slane %v2952, 3
        %v3430 = vsel %vm1669, %v3428, %v3429
        %v3431 = vrot.slane %v2958, 3
        %v3432 = vsel %vm1669, %v3429, %v3431
        %v3457 = vadd.f32 %v3345, %v3395
        %v3458 = vadd.f32 %v3346, %v3397
        %v3459 = vadd.f32 %v3347, %v3396
        %v3460 = vadd.f32 %v3348, %v3400
        %v3461 = vadd.f32 %v3349, %v3402
        %v3462 = vadd.f32 %v3350, %v3401
        %v3463 = vadd.f32 %v3351, %v3405
        %v3464 = vadd.f32 %v3352, %v3407
        %v3465 = vadd.f32 %v3353, %v3406
        %v3466 = vadd.f32 %v3354, %v3410
        %v3467 = vadd.f32 %v3355, %v3412
        %v3468 = vadd.f32 %v3356, %v3411
        %v3469 = vadd.f32 %v3357, %v3415
        %v3470 = vadd.f32 %v3358, %v3417
        %v3471 = vadd.f32 %v3359, %v3416
        %v3472 = vadd.f32 %v3360, %v3420
        %v3473 = vadd.f32 %v3361, %v3422
        %v3474 = vadd.f32 %v3362, %v3421
        %v3475 = vadd.f32 %v3363, %v3425
        %v3476 = vadd.f32 %v3364, %v3427
        %v3477 = vadd.f32 %v3365, %v3426
        %v3478 = vadd.f32 %v3366, %v3430
        %v3479 = vadd.f32 %v3367, %v3432
        %v3480 = vadd.f32 %v3368, %v3431
        %v3505 = vrot.slane %v3027, 4
        %v3506 = vrot.slane %v3032, 4
        %v3507 = vsel %vm1822, %v3505, %v3506
        %v3508 = vrot.slane %v3037, 4
        %v3509 = vsel %vm1822, %v3506, %v3508
        %v3510 = vrot.slane %v3042, 4
        %v3511 = vrot.slane %v3047, 4
        %v3512 = vsel %vm1822, %v3510, %v3511
        %v3513 = vrot.slane %v3052, 4
        %v3514 = vsel %vm1822, %v3511, %v3513
        %v3515 = vrot.slane %v3057, 4
        %v3516 = vrot.slane %v3062, 4
        %v3517 = vsel %vm1822, %v3515, %v3516
        %v3518 = vrot.slane %v3067, 4
        %v3519 = vsel %vm1822, %v3516, %v3518
        %v3520 = vrot.slane %v3072, 4
        %v3521 = vrot.slane %v3077, 4
        %v3522 = vsel %vm1822, %v3520, %v3521
        %v3523 = vrot.slane %v3082, 4
        %v3524 = vsel %vm1822, %v3521, %v3523
        %v3525 = vrot.slane %v3087, 4
        %v3526 = vrot.slane %v3092, 4
        %v3527 = vsel %vm1822, %v3525, %v3526
        %v3528 = vrot.slane %v3097, 4
        %v3529 = vsel %vm1822, %v3526, %v3528
        %v3530 = vrot.slane %v3102, 4
        %v3531 = vrot.slane %v3107, 4
        %v3532 = vsel %vm1822, %v3530, %v3531
        %v3533 = vrot.slane %v3112, 4
        %v3534 = vsel %vm1822, %v3531, %v3533
        %v3535 = vrot.slane %v3117, 4
        %v3536 = vrot.slane %v3122, 4
        %v3537 = vsel %vm1822, %v3535, %v3536
        %v3538 = vrot.slane %v3127, 4
        %v3539 = vsel %vm1822, %v3536, %v3538
        %v3540 = vrot.slane %v3132, 4
        %v3541 = vrot.slane %v3137, 4
        %v3542 = vsel %vm1822, %v3540, %v3541
        %v3543 = vrot.slane %v3142, 4
        %v3544 = vsel %vm1822, %v3541, %v3543
        %v3569 = vadd.f32 %v3457, %v3507
        %v3570 = vadd.f32 %v3458, %v3509
        %v3571 = vadd.f32 %v3459, %v3508
        %v3572 = vadd.f32 %v3460, %v3512
        %v3573 = vadd.f32 %v3461, %v3514
        %v3574 = vadd.f32 %v3462, %v3513
        %v3575 = vadd.f32 %v3463, %v3517
        %v3576 = vadd.f32 %v3464, %v3519
        %v3577 = vadd.f32 %v3465, %v3518
        %v3578 = vadd.f32 %v3466, %v3522
        %v3579 = vadd.f32 %v3467, %v3524
        %v3580 = vadd.f32 %v3468, %v3523
        %v3581 = vadd.f32 %v3469, %v3527
        %v3582 = vadd.f32 %v3470, %v3529
        %v3583 = vadd.f32 %v3471, %v3528
        %v3584 = vadd.f32 %v3472, %v3532
        %v3585 = vadd.f32 %v3473, %v3534
        %v3586 = vadd.f32 %v3474, %v3533
        %v3587 = vadd.f32 %v3475, %v3537
        %v3588 = vadd.f32 %v3476, %v3539
        %v3589 = vadd.f32 %v3477, %v3538
        %v3590 = vadd.f32 %v3478, %v3542
        %v3591 = vadd.f32 %v3479, %v3544
        %v3592 = vadd.f32 %v3480, %v3543
        %v3593 = vld [vmem:[%s4] sm:$0x1]
        %v3595 = vlaneseq
        %v3596 = vshrl.u32 %v3595, 7
        %v3597 = vsub.s32 0, %v3596
        %v3598 = vrot.slane %v3593, %v3597
        %v3600 = vadd.f32 %v3569, %v3598
        %v3601 = vadd.f32 %v3570, %v3598
        %v3602 = vadd.f32 %v3571, %v3598
        %v3603 = vadd.f32 %v3572, %v3598
        %v3604 = vadd.f32 %v3573, %v3598
        %v3605 = vadd.f32 %v3574, %v3598
        %v3606 = vadd.f32 %v3575, %v3598
        %v3607 = vadd.f32 %v3576, %v3598
        %v3608 = vadd.f32 %v3577, %v3598
        %v3609 = vadd.f32 %v3578, %v3598
        %v3610 = vadd.f32 %v3579, %v3598
        %v3611 = vadd.f32 %v3580, %v3598
        %v3612 = vadd.f32 %v3581, %v3598
        %v3613 = vadd.f32 %v3582, %v3598
        %v3614 = vadd.f32 %v3583, %v3598
        %v3615 = vadd.f32 %v3584, %v3598
        %v3616 = vadd.f32 %v3585, %v3598
        %v3617 = vadd.f32 %v3586, %v3598
        %v3618 = vadd.f32 %v3587, %v3598
        %v3619 = vadd.f32 %v3588, %v3598
        %v3620 = vadd.f32 %v3589, %v3598
        %v3621 = vadd.f32 %v3590, %v3598
        %v3622 = vadd.f32 %v3591, %v3598
        %v3623 = vadd.f32 %v3592, %v3598
        %v3624 = vmax.f32 %v3600, 0.0
        %v3625 = vmax.f32 %v3601, 0.0
        %v3626 = vmax.f32 %v3602, 0.0
        %v3627 = vmax.f32 %v3603, 0.0
        %v3628 = vmax.f32 %v3604, 0.0
        %v3629 = vmax.f32 %v3605, 0.0
        %v3630 = vmax.f32 %v3606, 0.0
        %v3631 = vmax.f32 %v3607, 0.0
        %v3632 = vmax.f32 %v3608, 0.0
        %v3633 = vmax.f32 %v3609, 0.0
        %v3634 = vmax.f32 %v3610, 0.0
        %v3635 = vmax.f32 %v3611, 0.0
        %v3636 = vmax.f32 %v3612, 0.0
        %v3637 = vmax.f32 %v3613, 0.0
        %v3638 = vmax.f32 %v3614, 0.0
        %v3639 = vmax.f32 %v3615, 0.0
        %v3640 = vmax.f32 %v3616, 0.0
        %v3641 = vmax.f32 %v3617, 0.0
        %v3642 = vmax.f32 %v3618, 0.0
        %v3643 = vmax.f32 %v3619, 0.0
        %v3644 = vmax.f32 %v3620, 0.0
        %v3645 = vmax.f32 %v3621, 0.0
        %v3646 = vmax.f32 %v3622, 0.0
        %v3647 = vmax.f32 %v3623, 0.0
        %v3672 = vrot.slane %v3624, 1
        %v3673 = vrot.slane %v3625, 1
        %v3674 = vsel %vm1363, %v3672, %v3673
        %v3675 = vrot.slane %v3626, 1
        %v3676 = vsel %vm1363, %v3673, %v3675
        %v3677 = vrot.slane %v3627, 1
        %v3678 = vrot.slane %v3628, 1
        %v3679 = vsel %vm1363, %v3677, %v3678
        %v3680 = vrot.slane %v3629, 1
        %v3681 = vsel %vm1363, %v3678, %v3680
        %v3682 = vrot.slane %v3630, 1
        %v3683 = vrot.slane %v3631, 1
        %v3684 = vsel %vm1363, %v3682, %v3683
        %v3685 = vrot.slane %v3632, 1
        %v3686 = vsel %vm1363, %v3683, %v3685
        %v3687 = vrot.slane %v3633, 1
        %v3688 = vrot.slane %v3634, 1
        %v3689 = vsel %vm1363, %v3687, %v3688
        %v3690 = vrot.slane %v3635, 1
        %v3691 = vsel %vm1363, %v3688, %v3690
        %v3692 = vrot.slane %v3636, 1
        %v3693 = vrot.slane %v3637, 1
        %v3694 = vsel %vm1363, %v3692, %v3693
        %v3695 = vrot.slane %v3638, 1
        %v3696 = vsel %vm1363, %v3693, %v3695
        %v3697 = vrot.slane %v3639, 1
        %v3698 = vrot.slane %v3640, 1
        %v3699 = vsel %vm1363, %v3697, %v3698
        %v3700 = vrot.slane %v3641, 1
        %v3701 = vsel %vm1363, %v3698, %v3700
        %v3702 = vrot.slane %v3642, 1
        %v3703 = vrot.slane %v3643, 1
        %v3704 = vsel %vm1363, %v3702, %v3703
        %v3705 = vrot.slane %v3644, 1
        %v3706 = vsel %vm1363, %v3703, %v3705
        %v3707 = vrot.slane %v3645, 1
        %v3708 = vrot.slane %v3646, 1
        %v3709 = vsel %vm1363, %v3707, %v3708
        %v3710 = vrot.slane %v3647, 1
        %v3711 = vsel %vm1363, %v3708, %v3710
        %v3728 = vmax.f32 %v3624, %v3674
        %v3729 = vmax.f32 %v3625, %v3676
        %v3730 = vmax.f32 %v3627, %v3679
        %v3731 = vmax.f32 %v3628, %v3681
        %v3732 = vmax.f32 %v3630, %v3684
        %v3733 = vmax.f32 %v3631, %v3686
        %v3734 = vmax.f32 %v3633, %v3689
        %v3735 = vmax.f32 %v3634, %v3691
        %v3736 = vmax.f32 %v3636, %v3694
        %v3737 = vmax.f32 %v3637, %v3696
        %v3738 = vmax.f32 %v3639, %v3699
        %v3739 = vmax.f32 %v3640, %v3701
        %v3740 = vmax.f32 %v3642, %v3704
        %v3741 = vmax.f32 %v3643, %v3706
        %v3742 = vmax.f32 %v3645, %v3709
        %v3743 = vmax.f32 %v3646, %v3711
        %v3744 = vrot.slane %v3624, 2
        %v3745 = vrot.slane %v3625, 2
        %v3746 = vsel %vm1516, %v3744, %v3745
        %v3747 = vrot.slane %v3626, 2
        %v3748 = vsel %vm1516, %v3745, %v3747
        %v3749 = vrot.slane %v3627, 2
        %v3750 = vrot.slane %v3628, 2
        %v3751 = vsel %vm1516, %v3749, %v3750
        %v3752 = vrot.slane %v3629, 2
        %v3753 = vsel %vm1516, %v3750, %v3752
        %v3754 = vrot.slane %v3630, 2
        %v3755 = vrot.slane %v3631, 2
        %v3756 = vsel %vm1516, %v3754, %v3755
        %v3757 = vrot.slane %v3632, 2
        %v3758 = vsel %vm1516, %v3755, %v3757
        %v3759 = vrot.slane %v3633, 2
        %v3760 = vrot.slane %v3634, 2
        %v3761 = vsel %vm1516, %v3759, %v3760
        %v3762 = vrot.slane %v3635, 2
        %v3763 = vsel %vm1516, %v3760, %v3762
        %v3764 = vrot.slane %v3636, 2
        %v3765 = vrot.slane %v3637, 2
        %v3766 = vsel %vm1516, %v3764, %v3765
        %v3767 = vrot.slane %v3638, 2
        %v3768 = vsel %vm1516, %v3765, %v3767
        %v3769 = vrot.slane %v3639, 2
        %v3770 = vrot.slane %v3640, 2
        %v3771 = vsel %vm1516, %v3769, %v3770
        %v3772 = vrot.slane %v3641, 2
        %v3773 = vsel %vm1516, %v3770, %v3772
        %v3774 = vrot.slane %v3642, 2
        %v3775 = vrot.slane %v3643, 2
        %v3776 = vsel %vm1516, %v3774, %v3775
        %v3777 = vrot.slane %v3644, 2
        %v3778 = vsel %vm1516, %v3775, %v3777
        %v3779 = vrot.slane %v3645, 2
        %v3780 = vrot.slane %v3646, 2
        %v3781 = vsel %vm1516, %v3779, %v3780
        %v3782 = vrot.slane %v3647, 2
        %v3783 = vsel %vm1516, %v3780, %v3782
        %v3800 = vmax.f32 %v3728, %v3746
        %v3801 = vmax.f32 %v3729, %v3748
        %v3802 = vmax.f32 %v3730, %v3751
        %v3803 = vmax.f32 %v3731, %v3753
        %v3804 = vmax.f32 %v3732, %v3756
        %v3805 = vmax.f32 %v3733, %v3758
        %v3806 = vmax.f32 %v3734, %v3761
        %v3807 = vmax.f32 %v3735, %v3763
        %v3808 = vmax.f32 %v3736, %v3766
        %v3809 = vmax.f32 %v3737, %v3768
        %v3810 = vmax.f32 %v3738, %v3771
        %v3811 = vmax.f32 %v3739, %v3773
        %v3812 = vmax.f32 %v3740, %v3776
        %v3813 = vmax.f32 %v3741, %v3778
        %v3814 = vmax.f32 %v3742, %v3781
        %v3815 = vmax.f32 %v3743, %v3783
        %v3816 = vrot.slane %v3624, 3
        %v3817 = vrot.slane %v3625, 3
        %v3818 = vsel %vm1669, %v3816, %v3817
        %v3819 = vrot.slane %v3626, 3
        %v3820 = vsel %vm1669, %v3817, %v3819
        %v3821 = vrot.slane %v3627, 3
        %v3822 = vrot.slane %v3628, 3
        %v3823 = vsel %vm1669, %v3821, %v3822
        %v3824 = vrot.slane %v3629, 3
        %v3825 = vsel %vm1669, %v3822, %v3824
        %v3826 = vrot.slane %v3630, 3
        %v3827 = vrot.slane %v3631, 3
        %v3828 = vsel %vm1669, %v3826, %v3827
        %v3829 = vrot.slane %v3632, 3
        %v3830 = vsel %vm1669, %v3827, %v3829
        %v3831 = vrot.slane %v3633, 3
        %v3832 = vrot.slane %v3634, 3
        %v3833 = vsel %vm1669, %v3831, %v3832
        %v3834 = vrot.slane %v3635, 3
        %v3835 = vsel %vm1669, %v3832, %v3834
        %v3836 = vrot.slane %v3636, 3
        %v3837 = vrot.slane %v3637, 3
        %v3838 = vsel %vm1669, %v3836, %v3837
        %v3839 = vrot.slane %v3638, 3
        %v3840 = vsel %vm1669, %v3837, %v3839
        %v3841 = vrot.slane %v3639, 3
        %v3842 = vrot.slane %v3640, 3
        %v3843 = vsel %vm1669, %v3841, %v3842
        %v3844 = vrot.slane %v3641, 3
        %v3845 = vsel %vm1669, %v3842, %v3844
        %v3846 = vrot.slane %v3642, 3
        %v3847 = vrot.slane %v3643, 3
        %v3848 = vsel %vm1669, %v3846, %v3847
        %v3849 = vrot.slane %v3644, 3
        %v3850 = vsel %vm1669, %v3847, %v3849
        %v3851 = vrot.slane %v3645, 3
        %v3852 = vrot.slane %v3646, 3
        %v3853 = vsel %vm1669, %v3851, %v3852
        %v3854 = vrot.slane %v3647, 3
        %v3855 = vsel %vm1669, %v3852, %v3854
        %v3872 = vmax.f32 %v3800, %v3818
        %v3873 = vmax.f32 %v3801, %v3820
        %v3874 = vmax.f32 %v3802, %v3823
        %v3875 = vmax.f32 %v3803, %v3825
        %v3876 = vmax.f32 %v3804, %v3828
        %v3877 = vmax.f32 %v3805, %v3830
        %v3878 = vmax.f32 %v3806, %v3833
        %v3879 = vmax.f32 %v3807, %v3835
        %v3880 = vmax.f32 %v3808, %v3838
        %v3881 = vmax.f32 %v3809, %v3840
        %v3882 = vmax.f32 %v3810, %v3843
        %v3883 = vmax.f32 %v3811, %v3845
        %v3884 = vmax.f32 %v3812, %v3848
        %v3885 = vmax.f32 %v3813, %v3850
        %v3886 = vmax.f32 %v3814, %v3853
        %v3887 = vmax.f32 %v3815, %v3855
        %v3888 = vrot.slane %v3624, 4
        %v3889 = vrot.slane %v3625, 4
        %v3890 = vsel %vm1822, %v3888, %v3889
        %v3891 = vrot.slane %v3626, 4
        %v3892 = vsel %vm1822, %v3889, %v3891
        %v3893 = vrot.slane %v3627, 4
        %v3894 = vrot.slane %v3628, 4
        %v3895 = vsel %vm1822, %v3893, %v3894
        %v3896 = vrot.slane %v3629, 4
        %v3897 = vsel %vm1822, %v3894, %v3896
        %v3898 = vrot.slane %v3630, 4
        %v3899 = vrot.slane %v3631, 4
        %v3900 = vsel %vm1822, %v3898, %v3899
        %v3901 = vrot.slane %v3632, 4
        %v3902 = vsel %vm1822, %v3899, %v3901
        %v3903 = vrot.slane %v3633, 4
        %v3904 = vrot.slane %v3634, 4
        %v3905 = vsel %vm1822, %v3903, %v3904
        %v3906 = vrot.slane %v3635, 4
        %v3907 = vsel %vm1822, %v3904, %v3906
        %v3908 = vrot.slane %v3636, 4
        %v3909 = vrot.slane %v3637, 4
        %v3910 = vsel %vm1822, %v3908, %v3909
        %v3911 = vrot.slane %v3638, 4
        %v3912 = vsel %vm1822, %v3909, %v3911
        %v3913 = vrot.slane %v3639, 4
        %v3914 = vrot.slane %v3640, 4
        %v3915 = vsel %vm1822, %v3913, %v3914
        %v3916 = vrot.slane %v3641, 4
        %v3917 = vsel %vm1822, %v3914, %v3916
        %v3918 = vrot.slane %v3642, 4
        %v3919 = vrot.slane %v3643, 4
        %v3920 = vsel %vm1822, %v3918, %v3919
        %v3921 = vrot.slane %v3644, 4
        %v3922 = vsel %vm1822, %v3919, %v3921
        %v3923 = vrot.slane %v3645, 4
        %v3924 = vrot.slane %v3646, 4
        %v3925 = vsel %vm1822, %v3923, %v3924
        %v3926 = vrot.slane %v3647, 4
        %v3927 = vsel %vm1822, %v3924, %v3926
        %v3944 = vmax.f32 %v3872, %v3890
        %v3945 = vmax.f32 %v3873, %v3892
        %v3946 = vmax.f32 %v3874, %v3895
        %v3947 = vmax.f32 %v3875, %v3897
        %v3948 = vmax.f32 %v3876, %v3900
        %v3949 = vmax.f32 %v3877, %v3902
        %v3950 = vmax.f32 %v3878, %v3905
        %v3951 = vmax.f32 %v3879, %v3907
        %v3952 = vmax.f32 %v3880, %v3910
        %v3953 = vmax.f32 %v3881, %v3912
        %v3954 = vmax.f32 %v3882, %v3915
        %v3955 = vmax.f32 %v3883, %v3917
        %v3956 = vmax.f32 %v3884, %v3920
        %v3957 = vmax.f32 %v3885, %v3922
        %v3958 = vmax.f32 %v3886, %v3925
        %v3959 = vmax.f32 %v3887, %v3927
        %v3960 = vld [vmem:[#allocation8] sm:$0xff]
        %v3961 = vld [vmem:[#allocation8 + $0x8] sm:$0xff]
        %v3962 = vld [vmem:[#allocation8 + $0x10] sm:$0xff]
        %v3963 = vld [vmem:[#allocation8 + $0x18] sm:$0xff]
        %v3964 = vld [vmem:[#allocation8 + $0x20] sm:$0xff]
        %v3965 = vld [vmem:[#allocation8 + $0x28] sm:$0xff]
        %v3966 = vld [vmem:[#allocation8 + $0x30] sm:$0xff]
        %v3967 = vld [vmem:[#allocation8 + $0x38] sm:$0xff]
        %v3968 = vld [vmem:[#allocation8 + $0x40] sm:$0xff]
        %v3969 = vld [vmem:[#allocation8 + $0x48] sm:$0xff]
        %v3970 = vld [vmem:[#allocation8 + $0x50] sm:$0xff]
        %v3971 = vld [vmem:[#allocation8 + $0x58] sm:$0xff]
        %v3972 = vld [vmem:[#allocation8 + $0x60] sm:$0xff]
        %v3973 = vld [vmem:[#allocation8 + $0x68] sm:$0xff]
        %v3974 = vld [vmem:[#allocation8 + $0x70] sm:$0xff]
        %v3975 = vld [vmem:[#allocation8 + $0x78] sm:$0xff]
        %v3976 = vld [vmem:[#allocation8 + $0x80] sm:$0xff]
        %v3977 = vld [vmem:[#allocation8 + $0x88] sm:$0xff]
        %v3978 = vld [vmem:[#allocation8 + $0x90] sm:$0xff]
        %v3979 = vld [vmem:[#allocation8 + $0x98] sm:$0xff]
        %v3980 = vld [vmem:[#allocation8 + $0xa0] sm:$0xff]
        %v3981 = vld [vmem:[#allocation8 + $0xa8] sm:$0xff]
        %v3982 = vld [vmem:[#allocation8 + $0xb0] sm:$0xff]
        %v3983 = vld [vmem:[#allocation8 + $0xb8] sm:$0xff]
        %v3984 = vld [vmem:[#allocation8 + $0xc0] sm:$0xff]
        %v3985 = vld [vmem:[#allocation8 + $0xc8] sm:$0xff]
        %v3986 = vld [vmem:[#allocation8 + $0xd0] sm:$0xff]
        %v3987 = vld [vmem:[#allocation8 + $0xd8] sm:$0xff]
        %v3988 = vld [vmem:[#allocation8 + $0xe0] sm:$0xff]
        %v3989 = vld [vmem:[#allocation8 + $0xe8] sm:$0xff]
        %v3990 = vld [vmem:[#allocation8 + $0xf0] sm:$0xff]
        %v3991 = vld [vmem:[#allocation8 + $0xf8] sm:$0xff]
        %v3992 = vld [vmem:[#allocation8 + $0x100] sm:$0xff]
        %v3993 = vld [vmem:[#allocation8 + $0x108] sm:$0xff]
        %v3994 = vld [vmem:[#allocation8 + $0x110] sm:$0xff]
        %v3995 = vld [vmem:[#allocation8 + $0x118] sm:$0xff]
        %v3996 = vld [vmem:[#allocation8 + $0x120] sm:$0xff]
        %v3997 = vld [vmem:[#allocation8 + $0x128] sm:$0xff]
        %v3998 = vld [vmem:[#allocation8 + $0x130] sm:$0xff]
        %v3999 = vld [vmem:[#allocation8 + $0x138] sm:$0xff]
        %v4000 = vld [vmem:[#allocation8 + $0x140] sm:$0xff]
        %v4001 = vld [vmem:[#allocation8 + $0x148] sm:$0xff]
        %v4002 = vld [vmem:[#allocation8 + $0x150] sm:$0xff]
        %v4003 = vld [vmem:[#allocation8 + $0x158] sm:$0xff]
        %v4004 = vld [vmem:[#allocation8 + $0x160] sm:$0xff]
        %v4005 = vld [vmem:[#allocation8 + $0x168] sm:$0xff]
        %v4006 = vld [vmem:[#allocation8 + $0x170] sm:$0xff]
        %v4007 = vld [vmem:[#allocation8 + $0x178] sm:$0xff]
        %v4008 = vld [vmem:[#allocation8 + $0x180] sm:$0xff]
        %v4009 = vld [vmem:[#allocation8 + $0x188] sm:$0xff]
        %v4010 = vld [vmem:[#allocation8 + $0x190] sm:$0xff]
        %v4011 = vld [vmem:[#allocation8 + $0x198] sm:$0xff]
        %v4012 = vld [vmem:[#allocation8 + $0x1a0] sm:$0xff]
        %v4013 = vld [vmem:[#allocation8 + $0x1a8] sm:$0xff]
        %v4014 = vld [vmem:[#allocation8 + $0x1b0] sm:$0xff]
        %v4015 = vld [vmem:[#allocation8 + $0x1b8] sm:$0xff]
        %v4016 = vld [vmem:[#allocation8 + $0x1c0] sm:$0xff]
        %v4017 = vld [vmem:[#allocation8 + $0x1c8] sm:$0xff]
        %v4018 = vld [vmem:[#allocation8 + $0x1d0] sm:$0xff]
        %v4019 = vld [vmem:[#allocation8 + $0x1d8] sm:$0xff]
        %v4020 = vld [vmem:[#allocation8 + $0x1e0] sm:$0xff]
        %v4021 = vld [vmem:[#allocation8 + $0x1e8] sm:$0xff]
        %v4022 = vld [vmem:[#allocation8 + $0x1f0] sm:$0xff]
        %v4023 = vld [vmem:[#allocation8 + $0x1f8] sm:$0xff]
        %v4024 = vld [vmem:[#allocation8 + $0x200] sm:$0xff]
        %v4025 = vld [vmem:[#allocation8 + $0x208] sm:$0xff]
        %v4026 = vld [vmem:[#allocation8 + $0x210] sm:$0xff]
        %v4027 = vld [vmem:[#allocation8 + $0x218] sm:$0xff]
        %v4028 = vld [vmem:[#allocation8 + $0x220] sm:$0xff]
        %v4029 = vld [vmem:[#allocation8 + $0x228] sm:$0xff]
        %v4030 = vld [vmem:[#allocation8 + $0x230] sm:$0xff]
        %v4031 = vld [vmem:[#allocation8 + $0x238] sm:$0xff]
        %v4032 = vld [vmem:[#allocation8 + $0x240] sm:$0xff]
        %v4033 = vld [vmem:[#allocation8 + $0x248] sm:$0xff]
        %v4034 = vld [vmem:[#allocation8 + $0x250] sm:$0xff]
        %v4035 = vld [vmem:[#allocation8 + $0x258] sm:$0xff]
        %v4036 = vld [vmem:[#allocation8 + $0x260] sm:$0xff]
        %v4037 = vld [vmem:[#allocation8 + $0x268] sm:$0xff]
        %v4038 = vld [vmem:[#allocation8 + $0x270] sm:$0xff]
        %v4039 = vld [vmem:[#allocation8 + $0x278] sm:$0xff]
        %4040 = vmatprep.subr.mxu0 %v3961
        %4041 = vmatpush1.msra.mxu0 %v3960
        %4042 = vmatprep.subr.mxu0 %v3966
        %4043 = vmatpush1.msra.mxu0 %v3965
        %4044 = vmatprep.subr.mxu0 %v3971
        %4045 = vmatpush1.msra.mxu0 %v3970
        %4046 = vmatprep.subr.mxu0 %v3976
        %4047 = vmatpush1.msra.mxu0 %v3975
        %4048 = vmatprep.subr.mxu0 %v3981
        %4049 = vmatpush1.msra.mxu0 %v3980
        %4050 = vmatprep.subr.mxu0 %v3986
        %4051 = vmatpush1.msra.mxu0 %v3985
        %4052 = vmatprep.subr.mxu0 %v3991
        %4053 = vmatpush1.msra.mxu0 %v3990
        %4054 = vmatprep.subr.mxu0 %v3996
        %4055 = vmatpush1.msra.mxu0 %v3995
        %4056 = vmatprep.subr.mxu0 %v4001
        %4057 = vmatpush1.msra.mxu0 %v4000
        %4058 = vmatprep.subr.mxu0 %v4006
        %4059 = vmatpush1.msra.mxu0 %v4005
        %4060 = vmatprep.subr.mxu0 %v4011
        %4061 = vmatpush1.msra.mxu0 %v4010
        %4062 = vmatprep.subr.mxu0 %v4016
        %4063 = vmatpush1.msra.mxu0 %v4015
        %4064 = vmatprep.subr.mxu0 %v4021
        %4065 = vmatpush1.msra.mxu0 %v4020
        %4066 = vmatprep.subr.mxu0 %v4026
        %4067 = vmatpush1.msra.mxu0 %v4025
        %4068 = vmatprep.subr.mxu0 %v4031
        %4069 = vmatpush1.msra.mxu0 %v4030
        %4070 = vmatprep.subr.mxu0 %v4036
        %4071 = vmatpush1.msra.mxu0 %v4035
        %4072 = vmatprep.subr.mxu0 0.0
        %4073 = vmatpush1.msra.mxu0 0.0
        %4074 = vmatprep.subr.mxu0 0.0
        %4075 = vmatpush1.msra.mxu0 0.0
        %4076 = vmatprep.subr.mxu0 0.0
        %4077 = vmatpush1.msra.mxu0 0.0
        %4078 = vmatprep.subr.mxu0 0.0
        %4079 = vmatpush1.msra.mxu0 0.0
        %4080 = vmatprep.subr.mxu0 0.0
        %4081 = vmatpush1.msra.mxu0 0.0
        %4082 = vmatprep.subr.mxu0 0.0
        %4083 = vmatpush1.msra.mxu0 0.0
        %4084 = vmatprep.subr.mxu0 0.0
        %4085 = vmatpush1.msra.mxu0 0.0
        %4086 = vmatprep.subr.mxu0 0.0
        %4087 = vmatpush1.msra.mxu0 0.0
        %4088 = vmatprep.subr.mxu0 0.0
        %4089 = vmatpush1.msra.mxu0 0.0
        %4090 = vmatprep.subr.mxu0 0.0
        %4091 = vmatpush1.msra.mxu0 0.0
        %4092 = vmatprep.subr.mxu0 0.0
        %4093 = vmatpush1.msra.mxu0 0.0
        %4094 = vmatprep.subr.mxu0 0.0
        %4095 = vmatpush1.msra.mxu0 0.0
        %4096 = vmatprep.subr.mxu0 0.0
        %4097 = vmatpush1.msra.mxu0 0.0
        %4098 = vmatprep.subr.mxu0 0.0
        %4099 = vmatpush1.msra.mxu0 0.0
        %4100 = vmatprep.subr.mxu0 0.0
        %4101 = vmatpush1.msra.mxu0 0.0
        %4102 = vmatprep.subr.mxu0 0.0
        %4103 = vmatpush1.msra.mxu0 0.0
        %4104 = vmatprep.mubr.f32.mxu0 0.0
        %4105 = vmatmul.mubr.f32.gmra.mrb[0].mxu0 %v3944
        %v4106 = vpop.f32.mrb[0].mxu0
        %v4107 = vadd.f32 0.0, %v4106
        %v4108 = vpop.f32.mrb[0].mxu0
        %v4109 = vadd.f32 0.0, %v4108
        %4110 = vmatprep.mubr.f32.mxu0 0.0
        %4111 = vmatmul.mubr.f32.gmra.mrb[0].mxu0 %v3945
        %v4112 = vpop.f32.mrb[0].mxu0
        %v4113 = vadd.f32 0.0, %v4112
        %v4114 = vpop.f32.mrb[0].mxu0
        %v4115 = vadd.f32 0.0, %v4114
        %4116 = vmatprep.mubr.f32.mxu0 0.0
        %4117 = vmatmul.mubr.f32.gmra.mrb[0].mxu0 %v3946
        %v4118 = vpop.f32.mrb[0].mxu0
        %v4119 = vadd.f32 0.0, %v4118
        %v4120 = vpop.f32.mrb[0].mxu0
        %v4121 = vadd.f32 0.0, %v4120
        %4122 = vmatprep.mubr.f32.mxu0 0.0
        %4123 = vmatmul.mubr.f32.gmra.mrb[0].mxu0 %v3947
        %v4124 = vpop.f32.mrb[0].mxu0
        %v4125 = vadd.f32 0.0, %v4124
        %v4126 = vpop.f32.mrb[0].mxu0
        %v4127 = vadd.f32 0.0, %v4126
        %4128 = vmatprep.mubr.f32.mxu0 0.0
        %4129 = vmatmul.mubr.f32.gmra.mrb[0].mxu0 %v3948
        %v4130 = vpop.f32.mrb[0].mxu0
        %v4131 = vadd.f32 0.0, %v4130
        %v4132 = vpop.f32.mrb[0].mxu0
        %v4133 = vadd.f32 0.0, %v4132
        %4134 = vmatprep.mubr.f32.mxu0 0.0
        %4135 = vmatmul.mubr.f32.gmra.mrb[0].mxu0 %v3949
        %v4136 = vpop.f32.mrb[0].mxu0
        %v4137 = vadd.f32 0.0, %v4136
        %v4138 = vpop.f32.mrb[0].mxu0
        %v4139 = vadd.f32 0.0, %v4138
        %4140 = vmatprep.mubr.f32.mxu0 0.0
        %4141 = vmatmul.mubr.f32.gmra.mrb[0].mxu0 %v3950
        %v4142 = vpop.f32.mrb[0].mxu0
        %v4143 = vadd.f32 0.0, %v4142
        %v4144 = vpop.f32.mrb[0].mxu0
        %v4145 = vadd.f32 0.0, %v4144
        %4146 = vmatprep.mubr.f32.mxu0 0.0
        %4147 = vmatmul.mubr.f32.gmra.mrb[0].mxu0 %v3951
        %v4148 = vpop.f32.mrb[0].mxu0
        %v4149 = vadd.f32 0.0, %v4148
        %v4150 = vpop.f32.mrb[0].mxu0
        %v4151 = vadd.f32 0.0, %v4150
        %4152 = vmatprep.mubr.f32.mxu0 0.0
        %4153 = vmatmul.mubr.f32.gmra.mrb[0].mxu0 %v3952
        %v4154 = vpop.f32.mrb[0].mxu0
        %v4155 = vadd.f32 0.0, %v4154
        %v4156 = vpop.f32.mrb[0].mxu0
        %v4157 = vadd.f32 0.0, %v4156
        %4158 = vmatprep.mubr.f32.mxu0 0.0
        %4159 = vmatmul.mubr.f32.gmra.mrb[0].mxu0 %v3953
        %v4160 = vpop.f32.mrb[0].mxu0
        %v4161 = vadd.f32 0.0, %v4160
        %v4162 = vpop.f32.mrb[0].mxu0
        %v4163 = vadd.f32 0.0, %v4162
        %4164 = vmatprep.mubr.f32.mxu0 0.0
        %4165 = vmatmul.mubr.f32.gmra.mrb[0].mxu0 %v3954
        %v4166 = vpop.f32.mrb[0].mxu0
        %v4167 = vadd.f32 0.0, %v4166
        %v4168 = vpop.f32.mrb[0].mxu0
        %v4169 = vadd.f32 0.0, %v4168
        %4170 = vmatprep.mubr.f32.mxu0 0.0
        %4171 = vmatmul.mubr.f32.gmra.mrb[0].mxu0 %v3955
        %v4172 = vpop.f32.mrb[0].mxu0
        %v4173 = vadd.f32 0.0, %v4172
        %v4174 = vpop.f32.mrb[0].mxu0
        %v4175 = vadd.f32 0.0, %v4174
        %4176 = vmatprep.mubr.f32.mxu0 0.0
        %4177 = vmatmul.mubr.f32.gmra.mrb[0].mxu0 %v3956
        %v4178 = vpop.f32.mrb[0].mxu0
        %v4179 = vadd.f32 0.0, %v4178
        %v4180 = vpop.f32.mrb[0].mxu0
        %v4181 = vadd.f32 0.0, %v4180
        %4182 = vmatprep.mubr.f32.mxu0 0.0
        %4183 = vmatmul.mubr.f32.gmra.mrb[0].mxu0 %v3957
        %v4184 = vpop.f32.mrb[0].mxu0
        %v4185 = vadd.f32 0.0, %v4184
        %v4186 = vpop.f32.mrb[0].mxu0
        %v4187 = vadd.f32 0.0, %v4186
        %4188 = vmatprep.mubr.f32.mxu0 0.0
        %4189 = vmatmul.mubr.f32.gmra.mrb[0].mxu0 %v3958
        %v4190 = vpop.f32.mrb[0].mxu0
        %v4191 = vadd.f32 0.0, %v4190
        %v4192 = vpop.f32.mrb[0].mxu0
        %v4193 = vadd.f32 0.0, %v4192
        %4194 = vmatprep.mubr.f32.mxu0 0.0
        %4195 = vmatmul.mubr.f32.gmra.mrb[0].mxu0 %v3959
        %v4196 = vpop.f32.mrb[0].mxu0
        %v4197 = vadd.f32 0.0, %v4196
        %v4198 = vpop.f32.mrb[0].mxu0
        %v4199 = vadd.f32 0.0, %v4198
        %4200 = vdwg.mxu0
        %4201 = vmatprep.subr.mxu0 %v3963
        %4202 = vmatpush1.msra.mxu0 %v3962
        %4203 = vmatprep.subr.mxu0 %v3968
        %4204 = vmatpush1.msra.mxu0 %v3967
        %4205 = vmatprep.subr.mxu0 %v3973
        %4206 = vmatpush1.msra.mxu0 %v3972
        %4207 = vmatprep.subr.mxu0 %v3978
        %4208 = vmatpush1.msra.mxu0 %v3977
        %4209 = vmatprep.subr.mxu0 %v3983
        %4210 = vmatpush1.msra.mxu0 %v3982
        %4211 = vmatprep.subr.mxu0 %v3988
        %4212 = vmatpush1.msra.mxu0 %v3987
        %4213 = vmatprep.subr.mxu0 %v3993
        %4214 = vmatpush1.msra.mxu0 %v3992
        %4215 = vmatprep.subr.mxu0 %v3998
        %4216 = vmatpush1.msra.mxu0 %v3997
        %4217 = vmatprep.subr.mxu0 %v4003
        %4218 = vmatpush1.msra.mxu0 %v4002
        %4219 = vmatprep.subr.mxu0 %v4008
        %4220 = vmatpush1.msra.mxu0 %v4007
        %4221 = vmatprep.subr.mxu0 %v4013
        %4222 = vmatpush1.msra.mxu0 %v4012
        %4223 = vmatprep.subr.mxu0 %v4018
        %4224 = vmatpush1.msra.mxu0 %v4017
        %4225 = vmatprep.subr.mxu0 %v4023
        %4226 = vmatpush1.msra.mxu0 %v4022
        %4227 = vmatprep.subr.mxu0 %v4028
        %4228 = vmatpush1.msra.mxu0 %v4027
        %4229 = vmatprep.subr.mxu0 %v4033
        %4230 = vmatpush1.msra.mxu0 %v4032
        %4231 = vmatprep.subr.mxu0 %v4038
        %4232 = vmatpush1.msra.mxu0 %v4037
        %4233 = vmatprep.subr.mxu0 0.0
        %4234 = vmatpush1.msra.mxu0 0.0
        %4235 = vmatprep.subr.mxu0 0.0
        %4236 = vmatpush1.msra.mxu0 0.0
        %4237 = vmatprep.subr.mxu0 0.0
        %4238 = vmatpush1.msra.mxu0 0.0
        %4239 = vmatprep.subr.mxu0 0.0
        %4240 = vmatpush1.msra.mxu0 0.0
        %4241 = vmatprep.subr.mxu0 0.0
        %4242 = vmatpush1.msra.mxu0 0.0
        %4243 = vmatprep.subr.mxu0 0.0
        %4244 = vmatpush1.msra.mxu0 0.0
        %4245 = vmatprep.subr.mxu0 0.0
        %4246 = vmatpush1.msra.mxu0 0.0
        %4247 = vmatprep.subr.mxu0 0.0
        %4248 = vmatpush1.msra.mxu0 0.0
        %4249 = vmatprep.subr.mxu0 0.0
        %4250 = vmatpush1.msra.mxu0 0.0
        %4251 = vmatprep.subr.mxu0 0.0
        %4252 = vmatpush1.msra.mxu0 0.0
        %4253 = vmatprep.subr.mxu0 0.0
        %4254 = vmatpush1.msra.mxu0 0.0
        %4255 = vmatprep.subr.mxu0 0.0
        %4256 = vmatpush1.msra.mxu0 0.0
        %4257 = vmatprep.subr.mxu0 0.0
        %4258 = vmatpush1.msra.mxu0 0.0
        %4259 = vmatprep.subr.mxu0 0.0
        %4260 = vmatpush1.msra.mxu0 0.0
        %4261 = vmatprep.subr.mxu0 0.0
        %4262 = vmatpush1.msra.mxu0 0.0
        %4263 = vmatprep.subr.mxu0 0.0
        %4264 = vmatpush1.msra.mxu0 0.0
        %4265 = vmatprep.mubr.f32.mxu0 0.0
        %4266 = vmatmul.mubr.f32.gmra.mrb[0].mxu0 %v3944
        %v4267 = vpop.f32.mrb[0].mxu0
        %v4268 = vadd.f32 0.0, %v4267
        %v4269 = vpop.f32.mrb[0].mxu0
        %v4270 = vadd.f32 0.0, %v4269
        %4271 = vmatprep.mubr.f32.mxu0 0.0
        %4272 = vmatmul.mubr.f32.gmra.mrb[0].mxu0 %v3945
        %v4273 = vpop.f32.mrb[0].mxu0
        %v4274 = vadd.f32 0.0, %v4273
        %v4275 = vpop.f32.mrb[0].mxu0
        %v4276 = vadd.f32 0.0, %v4275
        %4277 = vmatprep.mubr.f32.mxu0 0.0
        %4278 = vmatmul.mubr.f32.gmra.mrb[0].mxu0 %v3946
        %v4279 = vpop.f32.mrb[0].mxu0
        %v4280 = vadd.f32 0.0, %v4279
        %v4281 = vpop.f32.mrb[0].mxu0
        %v4282 = vadd.f32 0.0, %v4281
        %4283 = vmatprep.mubr.f32.mxu0 0.0
        %4284 = vmatmul.mubr.f32.gmra.mrb[0].mxu0 %v3947
        %v4285 = vpop.f32.mrb[0].mxu0
        %v4286 = vadd.f32 0.0, %v4285
        %v4287 = vpop.f32.mrb[0].mxu0
        %v4288 = vadd.f32 0.0, %v4287
        %4289 = vmatprep.mubr.f32.mxu0 0.0
        %4290 = vmatmul.mubr.f32.gmra.mrb[0].mxu0 %v3948
        %v4291 = vpop.f32.mrb[0].mxu0
        %v4292 = vadd.f32 0.0, %v4291
        %v4293 = vpop.f32.mrb[0].mxu0
        %v4294 = vadd.f32 0.0, %v4293
        %4295 = vmatprep.mubr.f32.mxu0 0.0
        %4296 = vmatmul.mubr.f32.gmra.mrb[0].mxu0 %v3949
        %v4297 = vpop.f32.mrb[0].mxu0
        %v4298 = vadd.f32 0.0, %v4297
        %v4299 = vpop.f32.mrb[0].mxu0
        %v4300 = vadd.f32 0.0, %v4299
        %4301 = vmatprep.mubr.f32.mxu0 0.0
        %4302 = vmatmul.mubr.f32.gmra.mrb[0].mxu0 %v3950
        %v4303 = vpop.f32.mrb[0].mxu0
        %v4304 = vadd.f32 0.0, %v4303
        %v4305 = vpop.f32.mrb[0].mxu0
        %v4306 = vadd.f32 0.0, %v4305
        %4307 = vmatprep.mubr.f32.mxu0 0.0
        %4308 = vmatmul.mubr.f32.gmra.mrb[0].mxu0 %v3951
        %v4309 = vpop.f32.mrb[0].mxu0
        %v4310 = vadd.f32 0.0, %v4309
        %v4311 = vpop.f32.mrb[0].mxu0
        %v4312 = vadd.f32 0.0, %v4311
        %4313 = vmatprep.mubr.f32.mxu0 0.0
        %4314 = vmatmul.mubr.f32.gmra.mrb[0].mxu0 %v3952
        %v4315 = vpop.f32.mrb[0].mxu0
        %v4316 = vadd.f32 0.0, %v4315
        %v4317 = vpop.f32.mrb[0].mxu0
        %v4318 = vadd.f32 0.0, %v4317
        %4319 = vmatprep.mubr.f32.mxu0 0.0
        %4320 = vmatmul.mubr.f32.gmra.mrb[0].mxu0 %v3953
        %v4321 = vpop.f32.mrb[0].mxu0
        %v4322 = vadd.f32 0.0, %v4321
        %v4323 = vpop.f32.mrb[0].mxu0
        %v4324 = vadd.f32 0.0, %v4323
        %4325 = vmatprep.mubr.f32.mxu0 0.0
        %4326 = vmatmul.mubr.f32.gmra.mrb[0].mxu0 %v3954
        %v4327 = vpop.f32.mrb[0].mxu0
        %v4328 = vadd.f32 0.0, %v4327
        %v4329 = vpop.f32.mrb[0].mxu0
        %v4330 = vadd.f32 0.0, %v4329
        %4331 = vmatprep.mubr.f32.mxu0 0.0
        %4332 = vmatmul.mubr.f32.gmra.mrb[0].mxu0 %v3955
        %v4333 = vpop.f32.mrb[0].mxu0
        %v4334 = vadd.f32 0.0, %v4333
        %v4335 = vpop.f32.mrb[0].mxu0
        %v4336 = vadd.f32 0.0, %v4335
        %4337 = vmatprep.mubr.f32.mxu0 0.0
        %4338 = vmatmul.mubr.f32.gmra.mrb[0].mxu0 %v3956
        %v4339 = vpop.f32.mrb[0].mxu0
        %v4340 = vadd.f32 0.0, %v4339
        %v4341 = vpop.f32.mrb[0].mxu0
        %v4342 = vadd.f32 0.0, %v4341
        %4343 = vmatprep.mubr.f32.mxu0 0.0
        %4344 = vmatmul.mubr.f32.gmra.mrb[0].mxu0 %v3957
        %v4345 = vpop.f32.mrb[0].mxu0
        %v4346 = vadd.f32 0.0, %v4345
        %v4347 = vpop.f32.mrb[0].mxu0
        %v4348 = vadd.f32 0.0, %v4347
        %4349 = vmatprep.mubr.f32.mxu0 0.0
        %4350 = vmatmul.mubr.f32.gmra.mrb[0].mxu0 %v3958
        %v4351 = vpop.f32.mrb[0].mxu0
        %v4352 = vadd.f32 0.0, %v4351
        %v4353 = vpop.f32.mrb[0].mxu0
        %v4354 = vadd.f32 0.0, %v4353
        %4355 = vmatprep.mubr.f32.mxu0 0.0
        %4356 = vmatmul.mubr.f32.gmra.mrb[0].mxu0 %v3959
        %v4357 = vpop.f32.mrb[0].mxu0
        %v4358 = vadd.f32 0.0, %v4357
        %v4359 = vpop.f32.mrb[0].mxu0
        %v4360 = vadd.f32 0.0, %v4359
        %4361 = vdwg.mxu0
        %4362 = vmatprep.subr.mxu0 0.0
        %4363 = vmatpush1.msra.mxu0 %v3964
        %4364 = vmatprep.subr.mxu0 0.0
        %4365 = vmatpush1.msra.mxu0 %v3969
        %4366 = vmatprep.subr.mxu0 0.0
        %4367 = vmatpush1.msra.mxu0 %v3974
        %4368 = vmatprep.subr.mxu0 0.0
        %4369 = vmatpush1.msra.mxu0 %v3979
        %4370 = vmatprep.subr.mxu0 0.0
        %4371 = vmatpush1.msra.mxu0 %v3984
        %4372 = vmatprep.subr.mxu0 0.0
        %4373 = vmatpush1.msra.mxu0 %v3989
        %4374 = vmatprep.subr.mxu0 0.0
        %4375 = vmatpush1.msra.mxu0 %v3994
        %4376 = vmatprep.subr.mxu0 0.0
        %4377 = vmatpush1.msra.mxu0 %v3999
        %4378 = vmatprep.subr.mxu0 0.0
        %4379 = vmatpush1.msra.mxu0 %v4004
        %4380 = vmatprep.subr.mxu0 0.0
        %4381 = vmatpush1.msra.mxu0 %v4009
        %4382 = vmatprep.subr.mxu0 0.0
        %4383 = vmatpush1.msra.mxu0 %v4014
        %4384 = vmatprep.subr.mxu0 0.0
        %4385 = vmatpush1.msra.mxu0 %v4019
        %4386 = vmatprep.subr.mxu0 0.0
        %4387 = vmatpush1.msra.mxu0 %v4024
        %4388 = vmatprep.subr.mxu0 0.0
        %4389 = vmatpush1.msra.mxu0 %v4029
        %4390 = vmatprep.subr.mxu0 0.0
        %4391 = vmatpush1.msra.mxu0 %v4034
        %4392 = vmatprep.subr.mxu0 0.0
        %4393 = vmatpush1.msra.mxu0 %v4039
        %4394 = vmatprep.subr.mxu0 0.0
        %4395 = vmatpush1.msra.mxu0 0.0
        %4396 = vmatprep.subr.mxu0 0.0
        %4397 = vmatpush1.msra.mxu0 0.0
        %4398 = vmatprep.subr.mxu0 0.0
        %4399 = vmatpush1.msra.mxu0 0.0
        %4400 = vmatprep.subr.mxu0 0.0
        %4401 = vmatpush1.msra.mxu0 0.0
        %4402 = vmatprep.subr.mxu0 0.0
        %4403 = vmatpush1.msra.mxu0 0.0
        %4404 = vmatprep.subr.mxu0 0.0
        %4405 = vmatpush1.msra.mxu0 0.0
        %4406 = vmatprep.subr.mxu0 0.0
        %4407 = vmatpush1.msra.mxu0 0.0
        %4408 = vmatprep.subr.mxu0 0.0
        %4409 = vmatpush1.msra.mxu0 0.0
        %4410 = vmatprep.subr.mxu0 0.0
        %4411 = vmatpush1.msra.mxu0 0.0
        %4412 = vmatprep.subr.mxu0 0.0
        %4413 = vmatpush1.msra.mxu0 0.0
        %4414 = vmatprep.subr.mxu0 0.0
        %4415 = vmatpush1.msra.mxu0 0.0
        %4416 = vmatprep.subr.mxu0 0.0
        %4417 = vmatpush1.msra.mxu0 0.0
        %4418 = vmatprep.subr.mxu0 0.0
        %4419 = vmatpush1.msra.mxu0 0.0
        %4420 = vmatprep.subr.mxu0 0.0
        %4421 = vmatpush1.msra.mxu0 0.0
        %4422 = vmatprep.subr.mxu0 0.0
        %4423 = vmatpush1.msra.mxu0 0.0
        %4424 = vmatprep.subr.mxu0 0.0
        %4425 = vmatpush1.msra.mxu0 0.0
        %4426 = vmatprep.mubr.f32.mxu0 0.0
        %4427 = vmatmul.mubr.f32.gmra.mrb[0].mxu0 %v3944
        %v4428 = vpop.f32.mrb[0].mxu0
        %v4429 = vadd.f32 0.0, %v4428
        %v4430 = vpop.f32.mrb[0].mxu0
        %4431 = vmatprep.mubr.f32.mxu0 0.0
        %4432 = vmatmul.mubr.f32.gmra.mrb[0].mxu0 %v3945
        %v4433 = vpop.f32.mrb[0].mxu0
        %v4434 = vadd.f32 0.0, %v4433
        %v4435 = vpop.f32.mrb[0].mxu0
        %4436 = vmatprep.mubr.f32.mxu0 0.0
        %4437 = vmatmul.mubr.f32.gmra.mrb[0].mxu0 %v3946
        %v4438 = vpop.f32.mrb[0].mxu0
        %v4439 = vadd.f32 0.0, %v4438
        %v4440 = vpop.f32.mrb[0].mxu0
        %4441 = vmatprep.mubr.f32.mxu0 0.0
        %4442 = vmatmul.mubr.f32.gmra.mrb[0].mxu0 %v3947
        %v4443 = vpop.f32.mrb[0].mxu0
        %v4444 = vadd.f32 0.0, %v4443
        %v4445 = vpop.f32.mrb[0].mxu0
        %4446 = vmatprep.mubr.f32.mxu0 0.0
        %4447 = vmatmul.mubr.f32.gmra.mrb[0].mxu0 %v3948
        %v4448 = vpop.f32.mrb[0].mxu0
        %v4449 = vadd.f32 0.0, %v4448
        %v4450 = vpop.f32.mrb[0].mxu0
        %4451 = vmatprep.mubr.f32.mxu0 0.0
        %4452 = vmatmul.mubr.f32.gmra.mrb[0].mxu0 %v3949
        %v4453 = vpop.f32.mrb[0].mxu0
        %v4454 = vadd.f32 0.0, %v4453
        %v4455 = vpop.f32.mrb[0].mxu0
        %4456 = vmatprep.mubr.f32.mxu0 0.0
        %4457 = vmatmul.mubr.f32.gmra.mrb[0].mxu0 %v3950
        %v4458 = vpop.f32.mrb[0].mxu0
        %v4459 = vadd.f32 0.0, %v4458
        %v4460 = vpop.f32.mrb[0].mxu0
        %4461 = vmatprep.mubr.f32.mxu0 0.0
        %4462 = vmatmul.mubr.f32.gmra.mrb[0].mxu0 %v3951
        %v4463 = vpop.f32.mrb[0].mxu0
        %v4464 = vadd.f32 0.0, %v4463
        %v4465 = vpop.f32.mrb[0].mxu0
        %4466 = vmatprep.mubr.f32.mxu0 0.0
        %4467 = vmatmul.mubr.f32.gmra.mrb[0].mxu0 %v3952
        %v4468 = vpop.f32.mrb[0].mxu0
        %v4469 = vadd.f32 0.0, %v4468
        %v4470 = vpop.f32.mrb[0].mxu0
        %4471 = vmatprep.mubr.f32.mxu0 0.0
        %4472 = vmatmul.mubr.f32.gmra.mrb[0].mxu0 %v3953
        %v4473 = vpop.f32.mrb[0].mxu0
        %v4474 = vadd.f32 0.0, %v4473
        %v4475 = vpop.f32.mrb[0].mxu0
        %4476 = vmatprep.mubr.f32.mxu0 0.0
        %4477 = vmatmul.mubr.f32.gmra.mrb[0].mxu0 %v3954
        %v4478 = vpop.f32.mrb[0].mxu0
        %v4479 = vadd.f32 0.0, %v4478
        %v4480 = vpop.f32.mrb[0].mxu0
        %4481 = vmatprep.mubr.f32.mxu0 0.0
        %4482 = vmatmul.mubr.f32.gmra.mrb[0].mxu0 %v3955
        %v4483 = vpop.f32.mrb[0].mxu0
        %v4484 = vadd.f32 0.0, %v4483
        %v4485 = vpop.f32.mrb[0].mxu0
        %4486 = vmatprep.mubr.f32.mxu0 0.0
        %4487 = vmatmul.mubr.f32.gmra.mrb[0].mxu0 %v3956
        %v4488 = vpop.f32.mrb[0].mxu0
        %v4489 = vadd.f32 0.0, %v4488
        %v4490 = vpop.f32.mrb[0].mxu0
        %4491 = vmatprep.mubr.f32.mxu0 0.0
        %4492 = vmatmul.mubr.f32.gmra.mrb[0].mxu0 %v3957
        %v4493 = vpop.f32.mrb[0].mxu0
        %v4494 = vadd.f32 0.0, %v4493
        %v4495 = vpop.f32.mrb[0].mxu0
        %4496 = vmatprep.mubr.f32.mxu0 0.0
        %4497 = vmatmul.mubr.f32.gmra.mrb[0].mxu0 %v3958
        %v4498 = vpop.f32.mrb[0].mxu0
        %v4499 = vadd.f32 0.0, %v4498
        %v4500 = vpop.f32.mrb[0].mxu0
        %4501 = vmatprep.mubr.f32.mxu0 0.0
        %4502 = vmatmul.mubr.f32.gmra.mrb[0].mxu0 %v3959
        %v4503 = vpop.f32.mrb[0].mxu0
        %v4504 = vadd.f32 0.0, %v4503
        %v4505 = vpop.f32.mrb[0].mxu0
        %4506 = vdwg.mxu0
        %v4523 = vrot.slane %v4109, 1
        %v4524 = vrot.slane %v4115, 1
        %v4525 = vsel %vm1363, %v4523, %v4524
        %v4526 = vrot.slane %v4121, 1
        %v4527 = vrot.slane %v4127, 1
        %v4528 = vsel %vm1363, %v4526, %v4527
        %v4529 = vrot.slane %v4133, 1
        %v4530 = vrot.slane %v4139, 1
        %v4531 = vsel %vm1363, %v4529, %v4530
        %v4532 = vrot.slane %v4145, 1
        %v4533 = vrot.slane %v4151, 1
        %v4534 = vsel %vm1363, %v4532, %v4533
        %v4535 = vrot.slane %v4157, 1
        %v4536 = vrot.slane %v4163, 1
        %v4537 = vsel %vm1363, %v4535, %v4536
        %v4538 = vrot.slane %v4169, 1
        %v4539 = vrot.slane %v4175, 1
        %v4540 = vsel %vm1363, %v4538, %v4539
        %v4541 = vrot.slane %v4181, 1
        %v4542 = vrot.slane %v4187, 1
        %v4543 = vsel %vm1363, %v4541, %v4542
        %v4544 = vrot.slane %v4193, 1
        %v4545 = vrot.slane %v4199, 1
        %v4546 = vsel %vm1363, %v4544, %v4545
        %v4563 = vadd.f32 %v4107, %v4525
        %v4564 = vadd.f32 %v4113, %v4524
        %v4565 = vadd.f32 %v4119, %v4528
        %v4566 = vadd.f32 %v4125, %v4527
        %v4567 = vadd.f32 %v4131, %v4531
        %v4568 = vadd.f32 %v4137, %v4530
        %v4569 = vadd.f32 %v4143, %v4534
        %v4570 = vadd.f32 %v4149, %v4533
        %v4571 = vadd.f32 %v4155, %v4537
        %v4572 = vadd.f32 %v4161, %v4536
        %v4573 = vadd.f32 %v4167, %v4540
        %v4574 = vadd.f32 %v4173, %v4539
        %v4575 = vadd.f32 %v4179, %v4543
        %v4576 = vadd.f32 %v4185, %v4542
        %v4577 = vadd.f32 %v4191, %v4546
        %v4578 = vadd.f32 %v4197, %v4545
        %v4595 = vrot.slane %v4268, 2
        %v4596 = vrot.slane %v4274, 2
        %v4597 = vsel %vm1516, %v4595, %v4596
        %v4598 = vrot.slane %v4280, 2
        %v4599 = vrot.slane %v4286, 2
        %v4600 = vsel %vm1516, %v4598, %v4599
        %v4601 = vrot.slane %v4292, 2
        %v4602 = vrot.slane %v4298, 2
        %v4603 = vsel %vm1516, %v4601, %v4602
        %v4604 = vrot.slane %v4304, 2
        %v4605 = vrot.slane %v4310, 2
        %v4606 = vsel %vm1516, %v4604, %v4605
        %v4607 = vrot.slane %v4316, 2
        %v4608 = vrot.slane %v4322, 2
        %v4609 = vsel %vm1516, %v4607, %v4608
        %v4610 = vrot.slane %v4328, 2
        %v4611 = vrot.slane %v4334, 2
        %v4612 = vsel %vm1516, %v4610, %v4611
        %v4613 = vrot.slane %v4340, 2
        %v4614 = vrot.slane %v4346, 2
        %v4615 = vsel %vm1516, %v4613, %v4614
        %v4616 = vrot.slane %v4352, 2
        %v4617 = vrot.slane %v4358, 2
        %v4618 = vsel %vm1516, %v4616, %v4617
        %v4635 = vadd.f32 %v4563, %v4597
        %v4636 = vadd.f32 %v4564, %v4596
        %v4637 = vadd.f32 %v4565, %v4600
        %v4638 = vadd.f32 %v4566, %v4599
        %v4639 = vadd.f32 %v4567, %v4603
        %v4640 = vadd.f32 %v4568, %v4602
        %v4641 = vadd.f32 %v4569, %v4606
        %v4642 = vadd.f32 %v4570, %v4605
        %v4643 = vadd.f32 %v4571, %v4609
        %v4644 = vadd.f32 %v4572, %v4608
        %v4645 = vadd.f32 %v4573, %v4612
        %v4646 = vadd.f32 %v4574, %v4611
        %v4647 = vadd.f32 %v4575, %v4615
        %v4648 = vadd.f32 %v4576, %v4614
        %v4649 = vadd.f32 %v4577, %v4618
        %v4650 = vadd.f32 %v4578, %v4617
        %v4667 = vrot.slane %v4270, 3
        %v4668 = vrot.slane %v4276, 3
        %v4669 = vsel %vm1669, %v4667, %v4668
        %v4670 = vrot.slane %v4282, 3
        %v4671 = vrot.slane %v4288, 3
        %v4672 = vsel %vm1669, %v4670, %v4671
        %v4673 = vrot.slane %v4294, 3
        %v4674 = vrot.slane %v4300, 3
        %v4675 = vsel %vm1669, %v4673, %v4674
        %v4676 = vrot.slane %v4306, 3
        %v4677 = vrot.slane %v4312, 3
        %v4678 = vsel %vm1669, %v4676, %v4677
        %v4679 = vrot.slane %v4318, 3
        %v4680 = vrot.slane %v4324, 3
        %v4681 = vsel %vm1669, %v4679, %v4680
        %v4682 = vrot.slane %v4330, 3
        %v4683 = vrot.slane %v4336, 3
        %v4684 = vsel %vm1669, %v4682, %v4683
        %v4685 = vrot.slane %v4342, 3
        %v4686 = vrot.slane %v4348, 3
        %v4687 = vsel %vm1669, %v4685, %v4686
        %v4688 = vrot.slane %v4354, 3
        %v4689 = vrot.slane %v4360, 3
        %v4690 = vsel %vm1669, %v4688, %v4689
        %v4707 = vadd.f32 %v4635, %v4669
        %v4708 = vadd.f32 %v4636, %v4668
        %v4709 = vadd.f32 %v4637, %v4672
        %v4710 = vadd.f32 %v4638, %v4671
        %v4711 = vadd.f32 %v4639, %v4675
        %v4712 = vadd.f32 %v4640, %v4674
        %v4713 = vadd.f32 %v4641, %v4678
        %v4714 = vadd.f32 %v4642, %v4677
        %v4715 = vadd.f32 %v4643, %v4681
        %v4716 = vadd.f32 %v4644, %v4680
        %v4717 = vadd.f32 %v4645, %v4684
        %v4718 = vadd.f32 %v4646, %v4683
        %v4719 = vadd.f32 %v4647, %v4687
        %v4720 = vadd.f32 %v4648, %v4686
        %v4721 = vadd.f32 %v4649, %v4690
        %v4722 = vadd.f32 %v4650, %v4689
        %v4739 = vrot.slane %v4429, 4
        %v4740 = vrot.slane %v4434, 4
        %v4741 = vsel %vm1822, %v4739, %v4740
        %v4742 = vrot.slane %v4439, 4
        %v4743 = vrot.slane %v4444, 4
        %v4744 = vsel %vm1822, %v4742, %v4743
        %v4745 = vrot.slane %v4449, 4
        %v4746 = vrot.slane %v4454, 4
        %v4747 = vsel %vm1822, %v4745, %v4746
        %v4748 = vrot.slane %v4459, 4
        %v4749 = vrot.slane %v4464, 4
        %v4750 = vsel %vm1822, %v4748, %v4749
        %v4751 = vrot.slane %v4469, 4
        %v4752 = vrot.slane %v4474, 4
        %v4753 = vsel %vm1822, %v4751, %v4752
        %v4754 = vrot.slane %v4479, 4
        %v4755 = vrot.slane %v4484, 4
        %v4756 = vsel %vm1822, %v4754, %v4755
        %v4757 = vrot.slane %v4489, 4
        %v4758 = vrot.slane %v4494, 4
        %v4759 = vsel %vm1822, %v4757, %v4758
        %v4760 = vrot.slane %v4499, 4
        %v4761 = vrot.slane %v4504, 4
        %v4762 = vsel %vm1822, %v4760, %v4761
        %v4779 = vadd.f32 %v4707, %v4741
        %v4780 = vadd.f32 %v4708, %v4740
        %v4781 = vadd.f32 %v4709, %v4744
        %v4782 = vadd.f32 %v4710, %v4743
        %v4783 = vadd.f32 %v4711, %v4747
        %v4784 = vadd.f32 %v4712, %v4746
        %v4785 = vadd.f32 %v4713, %v4750
        %v4786 = vadd.f32 %v4714, %v4749
        %v4787 = vadd.f32 %v4715, %v4753
        %v4788 = vadd.f32 %v4716, %v4752
        %v4789 = vadd.f32 %v4717, %v4756
        %v4790 = vadd.f32 %v4718, %v4755
        %v4791 = vadd.f32 %v4719, %v4759
        %v4792 = vadd.f32 %v4720, %v4758
        %v4793 = vadd.f32 %v4721, %v4762
        %v4794 = vadd.f32 %v4722, %v4761
        %v4795 = vld [vmem:[%s6] sm:$0x1]
        %v4797 = vlaneseq
        %v4798 = vshrl.u32 %v4797, 7
        %v4799 = vsub.s32 0, %v4798
        %v4800 = vrot.slane %v4795, %v4799
        %v4802 = vadd.f32 %v4779, %v4800
        %v4803 = vadd.f32 %v4780, %v4800
        %v4804 = vadd.f32 %v4781, %v4800
        %v4805 = vadd.f32 %v4782, %v4800
        %v4806 = vadd.f32 %v4783, %v4800
        %v4807 = vadd.f32 %v4784, %v4800
        %v4808 = vadd.f32 %v4785, %v4800
        %v4809 = vadd.f32 %v4786, %v4800
        %v4810 = vadd.f32 %v4787, %v4800
        %v4811 = vadd.f32 %v4788, %v4800
        %v4812 = vadd.f32 %v4789, %v4800
        %v4813 = vadd.f32 %v4790, %v4800
        %v4814 = vadd.f32 %v4791, %v4800
        %v4815 = vadd.f32 %v4792, %v4800
        %v4816 = vadd.f32 %v4793, %v4800
        %v4817 = vadd.f32 %v4794, %v4800
        %v4818 = vmax.f32 %v4802, 0.0
        %v4819 = vmax.f32 %v4803, 0.0
        %v4820 = vmax.f32 %v4804, 0.0
        %v4821 = vmax.f32 %v4805, 0.0
        %v4822 = vmax.f32 %v4806, 0.0
        %v4823 = vmax.f32 %v4807, 0.0
        %v4824 = vmax.f32 %v4808, 0.0
        %v4825 = vmax.f32 %v4809, 0.0
        %v4826 = vmax.f32 %v4810, 0.0
        %v4827 = vmax.f32 %v4811, 0.0
        %v4828 = vmax.f32 %v4812, 0.0
        %v4829 = vmax.f32 %v4813, 0.0
        %v4830 = vmax.f32 %v4814, 0.0
        %v4831 = vmax.f32 %v4815, 0.0
        %v4832 = vmax.f32 %v4816, 0.0
        %v4833 = vmax.f32 %v4817, 0.0
        %v4834 = vsel %vm1822, %v4819, -inf
        %v4835 = vmax.f32 %v4818, %v4834
        %v4836 = vrot.slane %v4835, 4
        %v4837 = vmax.f32 %v4835, %v4836
        %v4838 = vrot.slane %v4837, 2
        %v4839 = vmax.f32 %v4837, %v4838
        %v4840 = vrot.slane %v4839, 1
        %v4841 = vmax.f32 %v4839, %v4840
        %v4842 = vsel %vm1822, %v4821, -inf
        %v4843 = vmax.f32 %v4820, %v4842
        %v4844 = vrot.slane %v4843, 4
        %v4845 = vmax.f32 %v4843, %v4844
        %v4846 = vrot.slane %v4845, 2
        %v4847 = vmax.f32 %v4845, %v4846
        %v4848 = vrot.slane %v4847, 1
        %v4849 = vmax.f32 %v4847, %v4848
        %v4850 = vsel %vm1822, %v4823, -inf
        %v4851 = vmax.f32 %v4822, %v4850
        %v4852 = vrot.slane %v4851, 4
        %v4853 = vmax.f32 %v4851, %v4852
        %v4854 = vrot.slane %v4853, 2
        %v4855 = vmax.f32 %v4853, %v4854
        %v4856 = vrot.slane %v4855, 1
        %v4857 = vmax.f32 %v4855, %v4856
        %v4858 = vsel %vm1822, %v4825, -inf
        %v4859 = vmax.f32 %v4824, %v4858
        %v4860 = vrot.slane %v4859, 4
        %v4861 = vmax.f32 %v4859, %v4860
        %v4862 = vrot.slane %v4861, 2
        %v4863 = vmax.f32 %v4861, %v4862
        %v4864 = vrot.slane %v4863, 1
        %v4865 = vmax.f32 %v4863, %v4864
        %v4866 = vsel %vm1822, %v4827, -inf
        %v4867 = vmax.f32 %v4826, %v4866
        %v4868 = vrot.slane %v4867, 4
        %v4869 = vmax.f32 %v4867, %v4868
        %v4870 = vrot.slane %v4869, 2
        %v4871 = vmax.f32 %v4869, %v4870
        %v4872 = vrot.slane %v4871, 1
        %v4873 = vmax.f32 %v4871, %v4872
        %v4874 = vsel %vm1822, %v4829, -inf
        %v4875 = vmax.f32 %v4828, %v4874
        %v4876 = vrot.slane %v4875, 4
        %v4877 = vmax.f32 %v4875, %v4876
        %v4878 = vrot.slane %v4877, 2
        %v4879 = vmax.f32 %v4877, %v4878
        %v4880 = vrot.slane %v4879, 1
        %v4881 = vmax.f32 %v4879, %v4880
        %v4882 = vsel %vm1822, %v4831, -inf
        %v4883 = vmax.f32 %v4830, %v4882
        %v4884 = vrot.slane %v4883, 4
        %v4885 = vmax.f32 %v4883, %v4884
        %v4886 = vrot.slane %v4885, 2
        %v4887 = vmax.f32 %v4885, %v4886
        %v4888 = vrot.slane %v4887, 1
        %v4889 = vmax.f32 %v4887, %v4888
        %v4890 = vsel %vm1822, %v4833, -inf
        %v4891 = vmax.f32 %v4832, %v4890
        %v4892 = vrot.slane %v4891, 4
        %v4893 = vmax.f32 %v4891, %v4892
        %v4894 = vrot.slane %v4893, 2
        %v4895 = vmax.f32 %v4893, %v4894
        %v4896 = vrot.slane %v4895, 1
        %v4897 = vmax.f32 %v4895, %v4896
        %v4898 = vld [vmem:[#allocation10] sm:$0xff]
        %v4899 = vld [vmem:[#allocation10 + $0x8] sm:$0xff]
        %v4900 = vld [vmem:[#allocation10 + $0x10] sm:$0xff]
        %v4901 = vld [vmem:[#allocation10 + $0x18] sm:$0xff]
        %v4902 = vld [vmem:[#allocation10 + $0x20] sm:$0xff]
        %v4903 = vld [vmem:[#allocation10 + $0x28] sm:$0xff]
        %v4904 = vld [vmem:[#allocation10 + $0x30] sm:$0xff]
        %v4905 = vld [vmem:[#allocation10 + $0x38] sm:$0xff]
        %v4906 = vld [vmem:[#allocation10 + $0x40] sm:$0xff]
        %v4907 = vld [vmem:[#allocation10 + $0x48] sm:$0xff]
        %v4908 = vld [vmem:[#allocation10 + $0x50] sm:$0xff]
        %v4909 = vld [vmem:[#allocation10 + $0x58] sm:$0xff]
        %v4910 = vld [vmem:[#allocation10 + $0x60] sm:$0xff]
        %v4911 = vld [vmem:[#allocation10 + $0x68] sm:$0xff]
        %v4912 = vld [vmem:[#allocation10 + $0x70] sm:$0xff]
        %v4913 = vld [vmem:[#allocation10 + $0x78] sm:$0xff]
        %v4914 = vld [vmem:[%s8] sm:$0x1]
        %v4916 = vlaneseq
        %v4917 = vshrl.u32 %v4916, 7
        %v4918 = vsub.s32 0, %v4917
        %v4919 = vrot.slane %v4914, %v4918
        %vm4929 = vcmask 1041409
        %v4930 = vsel %vm4929, %v4849, %v4841
        %vm4931 = vcmask 1042434
        %v4932 = vsel %vm4931, %v4857, %v4930
        %vm4933 = vcmask 1043459
        %v4934 = vsel %vm4933, %v4865, %v4932
        %vm4935 = vcmask 1044484
        %v4936 = vsel %vm4935, %v4873, %v4934
        %vm4937 = vcmask 1045509
        %v4938 = vsel %vm4937, %v4881, %v4936
        %vm4939 = vcmask 1046534
        %v4940 = vsel %vm4939, %v4889, %v4938
        %vm4941 = vcmask 1047559
        %v4942 = vsel %vm4941, %v4897, %v4940
        %4944 = vmatprep.subr.mxu0 0.0
        %4945 = vmatpush1.msra.mxu0 %v4898
        %4946 = vmatprep.subr.mxu0 0.0
        %4947 = vmatpush1.msra.mxu0 %v4899
        %4948 = vmatprep.subr.mxu0 0.0
        %4949 = vmatpush1.msra.mxu0 %v4900
        %4950 = vmatprep.subr.mxu0 0.0
        %4951 = vmatpush1.msra.mxu0 %v4901
        %4952 = vmatprep.subr.mxu0 0.0
        %4953 = vmatpush1.msra.mxu0 %v4902
        %4954 = vmatprep.subr.mxu0 0.0
        %4955 = vmatpush1.msra.mxu0 %v4903
        %4956 = vmatprep.subr.mxu0 0.0
        %4957 = vmatpush1.msra.mxu0 %v4904
        %4958 = vmatprep.subr.mxu0 0.0
        %4959 = vmatpush1.msra.mxu0 %v4905
        %4960 = vmatprep.subr.mxu0 0.0
        %4961 = vmatpush1.msra.mxu0 %v4906
        %4962 = vmatprep.subr.mxu0 0.0
        %4963 = vmatpush1.msra.mxu0 %v4907
        %4964 = vmatprep.subr.mxu0 0.0
        %4965 = vmatpush1.msra.mxu0 %v4908
        %4966 = vmatprep.subr.mxu0 0.0
        %4967 = vmatpush1.msra.mxu0 %v4909
        %4968 = vmatprep.subr.mxu0 0.0
        %4969 = vmatpush1.msra.mxu0 %v4910
        %4970 = vmatprep.subr.mxu0 0.0
        %4971 = vmatpush1.msra.mxu0 %v4911
        %4972 = vmatprep.subr.mxu0 0.0
        %4973 = vmatpush1.msra.mxu0 %v4912
        %4974 = vmatprep.subr.mxu0 0.0
        %4975 = vmatpush1.msra.mxu0 %v4913
        %4976 = vmatprep.subr.mxu0 0.0
        %4977 = vmatpush1.msra.mxu0 0.0
        %4978 = vmatprep.subr.mxu0 0.0
        %4979 = vmatpush1.msra.mxu0 0.0
        %4980 = vmatprep.subr.mxu0 0.0
        %4981 = vmatpush1.msra.mxu0 0.0
        %4982 = vmatprep.subr.mxu0 0.0
        %4983 = vmatpush1.msra.mxu0 0.0
        %4984 = vmatprep.subr.mxu0 0.0
        %4985 = vmatpush1.msra.mxu0 0.0
        %4986 = vmatprep.subr.mxu0 0.0
        %4987 = vmatpush1.msra.mxu0 0.0
        %4988 = vmatprep.subr.mxu0 0.0
        %4989 = vmatpush1.msra.mxu0 0.0
        %4990 = vmatprep.subr.mxu0 0.0
        %4991 = vmatpush1.msra.mxu0 0.0
        %4992 = vmatprep.subr.mxu0 0.0
        %4993 = vmatpush1.msra.mxu0 0.0
        %4994 = vmatprep.subr.mxu0 0.0
        %4995 = vmatpush1.msra.mxu0 0.0
        %4996 = vmatprep.subr.mxu0 0.0
        %4997 = vmatpush1.msra.mxu0 0.0
        %4998 = vmatprep.subr.mxu0 0.0
        %4999 = vmatpush1.msra.mxu0 0.0
        %5000 = vmatprep.subr.mxu0 0.0
        %5001 = vmatpush1.msra.mxu0 0.0
        %5002 = vmatprep.subr.mxu0 0.0
        %5003 = vmatpush1.msra.mxu0 0.0
        %5004 = vmatprep.subr.mxu0 0.0
        %5005 = vmatpush1.msra.mxu0 0.0
        %5006 = vmatprep.subr.mxu0 0.0
        %5007 = vmatpush1.msra.mxu0 0.0
        %5008 = vmatprep.mubr.f32.mxu0 0.0
        %5009 = vmatmul.mubr.f32.gmra.mrb[0].mxu0 %v4942
        %v5010 = vpop.f32.mrb[0].mxu0
        %v5011 = vadd.f32 %v4919, %v5010
        %v5012 = vpop.f32.mrb[0].mxu0
        %5013 = vdwg.mxu0
        %v5014 = vmax.f32 %v5011, 0.0
        %v5015 = vld [vmem:[#allocation11] sm:$0xff]
        %v5016 = vld [vmem:[#allocation11 + $0x8] sm:$0xff]
        %v5017 = vld [vmem:[#allocation11 + $0x10] sm:$0xff]
        %v5018 = vld [vmem:[#allocation11 + $0x18] sm:$0xff]
        %v5019 = vld [vmem:[#allocation11 + $0x20] sm:$0xff]
        %v5020 = vld [vmem:[#allocation11 + $0x28] sm:$0xff]
        %v5021 = vld [vmem:[#allocation11 + $0x30] sm:$0xff]
        %v5022 = vld [vmem:[#allocation11 + $0x38] sm:$0xff]
        %v5023 = vld [vmem:[#allocation11 + $0x40] sm:$0xff]
        %v5024 = vld [vmem:[#allocation11 + $0x48] sm:$0xff]
        %v5025 = vld [vmem:[#allocation11 + $0x50] sm:$0xff]
        %v5026 = vld [vmem:[#allocation11 + $0x58] sm:$0xff]
        %v5027 = vld [vmem:[#allocation11 + $0x60] sm:$0xff]
        %v5028 = vld [vmem:[#allocation11 + $0x68] sm:$0xff]
        %v5029 = vld [vmem:[#allocation11 + $0x70] sm:$0xff]
        %v5030 = vld [vmem:[#allocation11 + $0x78] sm:$0xff]
        %v5031 = vld [vmem:[%s10] sm:$0x1]
        %v5033 = vlaneseq
        %v5034 = vshrl.u32 %v5033, 7
        %v5035 = vsub.s32 0, %v5034
        %v5036 = vrot.slane %v5031, %v5035
        %5038 = vmatprep.subr.mxu0 0.0
        %5039 = vmatpush1.msra.mxu0 %v5015
        %5040 = vmatprep.subr.mxu0 0.0
        %5041 = vmatpush1.msra.mxu0 %v5016
        %5042 = vmatprep.subr.mxu0 0.0
        %5043 = vmatpush1.msra.mxu0 %v5017
        %5044 = vmatprep.subr.mxu0 0.0
        %5045 = vmatpush1.msra.mxu0 %v5018
        %5046 = vmatprep.subr.mxu0 0.0
        %5047 = vmatpush1.msra.mxu0 %v5019
        %5048 = vmatprep.subr.mxu0 0.0
        %5049 = vmatpush1.msra.mxu0 %v5020
        %5050 = vmatprep.subr.mxu0 0.0
        %5051 = vmatpush1.msra.mxu0 %v5021
        %5052 = vmatprep.subr.mxu0 0.0
        %5053 = vmatpush1.msra.mxu0 %v5022
        %5054 = vmatprep.subr.mxu0 0.0
        %5055 = vmatpush1.msra.mxu0 %v5023
        %5056 = vmatprep.subr.mxu0 0.0
        %5057 = vmatpush1.msra.mxu0 %v5024
        %5058 = vmatprep.subr.mxu0 0.0
        %5059 = vmatpush1.msra.mxu0 %v5025
        %5060 = vmatprep.subr.mxu0 0.0
        %5061 = vmatpush1.msra.mxu0 %v5026
        %5062 = vmatprep.subr.mxu0 0.0
        %5063 = vmatpush1.msra.mxu0 %v5027
        %5064 = vmatprep.subr.mxu0 0.0
        %5065 = vmatpush1.msra.mxu0 %v5028
        %5066 = vmatprep.subr.mxu0 0.0
        %5067 = vmatpush1.msra.mxu0 %v5029
        %5068 = vmatprep.subr.mxu0 0.0
        %5069 = vmatpush1.msra.mxu0 %v5030
        %5070 = vmatprep.subr.mxu0 0.0
        %5071 = vmatpush1.msra.mxu0 0.0
        %5072 = vmatprep.subr.mxu0 0.0
        %5073 = vmatpush1.msra.mxu0 0.0
        %5074 = vmatprep.subr.mxu0 0.0
        %5075 = vmatpush1.msra.mxu0 0.0
        %5076 = vmatprep.subr.mxu0 0.0
        %5077 = vmatpush1.msra.mxu0 0.0
        %5078 = vmatprep.subr.mxu0 0.0
        %5079 = vmatpush1.msra.mxu0 0.0
        %5080 = vmatprep.subr.mxu0 0.0
        %5081 = vmatpush1.msra.mxu0 0.0
        %5082 = vmatprep.subr.mxu0 0.0
        %5083 = vmatpush1.msra.mxu0 0.0
        %5084 = vmatprep.subr.mxu0 0.0
        %5085 = vmatpush1.msra.mxu0 0.0
        %5086 = vmatprep.subr.mxu0 0.0
        %5087 = vmatpush1.msra.mxu0 0.0
        %5088 = vmatprep.subr.mxu0 0.0
        %5089 = vmatpush1.msra.mxu0 0.0
        %5090 = vmatprep.subr.mxu0 0.0
        %5091 = vmatpush1.msra.mxu0 0.0
        %5092 = vmatprep.subr.mxu0 0.0
        %5093 = vmatpush1.msra.mxu0 0.0
        %5094 = vmatprep.subr.mxu0 0.0
        %5095 = vmatpush1.msra.mxu0 0.0
        %5096 = vmatprep.subr.mxu0 0.0
        %5097 = vmatpush1.msra.mxu0 0.0
        %5098 = vmatprep.subr.mxu0 0.0
        %5099 = vmatpush1.msra.mxu0 0.0
        %5100 = vmatprep.subr.mxu0 0.0
        %5101 = vmatpush1.msra.mxu0 0.0
        %5102 = vmatprep.mubr.f32.mxu0 0.0
        %5103 = vmatmul.mubr.f32.gmra.mrb[0].mxu0 %v5014
        %v5104 = vpop.f32.mrb[0].mxu0
        %v5105 = vadd.f32 %v5036, %v5104
        %v5106 = vpop.f32.mrb[0].mxu0
        %5107 = vdwg.mxu0
        %5108 = vst [vmem:[%s478] sm:$0xff] %v5105
        %s5109 = sand.u32 %s275, 1
        %s5110 = scalar_lea.sflag [#allocation4], %s5109
        %s5111 = sand.u32 %s275, 1
        %s5112 = smul.addr %s5111, 8
        %s5113 = scalar_lea.vmem [#allocation13], %s5112
        // Predicated region
        $region89: #{tpu_custom_call.1} parent=63 // pred_check
          %p5114 = pneg %p285
        $region90: #{tpu_custom_call.1} parent=63 // pred_check_branch
          %5116 = sbr.rel (%p5114) target = $region92
        $region91: #{tpu_custom_call.1} parent=63 // pred_region
          %s5118 = ssub.s32 128, 128
          %5119 = vsyncadd %s5110, %s5118
          %s5120 = smul.addr %s31, 128
          %s5121 = scalar_lea.hbm %s11, %s5120
          %s5123 = sshll.u32 %s5113, 4
          %s5124 = int_to_ptr.vmem [resolvable:$true] %s5123
          %5126 = dma.vmem_to_hbm [thread:$0]  %s5124, 128, %s5121, %s5110
        $region92: #{tpu_custom_call.1} parent=63 // pred_fallthru
          _
      $region64: #{tpu_custom_call.1} parent=5 // pred_fallthru
        _
      %p5127 = scmp.le.s32.totalorder 2, %s26
      // Predicated region
      $region93: #{tpu_custom_call.1} parent=5 // pred_check
        %p5128 = pneg %p5127
      $region94: #{tpu_custom_call.1} parent=5 // pred_check_branch
        %5130 = sbr.rel (%p5128) target = $region96
      $region95: #{tpu_custom_call.1} parent=5 // pred_region
        %s5131 = ssub.s32 %s26, 2
        // Predicated region
        $region97: #{tpu_custom_call.1} parent=95 // pred_check
          %p5132 = pneg %p291
        $region98: #{tpu_custom_call.1} parent=95 // pred_check_branch
          %5134 = sbr.rel (%p5132) target = $region100
        $region99: #{tpu_custom_call.1} parent=95 // pred_region
          %s5135 = sand.u32 %s276, 1
          %s5136 = scalar_lea.sflag [#allocation4], %s5135
          %s5137 = sand.u32 %s276, 1
          %s5138 = smul.addr %s5137, 8
          %s5139 = scalar_lea.vmem [#allocation13], %s5138
          %5140 = dma.done %s5136, 128
        $region100: #{tpu_custom_call.1} parent=95 // pred_fallthru
          _
      $region96: #{tpu_custom_call.1} parent=5 // pred_fallthru
        _
    $region6: #{tpu_custom_call.1} parent=1 // loop_footer
      %s30 = sadd.s32 1, %s26
    $region7: #{tpu_custom_call.1} parent=1 // loop_footer_branch
      %25 = sbr.rel target = $region3
    $region8: #{tpu_custom_call.1} parent=1 // loop_exit
      _
    %5141 = vsyncpa [#allocation3], 1
    %s5142 = scalar_lea.sflag [#allocation3], 1
    %5143 = vsyncpa %s5142, 1
    %5144 = vsyncpa [#allocation6], 1
    %5145 = vsyncpa [#allocation9], 1
    %5146 = vsyncpa [#allocation12], 1
    %5147 = vsyncpa [#allocation4], 1
    %s5148 = scalar_lea.sflag [#allocation4], 1
    %5149 = vsyncpa %s5148, 1

</llo_original>
